<compile_context>
chip_gen: v7x
topology: tpu7x:2x2x1
jax: 0.10.0
libtpu: 0.0.40
codegen_flags: <defaults>
</compile_context>

<pallas_src>
import functools
import math

import jax
import jax.numpy as jnp
from jax.experimental import pallas as pl
from jax.experimental.pallas import tpu as pltpu

_EPS = 1e-5
_PH = 2  # per-image zero pad rows (covers the 5x5 conv)


# ----------------------------------------------------------------------------
# Fused Pallas kernel: the entire Head forward pass
# ----------------------------------------------------------------------------
def _head_kernel(x_ref, rmask_ref,
                 m_in, b_in,
                 m1a, b1a, g1a, e1a,
                 m1b, b1b, g1b, e1b,
                 m2a, b2a, g2a, e2a,
                 m2b, b2b, g2b, e2b,
                 mo1, bo1, go1, eo1,
                 mo2, bo2,
                 o_ref,
                 act_ref,
                 *, inv_count, eps, cmid, w_log2, concat_taps):
    RT, WC = act_ref.shape          # N*(H+2*PH) padded rows, W*Cmid lanes
    RM = o_ref.shape[0]             # rows computed per layer (middle window)
    PH = (RT - RM) // 2

    rmask = rmask_ref[...]          # (RM, 1)  1.0 on valid (n, h) rows else 0.0

    # Scratch holds the current activation (bf16) with zero pad rows invariant.
    act_ref[...] = jnp.zeros(act_ref.shape, act_ref.dtype)

    def conv(m_ref):
        # KxK conv = matmul of shifted bf16 row windows with block-Toeplitz
        # weights.  Taps are concatenated into the contraction dim (one MXU dot
        # per layer) unless concat_taps=False (v5e: K=128 native depth).
        KH = m_ref.shape[0] // WC
        ph = KH // 2
        if concat_taps:
            a = jnp.concatenate(
                [act_ref[PH + kh - ph:PH + kh - ph + RM, :] for kh in range(KH)],
                axis=1)
            return jnp.dot(a, m_ref[...], preferred_element_type=jnp.float32)
        acc = jnp.zeros((RM, m_ref.shape[1]), jnp.float32)
        for kh in range(KH):                               # static unroll
            a = act_ref[PH + kh - ph:PH + kh - ph + RM, :]
            acc = acc + jnp.dot(a, m_ref[kh * WC:(kh + 1) * WC, :],
                                preferred_element_type=jnp.float32)
        return acc

    def channel_sum(s):
        # Per-channel sum over the W column groups, broadcast back to all W
        # columns, via a log2(W) lane-roll butterfly (XLU; no selector matmul).
        r = s
        shift = cmid
        for _ in range(w_log2):
            r = r + pltpu.roll(r, shift, axis=1)
            shift *= 2
        return r

    def bn_relu(y, g_ref, e_ref):
        # Training-mode BatchNorm over (N,H,W): two-pass mean/var, f32 epilogue.
        mean = channel_sum(jnp.sum(y, axis=0, keepdims=True)) * inv_count
        d = (y - mean) * rmask
        var = channel_sum(jnp.sum(d * d, axis=0, keepdims=True)) * inv_count
        yn = d * jax.lax.rsqrt(var + eps) * g_ref[...] + e_ref[...]
        return jnp.maximum(yn, 0.0) * rmask

    # ---- in_proj: 1x1 conv (block-diagonal matmul), no norm / activation ----
    cur = (jnp.dot(x_ref[...], m_in[...], preferred_element_type=jnp.float32)
           + b_in[...]) * rmask

    # ---- conv1 (DoubleConv) + residual ----
    act_ref[PH:PH + RM, :] = cur.astype(act_ref.dtype)
    h = bn_relu((conv(m1a) + b1a[...]) * rmask, g1a, e1a)
    act_ref[PH:PH + RM, :] = h.astype(act_ref.dtype)
    h = bn_relu((conv(m1b) + b1b[...]) * rmask, g1b, e1b)
    cur = cur + h

    # ---- conv2 (DoubleConv) + residual ----
    act_ref[PH:PH + RM, :] = cur.astype(act_ref.dtype)
    h = bn_relu((conv(m2a) + b2a[...]) * rmask, g2a, e2a)
    act_ref[PH:PH + RM, :] = h.astype(act_ref.dtype)
    h = bn_relu((conv(m2b) + b2b[...]) * rmask, g2b, e2b)
    cur = cur + h

    # ---- out head: conv5x5 + BN + ReLU, then conv3x3 (lane-padded Cout) ----
    act_ref[PH:PH + RM, :] = cur.astype(act_ref.dtype)
    cur = bn_relu((conv(mo1) + bo1[...]) * rmask, go1, eo1)
    act_ref[PH:PH + RM, :] = cur.astype(act_ref.dtype)
    o_ref[...] = ((conv(mo2) + bo2[...]) * rmask).astype(o_ref.dtype)


# ----------------------------------------------------------------------------
# Wrapper-side parameter / layout preparation (plain JAX, runs once)
# ----------------------------------------------------------------------------
def _toeplitz_mats(w, W, co_pad=None):
    """PyTorch conv weight (CO, CI, KH, KW) -> (KH*W*CI, W*CO) bf16 matrix.

    Row block kh, entry [w_in*CI + ci, w_out*CO + co] = w[co, ci, kh,
    w_in - w_out + KW//2] (zero outside the kernel window), so that the
    concatenation of the KH shifted row windows @ this matrix performs the full
    KxK convolution including its zero padding along W.
    """
    CO, CI, KH, KW = w.shape
    if co_pad is not None and co_pad > CO:
        w = jnp.pad(w, ((0, co_pad - CO), (0, 0), (0, 0), (0, 0)))
        CO = co_pad
    pw = KW // 2
    wi = jnp.arange(W)[:, None]
    wo = jnp.arange(W)[None, :]
    kw_idx = wi - wo + pw
    valid = (kw_idx >= 0) & (kw_idx < KW)
    kw_c = jnp.clip(kw_idx, 0, KW - 1)
    mats = []
    for kh in range(KH):
        wk = jnp.transpose(w[:, :, kh, :], (2, 1, 0))              # (KW, CI, CO)
        blk = jnp.where(valid[:, :, None, None], wk[kw_c], 0.0)    # (W, W, CI, CO)
        mats.append(jnp.transpose(blk, (0, 2, 1, 3)).reshape(W * CI, W * CO))
    return jnp.concatenate(mats, axis=0).astype(jnp.bfloat16)


def _tile_cols(v, W):
    # per-channel vector -> (1, W*C) column vector matching the row-matrix layout
    return jnp.tile(v.astype(jnp.float32), W).reshape(1, W * v.shape[0])


def head_forward(params, x_nchw, *, concat_taps=True):
    N, Cin, H, W = x_nchw.shape
    Cmid = params["c1a"][0].shape[0]
    Cout = params["out2"][0].shape[0]
    Hp = H + 2 * _PH
    RT = N * Hp
    RM = RT - 2 * _PH

    if W & (W - 1):
        # TODO(synk): non-power-of-2 W needs a rectangular (W*C, C) selector fallback for the BN reduction.
        raise NotImplementedError("W must be a power of two for the roll butterfly")

    # lane-padded output channel count so W*Cout_pad is a multiple of 128
    cout_pad = Cout
    while (W * cout_pad) % 128:
        cout_pad += 1

    # input in row-matrix layout: only the computed RM-row window, bf16
    xr = jnp.transpose(x_nchw.astype(jnp.float32), (0, 2, 3, 1))   # N,H,W,C
    xr = jnp.pad(xr.reshape(N, H, W * Cin), ((0, 0), (_PH, _PH), (0, 0)))
    x_rows = xr.reshape(RT, W * Cin)[_PH:RT - _PH].astype(jnp.bfloat16)

    # mask of valid (n, h) rows inside the computed row window
    g = jnp.arange(_PH, RT - _PH)
    rmask = (((g % Hp) >= _PH) & ((g % Hp) < _PH + H)).astype(jnp.float32)
    rmask = rmask.reshape(RM, 1)

    ins = [x_rows, rmask]
    w, b = params["in_proj"]
    ins += [_toeplitz_mats(w, W), _tile_cols(b, W)]
    for cname, bname in (("c1a", "bn1a"), ("c1b", "bn1b"),
                         ("c2a", "bn2a"), ("c2b", "bn2b"),
                         ("out1", "bn_out")):
        w, b = params[cname]
        gm, bt = params[bname]
        ins += [_toeplitz_mats(w, W), _tile_cols(b, W),
                _tile_cols(gm, W), _tile_cols(bt, W)]
    w, b = params["out2"]
    ins += [_toeplitz_mats(w, W, co_pad=cout_pad),
            _tile_cols(jnp.pad(b, (0, cout_pad - Cout)), W)]

    kernel = functools.partial(
        _head_kernel,
        inv_count=1.0 / float(N * H * W), eps=_EPS,
        cmid=Cmid, w_log2=int(math.log2(W)), concat_taps=concat_taps)

    def full(a):
        return pl.BlockSpec(a.shape, lambda i, _nd=a.ndim: (0,) * _nd)

    out_rows = pl.pallas_call(
        kernel,
        grid=(1,),
        out_shape=jax.ShapeDtypeStruct((RM, W * cout_pad), jnp.float32),
        in_specs=[full(a) for a in ins],
        out_specs=pl.BlockSpec((RM, W * cout_pad), lambda i: (0, 0)),
        scratch_shapes=[pltpu.VMEM((RT, W * Cmid), jnp.bfloat16)],
        compiler_params=pltpu.CompilerParams(
            dimension_semantics=("arbitrary",)),
    )(*ins)

    # rows of out_rows map to (n, h) = (r // Hp, r % Hp); pad tail & slice
    y = jnp.pad(out_rows, ((0, 2 * _PH), (0, 0)))
    y = y.reshape(N, Hp, W, cout_pad)[:, :H, :, :Cout]
    return jnp.transpose(y, (0, 3, 1, 2))                          # NHWC -> NCHW


# ----------------------------------------------------------------------------
# Parameter init (deterministic, PyTorch-style Conv2d init; BN gamma=1, beta=0)
# ----------------------------------------------------------------------------
def _init_conv(key, cout, cin, kh, kw):
    k1, k2 = jax.random.split(key)
    bound = 1.0 / math.sqrt(cin * kh * kw)
    w = jax.random.uniform(k1, (cout, cin, kh, kw), jnp.float32, -bound, bound)
    b = jax.random.uniform(k2, (cout,), jnp.float32, -bound, bound)
    return w, b


def init_head_params(key, in_channels, out_channels, mid_channels):
    keys = jax.random.split(key, 8)
    p = {}
    p["in_proj"] = _init_conv(keys[0], mid_channels, in_channels, 1, 1)
    p["c1a"] = _init_conv(keys[1], mid_channels, mid_channels, 3, 3)
    p["c1b"] = _init_conv(keys[2], mid_channels, mid_channels, 3, 3)
    p["c2a"] = _init_conv(keys[3], mid_channels, mid_channels, 3, 3)
    p["c2b"] = _init_conv(keys[4], mid_channels, mid_channels, 3, 3)
    p["out1"] = _init_conv(keys[5], mid_channels, mid_channels, 5, 5)
    p["out2"] = _init_conv(keys[6], out_channels, mid_channels, 3, 3)
    ones = jnp.ones((mid_channels,), jnp.float32)
    zeros = jnp.zeros((mid_channels,), jnp.float32)
    for name in ("bn1a", "bn1b", "bn2a", "bn2b", "bn_out"):
        p[name] = (ones, zeros)
    return p


# ----------------------------------------------------------------------------
# Pure-JAX reference (same bf16 matmul-operand rounding, f32 accumulation)
# ----------------------------------------------------------------------------
def _ref_conv(x, w, b):
    xq = x.astype(jnp.bfloat16).astype(jnp.float32)
    wq = w.astype(jnp.bfloat16).astype(jnp.float32)
    y = jax.lax.conv_general_dilated(
        xq, jnp.transpose(wq, (2, 3, 1, 0)),
        window_strides=(1, 1), padding="SAME",
        dimension_numbers=("NHWC", "HWIO", "NHWC"))
    return y + b


def _ref_bn_relu(x, g, be, eps=_EPS):
    mean = jnp.mean(x, axis=(0, 1, 2), keepdims=True)
    var = jnp.mean((x - mean) ** 2, axis=(0, 1, 2), keepdims=True)
    return jnp.maximum((x - mean) * jax.lax.rsqrt(var + eps) * g + be, 0.0)


def head_forward_ref(params, x_nchw):
    x = jnp.transpose(x_nchw, (0, 2, 3, 1)).astype(jnp.float32)
    w, b = params["in_proj"]
    x = _ref_conv(x, w, b)
    for a, bn_a, c, bn_c in (("c1a", "bn1a", "c1b", "bn1b"),
                             ("c2a", "bn2a", "c2b", "bn2b")):
        w, bb = params[a]; g, be = params[bn_a]
        h = _ref_bn_relu(_ref_conv(x, w, bb), g, be)
        w, bb = params[c]; g, be = params[bn_c]
        h = _ref_bn_relu(_ref_conv(h, w, bb), g, be)
        x = h + x
    w, bb = params["out1"]; g, be = params["bn_out"]
    x = _ref_bn_relu(_ref_conv(x, w, bb), g, be)
    w, bb = params["out2"]
    x = _ref_conv(x, w, bb)
    return jnp.transpose(x, (0, 3, 1, 2))


if __name__ == "__main__":
    in_channels, mid_channels, out_channels = 4, 8, 2
    N, H, W = 2, 16, 16

    key = jax.random.PRNGKey(0)
    k_params, k_x = jax.random.split(key)
    params = init_head_params(k_params, in_channels, out_channels, mid_channels)
    x = jax.random.normal(k_x, (N, in_channels, H, W), jnp.float32)

    y = jax.block_until_ready(head_forward(params, x))
    y_ref = jax.block_until_ready(head_forward_ref(params, x))

    assert y.shape == (N, out_channels, H, W), y.shape
    assert bool(jnp.all(jnp.isfinite(y)))
    max_err = float(jnp.max(jnp.abs(y - y_ref)))
    assert bool(jnp.allclose(y, y_ref, rtol=2e-3, atol=2e-3)), max_err

    print("KERNEL_OK")
</pallas_src>

<mosaic_0001>
module attributes {stable_mosaic.version = 11 : i64} {
  func.func @_head_kernel(%arg0: i32, %arg1: memref<36x64xbf16, #tpu.memory_space<vmem>>, %arg2: memref<36x1xf32, #tpu.memory_space<vmem>>, %arg3: memref<64x128xbf16, #tpu.memory_space<vmem>>, %arg4: memref<1x128xf32, #tpu.memory_space<vmem>>, %arg5: memref<384x128xbf16, #tpu.memory_space<vmem>>, %arg6: memref<1x128xf32, #tpu.memory_space<vmem>>, %arg7: memref<1x128xf32, #tpu.memory_space<vmem>>, %arg8: memref<1x128xf32, #tpu.memory_space<vmem>>, %arg9: memref<384x128xbf16, #tpu.memory_space<vmem>>, %arg10: memref<1x128xf32, #tpu.memory_space<vmem>>, %arg11: memref<1x128xf32, #tpu.memory_space<vmem>>, %arg12: memref<1x128xf32, #tpu.memory_space<vmem>>, %arg13: memref<384x128xbf16, #tpu.memory_space<vmem>>, %arg14: memref<1x128xf32, #tpu.memory_space<vmem>>, %arg15: memref<1x128xf32, #tpu.memory_space<vmem>>, %arg16: memref<1x128xf32, #tpu.memory_space<vmem>>, %arg17: memref<384x128xbf16, #tpu.memory_space<vmem>>, %arg18: memref<1x128xf32, #tpu.memory_space<vmem>>, %arg19: memref<1x128xf32, #tpu.memory_space<vmem>>, %arg20: memref<1x128xf32, #tpu.memory_space<vmem>>, %arg21: memref<640x128xbf16, #tpu.memory_space<vmem>>, %arg22: memref<1x128xf32, #tpu.memory_space<vmem>>, %arg23: memref<1x128xf32, #tpu.memory_space<vmem>>, %arg24: memref<1x128xf32, #tpu.memory_space<vmem>>, %arg25: memref<384x128xbf16, #tpu.memory_space<vmem>>, %arg26: memref<1x128xf32, #tpu.memory_space<vmem>>, %arg27: memref<36x128xf32, #tpu.memory_space<vmem>>, %arg28: memref<40x128xbf16, #tpu.memory_space<vmem>>) attributes {dimension_semantics = [#tpu.dimension_semantics<arbitrary>], iteration_bounds = array<i64: 1>, scalar_prefetch = 0 : i64, scratch_operands = 1 : i64, tpu.core_type = #tpu.core_type<tc>, window_params = [{pipeline_mode = #tpu.pipeline_mode<synchronous>, transform_indices = @transform_0, window_bounds = array<i64: 36, 64>}, {pipeline_mode = #tpu.pipeline_mode<synchronous>, transform_indices = @transform_1, window_bounds = array<i64: 36, 1>}, {pipeline_mode = #tpu.pipeline_mode<synchronous>, transform_indices = @transform_2, window_bounds = array<i64: 64, 128>}, {pipeline_mode = #tpu.pipeline_mode<synchronous>, transform_indices = @transform_3, window_bounds = array<i64: 1, 128>}, {pipeline_mode = #tpu.pipeline_mode<synchronous>, transform_indices = @transform_4, window_bounds = array<i64: 384, 128>}, {pipeline_mode = #tpu.pipeline_mode<synchronous>, transform_indices = @transform_5, window_bounds = array<i64: 1, 128>}, {pipeline_mode = #tpu.pipeline_mode<synchronous>, transform_indices = @transform_6, window_bounds = array<i64: 1, 128>}, {pipeline_mode = #tpu.pipeline_mode<synchronous>, transform_indices = @transform_7, window_bounds = array<i64: 1, 128>}, {pipeline_mode = #tpu.pipeline_mode<synchronous>, transform_indices = @transform_8, window_bounds = array<i64: 384, 128>}, {pipeline_mode = #tpu.pipeline_mode<synchronous>, transform_indices = @transform_9, window_bounds = array<i64: 1, 128>}, {pipeline_mode = #tpu.pipeline_mode<synchronous>, transform_indices = @transform_10, window_bounds = array<i64: 1, 128>}, {pipeline_mode = #tpu.pipeline_mode<synchronous>, transform_indices = @transform_11, window_bounds = array<i64: 1, 128>}, {pipeline_mode = #tpu.pipeline_mode<synchronous>, transform_indices = @transform_12, window_bounds = array<i64: 384, 128>}, {pipeline_mode = #tpu.pipeline_mode<synchronous>, transform_indices = @transform_13, window_bounds = array<i64: 1, 128>}, {pipeline_mode = #tpu.pipeline_mode<synchronous>, transform_indices = @transform_14, window_bounds = array<i64: 1, 128>}, {pipeline_mode = #tpu.pipeline_mode<synchronous>, transform_indices = @transform_15, window_bounds = array<i64: 1, 128>}, {pipeline_mode = #tpu.pipeline_mode<synchronous>, transform_indices = @transform_16, window_bounds = array<i64: 384, 128>}, {pipeline_mode = #tpu.pipeline_mode<synchronous>, transform_indices = @transform_17, window_bounds = array<i64: 1, 128>}, {pipeline_mode = #tpu.pipeline_mode<synchronous>, transform_indices = @transform_18, window_bounds = array<i64: 1, 128>}, {pipeline_mode = #tpu.pipeline_mode<synchronous>, transform_indices = @transform_19, window_bounds = array<i64: 1, 128>}, {pipeline_mode = #tpu.pipeline_mode<synchronous>, transform_indices = @transform_20, window_bounds = array<i64: 640, 128>}, {pipeline_mode = #tpu.pipeline_mode<synchronous>, transform_indices = @transform_21, window_bounds = array<i64: 1, 128>}, {pipeline_mode = #tpu.pipeline_mode<synchronous>, transform_indices = @transform_22, window_bounds = array<i64: 1, 128>}, {pipeline_mode = #tpu.pipeline_mode<synchronous>, transform_indices = @transform_23, window_bounds = array<i64: 1, 128>}, {pipeline_mode = #tpu.pipeline_mode<synchronous>, transform_indices = @transform_24, window_bounds = array<i64: 384, 128>}, {pipeline_mode = #tpu.pipeline_mode<synchronous>, transform_indices = @transform_25, window_bounds = array<i64: 1, 128>}, {pipeline_mode = #tpu.pipeline_mode<synchronous>, transform_indices = @transform_26, window_bounds = array<i64: 36, 128>}]} {
    %c0 = arith.constant 0 : index
    %c0_0 = arith.constant 0 : index
    %0 = vector.load %arg2[%c0, %c0_0] : memref<36x1xf32, #tpu.memory_space<vmem>>, vector<36x1xf32>
    %cst = arith.constant 0.000000e+00 : bf16
    %1 = vector.broadcast %cst : bf16 to vector<40x128xbf16>
    %c0_1 = arith.constant 0 : index
    %c0_2 = arith.constant 0 : index
    %2 = vector.load %arg28[%c0_1, %c0_2] : memref<40x128xbf16, #tpu.memory_space<vmem>>, vector<40x128xbf16>
    tpu.vector_store %arg28[%c0_1, %c0_2], %1 {strides = array<i32>} : memref<40x128xbf16, #tpu.memory_space<vmem>>, vector<40x128xbf16>,
    %c0_3 = arith.constant 0 : index
    %c0_4 = arith.constant 0 : index
    %3 = vector.load %arg1[%c0_3, %c0_4] : memref<36x64xbf16, #tpu.memory_space<vmem>>, vector<36x64xbf16>
    %c0_5 = arith.constant 0 : index
    %c0_6 = arith.constant 0 : index
    %4 = vector.load %arg3[%c0_5, %c0_6] : memref<64x128xbf16, #tpu.memory_space<vmem>>, vector<64x128xbf16>
    %cst_7 = arith.constant dense<0.000000e+00> : vector<36x128xf32>
    %5 = tpu.matmul %3, %4, %cst_7 {dimension_numbers = #tpu.dot_dimension_numbers<[1], [0], [0], [1], [0, 0, 1, 1], [], []>} : vector<36x64xbf16>, vector<64x128xbf16>, vector<36x128xf32> -> vector<36x128xf32>
    %c0_8 = arith.constant 0 : index
    %c0_9 = arith.constant 0 : index
    %6 = vector.load %arg4[%c0_8, %c0_9] : memref<1x128xf32, #tpu.memory_space<vmem>>, vector<1x128xf32>
    %7 = vector.broadcast %6 : vector<1x128xf32> to vector<36x128xf32>
    %8 = arith.addf %5, %7 : vector<36x128xf32>
    %9 = vector.broadcast %0 : vector<36x1xf32> to vector<36x128xf32>
    %10 = arith.mulf %8, %9 : vector<36x128xf32>
    %11 = arith.truncf %10 : vector<36x128xf32> to vector<36x128xbf16>
    %c2 = arith.constant 2 : index
    %c0_10 = arith.constant 0 : index
    %12 = vector.load %arg28[%c2, %c0_10] : memref<40x128xbf16, #tpu.memory_space<vmem>>, vector<36x128xbf16>
    tpu.vector_store %arg28[%c2, %c0_10], %11 {strides = array<i32>} : memref<40x128xbf16, #tpu.memory_space<vmem>>, vector<36x128xbf16>,
    %c1 = arith.constant 1 : index
    %c0_11 = arith.constant 0 : index
    %13 = vector.load %arg28[%c1, %c0_11] : memref<40x128xbf16, #tpu.memory_space<vmem>>, vector<36x128xbf16>
    %c2_12 = arith.constant 2 : index
    %c0_13 = arith.constant 0 : index
    %14 = vector.load %arg28[%c2_12, %c0_13] : memref<40x128xbf16, #tpu.memory_space<vmem>>, vector<36x128xbf16>
    %c3 = arith.constant 3 : index
    %c0_14 = arith.constant 0 : index
    %15 = vector.load %arg28[%c3, %c0_14] : memref<40x128xbf16, #tpu.memory_space<vmem>>, vector<36x128xbf16>
    %16 = tpu.concatenate %13, %14, %15 in 1 : vector<36x128xbf16>, vector<36x128xbf16>, vector<36x128xbf16> -> vector<36x384xbf16>
    %c0_15 = arith.constant 0 : index
    %c0_16 = arith.constant 0 : index
    %17 = vector.load %arg5[%c0_15, %c0_16] : memref<384x128xbf16, #tpu.memory_space<vmem>>, vector<384x128xbf16>
    %cst_17 = arith.constant dense<0.000000e+00> : vector<36x128xf32>
    %18 = tpu.matmul %16, %17, %cst_17 {dimension_numbers = #tpu.dot_dimension_numbers<[1], [0], [0], [1], [0, 0, 1, 1], [], []>} : vector<36x384xbf16>, vector<384x128xbf16>, vector<36x128xf32> -> vector<36x128xf32>
    %c0_18 = arith.constant 0 : index
    %c0_19 = arith.constant 0 : index
    %19 = vector.load %arg6[%c0_18, %c0_19] : memref<1x128xf32, #tpu.memory_space<vmem>>, vector<1x128xf32>
    %20 = vector.broadcast %19 : vector<1x128xf32> to vector<36x128xf32>
    %21 = arith.addf %18, %20 : vector<36x128xf32>
    %22 = vector.broadcast %0 : vector<36x1xf32> to vector<36x128xf32>
    %23 = arith.mulf %21, %22 : vector<36x128xf32>
    %cst_20 = arith.constant dense<0.000000e+00> : vector<128xf32>
    %24 = vector.multi_reduction <add>, %23, %cst_20 [0] : vector<36x128xf32> to vector<128xf32>
    %25 = vector.shape_cast %24 : vector<128xf32> to vector<1x128xf32>
    %c8_i32 = arith.constant 8 : i32
    %26 = tpu.dynamic_rotate %25 by %c8_i32 dim 1 : vector<1x128xf32>, i32 -> vector<1x128xf32>
    %27 = arith.addf %25, %26 : vector<1x128xf32>
    %c16_i32 = arith.constant 16 : i32
    %28 = tpu.dynamic_rotate %27 by %c16_i32 dim 1 : vector<1x128xf32>, i32 -> vector<1x128xf32>
    %29 = arith.addf %27, %28 : vector<1x128xf32>
    %c32_i32 = arith.constant 32 : i32
    %30 = tpu.dynamic_rotate %29 by %c32_i32 dim 1 : vector<1x128xf32>, i32 -> vector<1x128xf32>
    %31 = arith.addf %29, %30 : vector<1x128xf32>
    %c64_i32 = arith.constant 64 : i32
    %32 = tpu.dynamic_rotate %31 by %c64_i32 dim 1 : vector<1x128xf32>, i32 -> vector<1x128xf32>
    %33 = arith.addf %31, %32 : vector<1x128xf32>
    %cst_21 = arith.constant 0.001953125 : f32
    %34 = vector.broadcast %cst_21 : f32 to vector<1x128xf32>
    %35 = arith.mulf %33, %34 : vector<1x128xf32>
    %36 = vector.broadcast %35 : vector<1x128xf32> to vector<36x128xf32>
    %37 = arith.subf %23, %36 : vector<36x128xf32>
    %38 = vector.broadcast %0 : vector<36x1xf32> to vector<36x128xf32>
    %39 = arith.mulf %37, %38 : vector<36x128xf32>
    %40 = arith.mulf %39, %39 : vector<36x128xf32>
    %cst_22 = arith.constant dense<0.000000e+00> : vector<128xf32>
    %41 = vector.multi_reduction <add>, %40, %cst_22 [0] : vector<36x128xf32> to vector<128xf32>
    %42 = vector.shape_cast %41 : vector<128xf32> to vector<1x128xf32>
    %c8_i32_23 = arith.constant 8 : i32
    %43 = tpu.dynamic_rotate %42 by %c8_i32_23 dim 1 : vector<1x128xf32>, i32 -> vector<1x128xf32>
    %44 = arith.addf %42, %43 : vector<1x128xf32>
    %c16_i32_24 = arith.constant 16 : i32
    %45 = tpu.dynamic_rotate %44 by %c16_i32_24 dim 1 : vector<1x128xf32>, i32 -> vector<1x128xf32>
    %46 = arith.addf %44, %45 : vector<1x128xf32>
    %c32_i32_25 = arith.constant 32 : i32
    %47 = tpu.dynamic_rotate %46 by %c32_i32_25 dim 1 : vector<1x128xf32>, i32 -> vector<1x128xf32>
    %48 = arith.addf %46, %47 : vector<1x128xf32>
    %c64_i32_26 = arith.constant 64 : i32
    %49 = tpu.dynamic_rotate %48 by %c64_i32_26 dim 1 : vector<1x128xf32>, i32 -> vector<1x128xf32>
    %50 = arith.addf %48, %49 : vector<1x128xf32>
    %cst_27 = arith.constant 0.001953125 : f32
    %51 = vector.broadcast %cst_27 : f32 to vector<1x128xf32>
    %52 = arith.mulf %50, %51 : vector<1x128xf32>
    %cst_28 = arith.constant 9.99999974E-6 : f32
    %53 = vector.broadcast %cst_28 : f32 to vector<1x128xf32>
    %54 = arith.addf %52, %53 : vector<1x128xf32>
    %55 = math.rsqrt %54 : vector<1x128xf32>
    %56 = vector.broadcast %55 : vector<1x128xf32> to vector<36x128xf32>
    %57 = arith.mulf %39, %56 : vector<36x128xf32>
    %c0_29 = arith.constant 0 : index
    %c0_30 = arith.constant 0 : index
    %58 = vector.load %arg7[%c0_29, %c0_30] : memref<1x128xf32, #tpu.memory_space<vmem>>, vector<1x128xf32>
    %59 = vector.broadcast %58 : vector<1x128xf32> to vector<36x128xf32>
    %60 = arith.mulf %57, %59 : vector<36x128xf32>
    %c0_31 = arith.constant 0 : index
    %c0_32 = arith.constant 0 : index
    %61 = vector.load %arg8[%c0_31, %c0_32] : memref<1x128xf32, #tpu.memory_space<vmem>>, vector<1x128xf32>
    %62 = vector.broadcast %61 : vector<1x128xf32> to vector<36x128xf32>
    %63 = arith.addf %60, %62 : vector<36x128xf32>
    %cst_33 = arith.constant 0.000000e+00 : f32
    %64 = vector.broadcast %cst_33 : f32 to vector<36x128xf32>
    %65 = arith.maximumf %63, %64 : vector<36x128xf32>
    %66 = vector.broadcast %0 : vector<36x1xf32> to vector<36x128xf32>
    %67 = arith.mulf %65, %66 : vector<36x128xf32>
    %68 = arith.truncf %67 : vector<36x128xf32> to vector<36x128xbf16>
    %c2_34 = arith.constant 2 : index
    %c0_35 = arith.constant 0 : index
    %69 = vector.load %arg28[%c2_34, %c0_35] : memref<40x128xbf16, #tpu.memory_space<vmem>>, vector<36x128xbf16>
    tpu.vector_store %arg28[%c2_34, %c0_35], %68 {strides = array<i32>} : memref<40x128xbf16, #tpu.memory_space<vmem>>, vector<36x128xbf16>,
    %c1_36 = arith.constant 1 : index
    %c0_37 = arith.constant 0 : index
    %70 = vector.load %arg28[%c1_36, %c0_37] : memref<40x128xbf16, #tpu.memory_space<vmem>>, vector<36x128xbf16>
    %c2_38 = arith.constant 2 : index
    %c0_39 = arith.constant 0 : index
    %71 = vector.load %arg28[%c2_38, %c0_39] : memref<40x128xbf16, #tpu.memory_space<vmem>>, vector<36x128xbf16>
    %c3_40 = arith.constant 3 : index
    %c0_41 = arith.constant 0 : index
    %72 = vector.load %arg28[%c3_40, %c0_41] : memref<40x128xbf16, #tpu.memory_space<vmem>>, vector<36x128xbf16>
    %73 = tpu.concatenate %70, %71, %72 in 1 : vector<36x128xbf16>, vector<36x128xbf16>, vector<36x128xbf16> -> vector<36x384xbf16>
    %c0_42 = arith.constant 0 : index
    %c0_43 = arith.constant 0 : index
    %74 = vector.load %arg9[%c0_42, %c0_43] : memref<384x128xbf16, #tpu.memory_space<vmem>>, vector<384x128xbf16>
    %cst_44 = arith.constant dense<0.000000e+00> : vector<36x128xf32>
    %75 = tpu.matmul %73, %74, %cst_44 {dimension_numbers = #tpu.dot_dimension_numbers<[1], [0], [0], [1], [0, 0, 1, 1], [], []>} : vector<36x384xbf16>, vector<384x128xbf16>, vector<36x128xf32> -> vector<36x128xf32>
    %c0_45 = arith.constant 0 : index
    %c0_46 = arith.constant 0 : index
    %76 = vector.load %arg10[%c0_45, %c0_46] : memref<1x128xf32, #tpu.memory_space<vmem>>, vector<1x128xf32>
    %77 = vector.broadcast %76 : vector<1x128xf32> to vector<36x128xf32>
    %78 = arith.addf %75, %77 : vector<36x128xf32>
    %79 = vector.broadcast %0 : vector<36x1xf32> to vector<36x128xf32>
    %80 = arith.mulf %78, %79 : vector<36x128xf32>
    %cst_47 = arith.constant dense<0.000000e+00> : vector<128xf32>
    %81 = vector.multi_reduction <add>, %80, %cst_47 [0] : vector<36x128xf32> to vector<128xf32>
    %82 = vector.shape_cast %81 : vector<128xf32> to vector<1x128xf32>
    %c8_i32_48 = arith.constant 8 : i32
    %83 = tpu.dynamic_rotate %82 by %c8_i32_48 dim 1 : vector<1x128xf32>, i32 -> vector<1x128xf32>
    %84 = arith.addf %82, %83 : vector<1x128xf32>
    %c16_i32_49 = arith.constant 16 : i32
    %85 = tpu.dynamic_rotate %84 by %c16_i32_49 dim 1 : vector<1x128xf32>, i32 -> vector<1x128xf32>
    %86 = arith.addf %84, %85 : vector<1x128xf32>
    %c32_i32_50 = arith.constant 32 : i32
    %87 = tpu.dynamic_rotate %86 by %c32_i32_50 dim 1 : vector<1x128xf32>, i32 -> vector<1x128xf32>
    %88 = arith.addf %86, %87 : vector<1x128xf32>
    %c64_i32_51 = arith.constant 64 : i32
    %89 = tpu.dynamic_rotate %88 by %c64_i32_51 dim 1 : vector<1x128xf32>, i32 -> vector<1x128xf32>
    %90 = arith.addf %88, %89 : vector<1x128xf32>
    %cst_52 = arith.constant 0.001953125 : f32
    %91 = vector.broadcast %cst_52 : f32 to vector<1x128xf32>
    %92 = arith.mulf %90, %91 : vector<1x128xf32>
    %93 = vector.broadcast %92 : vector<1x128xf32> to vector<36x128xf32>
    %94 = arith.subf %80, %93 : vector<36x128xf32>
    %95 = vector.broadcast %0 : vector<36x1xf32> to vector<36x128xf32>
    %96 = arith.mulf %94, %95 : vector<36x128xf32>
    %97 = arith.mulf %96, %96 : vector<36x128xf32>
    %cst_53 = arith.constant dense<0.000000e+00> : vector<128xf32>
    %98 = vector.multi_reduction <add>, %97, %cst_53 [0] : vector<36x128xf32> to vector<128xf32>
    %99 = vector.shape_cast %98 : vector<128xf32> to vector<1x128xf32>
    %c8_i32_54 = arith.constant 8 : i32
    %100 = tpu.dynamic_rotate %99 by %c8_i32_54 dim 1 : vector<1x128xf32>, i32 -> vector<1x128xf32>
    %101 = arith.addf %99, %100 : vector<1x128xf32>
    %c16_i32_55 = arith.constant 16 : i32
    %102 = tpu.dynamic_rotate %101 by %c16_i32_55 dim 1 : vector<1x128xf32>, i32 -> vector<1x128xf32>
    %103 = arith.addf %101, %102 : vector<1x128xf32>
    %c32_i32_56 = arith.constant 32 : i32
    %104 = tpu.dynamic_rotate %103 by %c32_i32_56 dim 1 : vector<1x128xf32>, i32 -> vector<1x128xf32>
    %105 = arith.addf %103, %104 : vector<1x128xf32>
    %c64_i32_57 = arith.constant 64 : i32
    %106 = tpu.dynamic_rotate %105 by %c64_i32_57 dim 1 : vector<1x128xf32>, i32 -> vector<1x128xf32>
    %107 = arith.addf %105, %106 : vector<1x128xf32>
    %cst_58 = arith.constant 0.001953125 : f32
    %108 = vector.broadcast %cst_58 : f32 to vector<1x128xf32>
    %109 = arith.mulf %107, %108 : vector<1x128xf32>
    %cst_59 = arith.constant 9.99999974E-6 : f32
    %110 = vector.broadcast %cst_59 : f32 to vector<1x128xf32>
    %111 = arith.addf %109, %110 : vector<1x128xf32>
    %112 = math.rsqrt %111 : vector<1x128xf32>
    %113 = vector.broadcast %112 : vector<1x128xf32> to vector<36x128xf32>
    %114 = arith.mulf %96, %113 : vector<36x128xf32>
    %c0_60 = arith.constant 0 : index
    %c0_61 = arith.constant 0 : index
    %115 = vector.load %arg11[%c0_60, %c0_61] : memref<1x128xf32, #tpu.memory_space<vmem>>, vector<1x128xf32>
    %116 = vector.broadcast %115 : vector<1x128xf32> to vector<36x128xf32>
    %117 = arith.mulf %114, %116 : vector<36x128xf32>
    %c0_62 = arith.constant 0 : index
    %c0_63 = arith.constant 0 : index
    %118 = vector.load %arg12[%c0_62, %c0_63] : memref<1x128xf32, #tpu.memory_space<vmem>>, vector<1x128xf32>
    %119 = vector.broadcast %118 : vector<1x128xf32> to vector<36x128xf32>
    %120 = arith.addf %117, %119 : vector<36x128xf32>
    %cst_64 = arith.constant 0.000000e+00 : f32
    %121 = vector.broadcast %cst_64 : f32 to vector<36x128xf32>
    %122 = arith.maximumf %120, %121 : vector<36x128xf32>
    %123 = vector.broadcast %0 : vector<36x1xf32> to vector<36x128xf32>
    %124 = arith.mulf %122, %123 : vector<36x128xf32>
    %125 = arith.addf %10, %124 : vector<36x128xf32>
    %126 = arith.truncf %125 : vector<36x128xf32> to vector<36x128xbf16>
    %c2_65 = arith.constant 2 : index
    %c0_66 = arith.constant 0 : index
    %127 = vector.load %arg28[%c2_65, %c0_66] : memref<40x128xbf16, #tpu.memory_space<vmem>>, vector<36x128xbf16>
    tpu.vector_store %arg28[%c2_65, %c0_66], %126 {strides = array<i32>} : memref<40x128xbf16, #tpu.memory_space<vmem>>, vector<36x128xbf16>,
    %c1_67 = arith.constant 1 : index
    %c0_68 = arith.constant 0 : index
    %128 = vector.load %arg28[%c1_67, %c0_68] : memref<40x128xbf16, #tpu.memory_space<vmem>>, vector<36x128xbf16>
    %c2_69 = arith.constant 2 : index
    %c0_70 = arith.constant 0 : index
    %129 = vector.load %arg28[%c2_69, %c0_70] : memref<40x128xbf16, #tpu.memory_space<vmem>>, vector<36x128xbf16>
    %c3_71 = arith.constant 3 : index
    %c0_72 = arith.constant 0 : index
    %130 = vector.load %arg28[%c3_71, %c0_72] : memref<40x128xbf16, #tpu.memory_space<vmem>>, vector<36x128xbf16>
    %131 = tpu.concatenate %128, %129, %130 in 1 : vector<36x128xbf16>, vector<36x128xbf16>, vector<36x128xbf16> -> vector<36x384xbf16>
    %c0_73 = arith.constant 0 : index
    %c0_74 = arith.constant 0 : index
    %132 = vector.load %arg13[%c0_73, %c0_74] : memref<384x128xbf16, #tpu.memory_space<vmem>>, vector<384x128xbf16>
    %cst_75 = arith.constant dense<0.000000e+00> : vector<36x128xf32>
    %133 = tpu.matmul %131, %132, %cst_75 {dimension_numbers = #tpu.dot_dimension_numbers<[1], [0], [0], [1], [0, 0, 1, 1], [], []>} : vector<36x384xbf16>, vector<384x128xbf16>, vector<36x128xf32> -> vector<36x128xf32>
    %c0_76 = arith.constant 0 : index
    %c0_77 = arith.constant 0 : index
    %134 = vector.load %arg14[%c0_76, %c0_77] : memref<1x128xf32, #tpu.memory_space<vmem>>, vector<1x128xf32>
    %135 = vector.broadcast %134 : vector<1x128xf32> to vector<36x128xf32>
    %136 = arith.addf %133, %135 : vector<36x128xf32>
    %137 = vector.broadcast %0 : vector<36x1xf32> to vector<36x128xf32>
    %138 = arith.mulf %136, %137 : vector<36x128xf32>
    %cst_78 = arith.constant dense<0.000000e+00> : vector<128xf32>
    %139 = vector.multi_reduction <add>, %138, %cst_78 [0] : vector<36x128xf32> to vector<128xf32>
    %140 = vector.shape_cast %139 : vector<128xf32> to vector<1x128xf32>
    %c8_i32_79 = arith.constant 8 : i32
    %141 = tpu.dynamic_rotate %140 by %c8_i32_79 dim 1 : vector<1x128xf32>, i32 -> vector<1x128xf32>
    %142 = arith.addf %140, %141 : vector<1x128xf32>
    %c16_i32_80 = arith.constant 16 : i32
    %143 = tpu.dynamic_rotate %142 by %c16_i32_80 dim 1 : vector<1x128xf32>, i32 -> vector<1x128xf32>
    %144 = arith.addf %142, %143 : vector<1x128xf32>
    %c32_i32_81 = arith.constant 32 : i32
    %145 = tpu.dynamic_rotate %144 by %c32_i32_81 dim 1 : vector<1x128xf32>, i32 -> vector<1x128xf32>
    %146 = arith.addf %144, %145 : vector<1x128xf32>
    %c64_i32_82 = arith.constant 64 : i32
    %147 = tpu.dynamic_rotate %146 by %c64_i32_82 dim 1 : vector<1x128xf32>, i32 -> vector<1x128xf32>
    %148 = arith.addf %146, %147 : vector<1x128xf32>
    %cst_83 = arith.constant 0.001953125 : f32
    %149 = vector.broadcast %cst_83 : f32 to vector<1x128xf32>
    %150 = arith.mulf %148, %149 : vector<1x128xf32>
    %151 = vector.broadcast %150 : vector<1x128xf32> to vector<36x128xf32>
    %152 = arith.subf %138, %151 : vector<36x128xf32>
    %153 = vector.broadcast %0 : vector<36x1xf32> to vector<36x128xf32>
    %154 = arith.mulf %152, %153 : vector<36x128xf32>
    %155 = arith.mulf %154, %154 : vector<36x128xf32>
    %cst_84 = arith.constant dense<0.000000e+00> : vector<128xf32>
    %156 = vector.multi_reduction <add>, %155, %cst_84 [0] : vector<36x128xf32> to vector<128xf32>
    %157 = vector.shape_cast %156 : vector<128xf32> to vector<1x128xf32>
    %c8_i32_85 = arith.constant 8 : i32
    %158 = tpu.dynamic_rotate %157 by %c8_i32_85 dim 1 : vector<1x128xf32>, i32 -> vector<1x128xf32>
    %159 = arith.addf %157, %158 : vector<1x128xf32>
    %c16_i32_86 = arith.constant 16 : i32
    %160 = tpu.dynamic_rotate %159 by %c16_i32_86 dim 1 : vector<1x128xf32>, i32 -> vector<1x128xf32>
    %161 = arith.addf %159, %160 : vector<1x128xf32>
    %c32_i32_87 = arith.constant 32 : i32
    %162 = tpu.dynamic_rotate %161 by %c32_i32_87 dim 1 : vector<1x128xf32>, i32 -> vector<1x128xf32>
    %163 = arith.addf %161, %162 : vector<1x128xf32>
    %c64_i32_88 = arith.constant 64 : i32
    %164 = tpu.dynamic_rotate %163 by %c64_i32_88 dim 1 : vector<1x128xf32>, i32 -> vector<1x128xf32>
    %165 = arith.addf %163, %164 : vector<1x128xf32>
    %cst_89 = arith.constant 0.001953125 : f32
    %166 = vector.broadcast %cst_89 : f32 to vector<1x128xf32>
    %167 = arith.mulf %165, %166 : vector<1x128xf32>
    %cst_90 = arith.constant 9.99999974E-6 : f32
    %168 = vector.broadcast %cst_90 : f32 to vector<1x128xf32>
    %169 = arith.addf %167, %168 : vector<1x128xf32>
    %170 = math.rsqrt %169 : vector<1x128xf32>
    %171 = vector.broadcast %170 : vector<1x128xf32> to vector<36x128xf32>
    %172 = arith.mulf %154, %171 : vector<36x128xf32>
    %c0_91 = arith.constant 0 : index
    %c0_92 = arith.constant 0 : index
    %173 = vector.load %arg15[%c0_91, %c0_92] : memref<1x128xf32, #tpu.memory_space<vmem>>, vector<1x128xf32>
    %174 = vector.broadcast %173 : vector<1x128xf32> to vector<36x128xf32>
    %175 = arith.mulf %172, %174 : vector<36x128xf32>
    %c0_93 = arith.constant 0 : index
    %c0_94 = arith.constant 0 : index
    %176 = vector.load %arg16[%c0_93, %c0_94] : memref<1x128xf32, #tpu.memory_space<vmem>>, vector<1x128xf32>
    %177 = vector.broadcast %176 : vector<1x128xf32> to vector<36x128xf32>
    %178 = arith.addf %175, %177 : vector<36x128xf32>
    %cst_95 = arith.constant 0.000000e+00 : f32
    %179 = vector.broadcast %cst_95 : f32 to vector<36x128xf32>
    %180 = arith.maximumf %178, %179 : vector<36x128xf32>
    %181 = vector.broadcast %0 : vector<36x1xf32> to vector<36x128xf32>
    %182 = arith.mulf %180, %181 : vector<36x128xf32>
    %183 = arith.truncf %182 : vector<36x128xf32> to vector<36x128xbf16>
    %c2_96 = arith.constant 2 : index
    %c0_97 = arith.constant 0 : index
    %184 = vector.load %arg28[%c2_96, %c0_97] : memref<40x128xbf16, #tpu.memory_space<vmem>>, vector<36x128xbf16>
    tpu.vector_store %arg28[%c2_96, %c0_97], %183 {strides = array<i32>} : memref<40x128xbf16, #tpu.memory_space<vmem>>, vector<36x128xbf16>,
    %c1_98 = arith.constant 1 : index
    %c0_99 = arith.constant 0 : index
    %185 = vector.load %arg28[%c1_98, %c0_99] : memref<40x128xbf16, #tpu.memory_space<vmem>>, vector<36x128xbf16>
    %c2_100 = arith.constant 2 : index
    %c0_101 = arith.constant 0 : index
    %186 = vector.load %arg28[%c2_100, %c0_101] : memref<40x128xbf16, #tpu.memory_space<vmem>>, vector<36x128xbf16>
    %c3_102 = arith.constant 3 : index
    %c0_103 = arith.constant 0 : index
    %187 = vector.load %arg28[%c3_102, %c0_103] : memref<40x128xbf16, #tpu.memory_space<vmem>>, vector<36x128xbf16>
    %188 = tpu.concatenate %185, %186, %187 in 1 : vector<36x128xbf16>, vector<36x128xbf16>, vector<36x128xbf16> -> vector<36x384xbf16>
    %c0_104 = arith.constant 0 : index
    %c0_105 = arith.constant 0 : index
    %189 = vector.load %arg17[%c0_104, %c0_105] : memref<384x128xbf16, #tpu.memory_space<vmem>>, vector<384x128xbf16>
    %cst_106 = arith.constant dense<0.000000e+00> : vector<36x128xf32>
    %190 = tpu.matmul %188, %189, %cst_106 {dimension_numbers = #tpu.dot_dimension_numbers<[1], [0], [0], [1], [0, 0, 1, 1], [], []>} : vector<36x384xbf16>, vector<384x128xbf16>, vector<36x128xf32> -> vector<36x128xf32>
    %c0_107 = arith.constant 0 : index
    %c0_108 = arith.constant 0 : index
    %191 = vector.load %arg18[%c0_107, %c0_108] : memref<1x128xf32, #tpu.memory_space<vmem>>, vector<1x128xf32>
    %192 = vector.broadcast %191 : vector<1x128xf32> to vector<36x128xf32>
    %193 = arith.addf %190, %192 : vector<36x128xf32>
    %194 = vector.broadcast %0 : vector<36x1xf32> to vector<36x128xf32>
    %195 = arith.mulf %193, %194 : vector<36x128xf32>
    %cst_109 = arith.constant dense<0.000000e+00> : vector<128xf32>
    %196 = vector.multi_reduction <add>, %195, %cst_109 [0] : vector<36x128xf32> to vector<128xf32>
    %197 = vector.shape_cast %196 : vector<128xf32> to vector<1x128xf32>
    %c8_i32_110 = arith.constant 8 : i32
    %198 = tpu.dynamic_rotate %197 by %c8_i32_110 dim 1 : vector<1x128xf32>, i32 -> vector<1x128xf32>
    %199 = arith.addf %197, %198 : vector<1x128xf32>
    %c16_i32_111 = arith.constant 16 : i32
    %200 = tpu.dynamic_rotate %199 by %c16_i32_111 dim 1 : vector<1x128xf32>, i32 -> vector<1x128xf32>
    %201 = arith.addf %199, %200 : vector<1x128xf32>
    %c32_i32_112 = arith.constant 32 : i32
    %202 = tpu.dynamic_rotate %201 by %c32_i32_112 dim 1 : vector<1x128xf32>, i32 -> vector<1x128xf32>
    %203 = arith.addf %201, %202 : vector<1x128xf32>
    %c64_i32_113 = arith.constant 64 : i32
    %204 = tpu.dynamic_rotate %203 by %c64_i32_113 dim 1 : vector<1x128xf32>, i32 -> vector<1x128xf32>
    %205 = arith.addf %203, %204 : vector<1x128xf32>
    %cst_114 = arith.constant 0.001953125 : f32
    %206 = vector.broadcast %cst_114 : f32 to vector<1x128xf32>
    %207 = arith.mulf %205, %206 : vector<1x128xf32>
    %208 = vector.broadcast %207 : vector<1x128xf32> to vector<36x128xf32>
    %209 = arith.subf %195, %208 : vector<36x128xf32>
    %210 = vector.broadcast %0 : vector<36x1xf32> to vector<36x128xf32>
    %211 = arith.mulf %209, %210 : vector<36x128xf32>
    %212 = arith.mulf %211, %211 : vector<36x128xf32>
    %cst_115 = arith.constant dense<0.000000e+00> : vector<128xf32>
    %213 = vector.multi_reduction <add>, %212, %cst_115 [0] : vector<36x128xf32> to vector<128xf32>
    %214 = vector.shape_cast %213 : vector<128xf32> to vector<1x128xf32>
    %c8_i32_116 = arith.constant 8 : i32
    %215 = tpu.dynamic_rotate %214 by %c8_i32_116 dim 1 : vector<1x128xf32>, i32 -> vector<1x128xf32>
    %216 = arith.addf %214, %215 : vector<1x128xf32>
    %c16_i32_117 = arith.constant 16 : i32
    %217 = tpu.dynamic_rotate %216 by %c16_i32_117 dim 1 : vector<1x128xf32>, i32 -> vector<1x128xf32>
    %218 = arith.addf %216, %217 : vector<1x128xf32>
    %c32_i32_118 = arith.constant 32 : i32
    %219 = tpu.dynamic_rotate %218 by %c32_i32_118 dim 1 : vector<1x128xf32>, i32 -> vector<1x128xf32>
    %220 = arith.addf %218, %219 : vector<1x128xf32>
    %c64_i32_119 = arith.constant 64 : i32
    %221 = tpu.dynamic_rotate %220 by %c64_i32_119 dim 1 : vector<1x128xf32>, i32 -> vector<1x128xf32>
    %222 = arith.addf %220, %221 : vector<1x128xf32>
    %cst_120 = arith.constant 0.001953125 : f32
    %223 = vector.broadcast %cst_120 : f32 to vector<1x128xf32>
    %224 = arith.mulf %222, %223 : vector<1x128xf32>
    %cst_121 = arith.constant 9.99999974E-6 : f32
    %225 = vector.broadcast %cst_121 : f32 to vector<1x128xf32>
    %226 = arith.addf %224, %225 : vector<1x128xf32>
    %227 = math.rsqrt %226 : vector<1x128xf32>
    %228 = vector.broadcast %227 : vector<1x128xf32> to vector<36x128xf32>
    %229 = arith.mulf %211, %228 : vector<36x128xf32>
    %c0_122 = arith.constant 0 : index
    %c0_123 = arith.constant 0 : index
    %230 = vector.load %arg19[%c0_122, %c0_123] : memref<1x128xf32, #tpu.memory_space<vmem>>, vector<1x128xf32>
    %231 = vector.broadcast %230 : vector<1x128xf32> to vector<36x128xf32>
    %232 = arith.mulf %229, %231 : vector<36x128xf32>
    %c0_124 = arith.constant 0 : index
    %c0_125 = arith.constant 0 : index
    %233 = vector.load %arg20[%c0_124, %c0_125] : memref<1x128xf32, #tpu.memory_space<vmem>>, vector<1x128xf32>
    %234 = vector.broadcast %233 : vector<1x128xf32> to vector<36x128xf32>
    %235 = arith.addf %232, %234 : vector<36x128xf32>
    %cst_126 = arith.constant 0.000000e+00 : f32
    %236 = vector.broadcast %cst_126 : f32 to vector<36x128xf32>
    %237 = arith.maximumf %235, %236 : vector<36x128xf32>
    %238 = vector.broadcast %0 : vector<36x1xf32> to vector<36x128xf32>
    %239 = arith.mulf %237, %238 : vector<36x128xf32>
    %240 = arith.addf %125, %239 : vector<36x128xf32>
    %241 = arith.truncf %240 : vector<36x128xf32> to vector<36x128xbf16>
    %c2_127 = arith.constant 2 : index
    %c0_128 = arith.constant 0 : index
    %242 = vector.load %arg28[%c2_127, %c0_128] : memref<40x128xbf16, #tpu.memory_space<vmem>>, vector<36x128xbf16>
    tpu.vector_store %arg28[%c2_127, %c0_128], %241 {strides = array<i32>} : memref<40x128xbf16, #tpu.memory_space<vmem>>, vector<36x128xbf16>,
    %c0_129 = arith.constant 0 : index
    %c0_130 = arith.constant 0 : index
    %243 = vector.load %arg28[%c0_129, %c0_130] : memref<40x128xbf16, #tpu.memory_space<vmem>>, vector<36x128xbf16>
    %c1_131 = arith.constant 1 : index
    %c0_132 = arith.constant 0 : index
    %244 = vector.load %arg28[%c1_131, %c0_132] : memref<40x128xbf16, #tpu.memory_space<vmem>>, vector<36x128xbf16>
    %c2_133 = arith.constant 2 : index
    %c0_134 = arith.constant 0 : index
    %245 = vector.load %arg28[%c2_133, %c0_134] : memref<40x128xbf16, #tpu.memory_space<vmem>>, vector<36x128xbf16>
    %c3_135 = arith.constant 3 : index
    %c0_136 = arith.constant 0 : index
    %246 = vector.load %arg28[%c3_135, %c0_136] : memref<40x128xbf16, #tpu.memory_space<vmem>>, vector<36x128xbf16>
    %c4 = arith.constant 4 : index
    %c0_137 = arith.constant 0 : index
    %247 = vector.load %arg28[%c4, %c0_137] : memref<40x128xbf16, #tpu.memory_space<vmem>>, vector<36x128xbf16>
    %248 = tpu.concatenate %243, %244, %245, %246, %247 in 1 : vector<36x128xbf16>, vector<36x128xbf16>, vector<36x128xbf16>, vector<36x128xbf16>, vector<36x128xbf16> -> vector<36x640xbf16>
    %c0_138 = arith.constant 0 : index
    %c0_139 = arith.constant 0 : index
    %249 = vector.load %arg21[%c0_138, %c0_139] : memref<640x128xbf16, #tpu.memory_space<vmem>>, vector<640x128xbf16>
    %cst_140 = arith.constant dense<0.000000e+00> : vector<36x128xf32>
    %250 = tpu.matmul %248, %249, %cst_140 {dimension_numbers = #tpu.dot_dimension_numbers<[1], [0], [0], [1], [0, 0, 1, 1], [], []>} : vector<36x640xbf16>, vector<640x128xbf16>, vector<36x128xf32> -> vector<36x128xf32>
    %c0_141 = arith.constant 0 : index
    %c0_142 = arith.constant 0 : index
    %251 = vector.load %arg22[%c0_141, %c0_142] : memref<1x128xf32, #tpu.memory_space<vmem>>, vector<1x128xf32>
    %252 = vector.broadcast %251 : vector<1x128xf32> to vector<36x128xf32>
    %253 = arith.addf %250, %252 : vector<36x128xf32>
    %254 = vector.broadcast %0 : vector<36x1xf32> to vector<36x128xf32>
    %255 = arith.mulf %253, %254 : vector<36x128xf32>
    %cst_143 = arith.constant dense<0.000000e+00> : vector<128xf32>
    %256 = vector.multi_reduction <add>, %255, %cst_143 [0] : vector<36x128xf32> to vector<128xf32>
    %257 = vector.shape_cast %256 : vector<128xf32> to vector<1x128xf32>
    %c8_i32_144 = arith.constant 8 : i32
    %258 = tpu.dynamic_rotate %257 by %c8_i32_144 dim 1 : vector<1x128xf32>, i32 -> vector<1x128xf32>
    %259 = arith.addf %257, %258 : vector<1x128xf32>
    %c16_i32_145 = arith.constant 16 : i32
    %260 = tpu.dynamic_rotate %259 by %c16_i32_145 dim 1 : vector<1x128xf32>, i32 -> vector<1x128xf32>
    %261 = arith.addf %259, %260 : vector<1x128xf32>
    %c32_i32_146 = arith.constant 32 : i32
    %262 = tpu.dynamic_rotate %261 by %c32_i32_146 dim 1 : vector<1x128xf32>, i32 -> vector<1x128xf32>
    %263 = arith.addf %261, %262 : vector<1x128xf32>
    %c64_i32_147 = arith.constant 64 : i32
    %264 = tpu.dynamic_rotate %263 by %c64_i32_147 dim 1 : vector<1x128xf32>, i32 -> vector<1x128xf32>
    %265 = arith.addf %263, %264 : vector<1x128xf32>
    %cst_148 = arith.constant 0.001953125 : f32
    %266 = vector.broadcast %cst_148 : f32 to vector<1x128xf32>
    %267 = arith.mulf %265, %266 : vector<1x128xf32>
    %268 = vector.broadcast %267 : vector<1x128xf32> to vector<36x128xf32>
    %269 = arith.subf %255, %268 : vector<36x128xf32>
    %270 = vector.broadcast %0 : vector<36x1xf32> to vector<36x128xf32>
    %271 = arith.mulf %269, %270 : vector<36x128xf32>
    %272 = arith.mulf %271, %271 : vector<36x128xf32>
    %cst_149 = arith.constant dense<0.000000e+00> : vector<128xf32>
    %273 = vector.multi_reduction <add>, %272, %cst_149 [0] : vector<36x128xf32> to vector<128xf32>
    %274 = vector.shape_cast %273 : vector<128xf32> to vector<1x128xf32>
    %c8_i32_150 = arith.constant 8 : i32
    %275 = tpu.dynamic_rotate %274 by %c8_i32_150 dim 1 : vector<1x128xf32>, i32 -> vector<1x128xf32>
    %276 = arith.addf %274, %275 : vector<1x128xf32>
    %c16_i32_151 = arith.constant 16 : i32
    %277 = tpu.dynamic_rotate %276 by %c16_i32_151 dim 1 : vector<1x128xf32>, i32 -> vector<1x128xf32>
    %278 = arith.addf %276, %277 : vector<1x128xf32>
    %c32_i32_152 = arith.constant 32 : i32
    %279 = tpu.dynamic_rotate %278 by %c32_i32_152 dim 1 : vector<1x128xf32>, i32 -> vector<1x128xf32>
    %280 = arith.addf %278, %279 : vector<1x128xf32>
    %c64_i32_153 = arith.constant 64 : i32
    %281 = tpu.dynamic_rotate %280 by %c64_i32_153 dim 1 : vector<1x128xf32>, i32 -> vector<1x128xf32>
    %282 = arith.addf %280, %281 : vector<1x128xf32>
    %cst_154 = arith.constant 0.001953125 : f32
    %283 = vector.broadcast %cst_154 : f32 to vector<1x128xf32>
    %284 = arith.mulf %282, %283 : vector<1x128xf32>
    %cst_155 = arith.constant 9.99999974E-6 : f32
    %285 = vector.broadcast %cst_155 : f32 to vector<1x128xf32>
    %286 = arith.addf %284, %285 : vector<1x128xf32>
    %287 = math.rsqrt %286 : vector<1x128xf32>
    %288 = vector.broadcast %287 : vector<1x128xf32> to vector<36x128xf32>
    %289 = arith.mulf %271, %288 : vector<36x128xf32>
    %c0_156 = arith.constant 0 : index
    %c0_157 = arith.constant 0 : index
    %290 = vector.load %arg23[%c0_156, %c0_157] : memref<1x128xf32, #tpu.memory_space<vmem>>, vector<1x128xf32>
    %291 = vector.broadcast %290 : vector<1x128xf32> to vector<36x128xf32>
    %292 = arith.mulf %289, %291 : vector<36x128xf32>
    %c0_158 = arith.constant 0 : index
    %c0_159 = arith.constant 0 : index
    %293 = vector.load %arg24[%c0_158, %c0_159] : memref<1x128xf32, #tpu.memory_space<vmem>>, vector<1x128xf32>
    %294 = vector.broadcast %293 : vector<1x128xf32> to vector<36x128xf32>
    %295 = arith.addf %292, %294 : vector<36x128xf32>
    %cst_160 = arith.constant 0.000000e+00 : f32
    %296 = vector.broadcast %cst_160 : f32 to vector<36x128xf32>
    %297 = arith.maximumf %295, %296 : vector<36x128xf32>
    %298 = vector.broadcast %0 : vector<36x1xf32> to vector<36x128xf32>
    %299 = arith.mulf %297, %298 : vector<36x128xf32>
    %300 = arith.truncf %299 : vector<36x128xf32> to vector<36x128xbf16>
    %c2_161 = arith.constant 2 : index
    %c0_162 = arith.constant 0 : index
    %301 = vector.load %arg28[%c2_161, %c0_162] : memref<40x128xbf16, #tpu.memory_space<vmem>>, vector<36x128xbf16>
    tpu.vector_store %arg28[%c2_161, %c0_162], %300 {strides = array<i32>} : memref<40x128xbf16, #tpu.memory_space<vmem>>, vector<36x128xbf16>,
    %c1_163 = arith.constant 1 : index
    %c0_164 = arith.constant 0 : index
    %302 = vector.load %arg28[%c1_163, %c0_164] : memref<40x128xbf16, #tpu.memory_space<vmem>>, vector<36x128xbf16>
    %c2_165 = arith.constant 2 : index
    %c0_166 = arith.constant 0 : index
    %303 = vector.load %arg28[%c2_165, %c0_166] : memref<40x128xbf16, #tpu.memory_space<vmem>>, vector<36x128xbf16>
    %c3_167 = arith.constant 3 : index
    %c0_168 = arith.constant 0 : index
    %304 = vector.load %arg28[%c3_167, %c0_168] : memref<40x128xbf16, #tpu.memory_space<vmem>>, vector<36x128xbf16>
    %305 = tpu.concatenate %302, %303, %304 in 1 : vector<36x128xbf16>, vector<36x128xbf16>, vector<36x128xbf16> -> vector<36x384xbf16>
    %c0_169 = arith.constant 0 : index
    %c0_170 = arith.constant 0 : index
    %306 = vector.load %arg25[%c0_169, %c0_170] : memref<384x128xbf16, #tpu.memory_space<vmem>>, vector<384x128xbf16>
    %cst_171 = arith.constant dense<0.000000e+00> : vector<36x128xf32>
    %307 = tpu.matmul %305, %306, %cst_171 {dimension_numbers = #tpu.dot_dimension_numbers<[1], [0], [0], [1], [0, 0, 1, 1], [], []>} : vector<36x384xbf16>, vector<384x128xbf16>, vector<36x128xf32> -> vector<36x128xf32>
    %c0_172 = arith.constant 0 : index
    %c0_173 = arith.constant 0 : index
    %308 = vector.load %arg26[%c0_172, %c0_173] : memref<1x128xf32, #tpu.memory_space<vmem>>, vector<1x128xf32>
    %309 = vector.broadcast %308 : vector<1x128xf32> to vector<36x128xf32>
    %310 = arith.addf %307, %309 : vector<36x128xf32>
    %311 = vector.broadcast %0 : vector<36x1xf32> to vector<36x128xf32>
    %312 = arith.mulf %310, %311 : vector<36x128xf32>
    %c0_174 = arith.constant 0 : index
    %c0_175 = arith.constant 0 : index
    %313 = vector.load %arg27[%c0_174, %c0_175] : memref<36x128xf32, #tpu.memory_space<vmem>>, vector<36x128xf32>
    tpu.vector_store %arg27[%c0_174, %c0_175], %312 {strides = array<i32>} : memref<36x128xf32, #tpu.memory_space<vmem>>, vector<36x128xf32>,
    return
  }
  func.func @transform_0(%arg0: i32) -> (i32, i32) {
    %c0_i32 = arith.constant 0 : i32
    %c0_i32_0 = arith.constant 0 : i32
    %c0_i32_1 = arith.constant 0 : i32
    return %c0_i32, %c0_i32_0 : i32, i32
  }
  func.func @transform_1(%arg0: i32) -> (i32, i32) {
    %c0_i32 = arith.constant 0 : i32
    %c0_i32_0 = arith.constant 0 : i32
    %c0_i32_1 = arith.constant 0 : i32
    return %c0_i32, %c0_i32_0 : i32, i32
  }
  func.func @transform_2(%arg0: i32) -> (i32, i32) {
    %c0_i32 = arith.constant 0 : i32
    %c0_i32_0 = arith.constant 0 : i32
    %c0_i32_1 = arith.constant 0 : i32
    return %c0_i32, %c0_i32_0 : i32, i32
  }
  func.func @transform_3(%arg0: i32) -> (i32, i32) {
    %c0_i32 = arith.constant 0 : i32
    %c0_i32_0 = arith.constant 0 : i32
    %c0_i32_1 = arith.constant 0 : i32
    return %c0_i32, %c0_i32_0 : i32, i32
  }
  func.func @transform_4(%arg0: i32) -> (i32, i32) {
    %c0_i32 = arith.constant 0 : i32
    %c0_i32_0 = arith.constant 0 : i32
    %c0_i32_1 = arith.constant 0 : i32
    return %c0_i32, %c0_i32_0 : i32, i32
  }
  func.func @transform_5(%arg0: i32) -> (i32, i32) {
    %c0_i32 = arith.constant 0 : i32
    %c0_i32_0 = arith.constant 0 : i32
    %c0_i32_1 = arith.constant 0 : i32
    return %c0_i32, %c0_i32_0 : i32, i32
  }
  func.func @transform_6(%arg0: i32) -> (i32, i32) {
    %c0_i32 = arith.constant 0 : i32
    %c0_i32_0 = arith.constant 0 : i32
    %c0_i32_1 = arith.constant 0 : i32
    return %c0_i32, %c0_i32_0 : i32, i32
  }
  func.func @transform_7(%arg0: i32) -> (i32, i32) {
    %c0_i32 = arith.constant 0 : i32
    %c0_i32_0 = arith.constant 0 : i32
    %c0_i32_1 = arith.constant 0 : i32
    return %c0_i32, %c0_i32_0 : i32, i32
  }
  func.func @transform_8(%arg0: i32) -> (i32, i32) {
    %c0_i32 = arith.constant 0 : i32
    %c0_i32_0 = arith.constant 0 : i32
    %c0_i32_1 = arith.constant 0 : i32
    return %c0_i32, %c0_i32_0 : i32, i32
  }
  func.func @transform_9(%arg0: i32) -> (i32, i32) {
    %c0_i32 = arith.constant 0 : i32
    %c0_i32_0 = arith.constant 0 : i32
    %c0_i32_1 = arith.constant 0 : i32
    return %c0_i32, %c0_i32_0 : i32, i32
  }
  func.func @transform_10(%arg0: i32) -> (i32, i32) {
    %c0_i32 = arith.constant 0 : i32
    %c0_i32_0 = arith.constant 0 : i32
    %c0_i32_1 = arith.constant 0 : i32
    return %c0_i32, %c0_i32_0 : i32, i32
  }
  func.func @transform_11(%arg0: i32) -> (i32, i32) {
    %c0_i32 = arith.constant 0 : i32
    %c0_i32_0 = arith.constant 0 : i32
    %c0_i32_1 = arith.constant 0 : i32
    return %c0_i32, %c0_i32_0 : i32, i32
  }
  func.func @transform_12(%arg0: i32) -> (i32, i32) {
    %c0_i32 = arith.constant 0 : i32
    %c0_i32_0 = arith.constant 0 : i32
    %c0_i32_1 = arith.constant 0 : i32
    return %c0_i32, %c0_i32_0 : i32, i32
  }
  func.func @transform_13(%arg0: i32) -> (i32, i32) {
    %c0_i32 = arith.constant 0 : i32
    %c0_i32_0 = arith.constant 0 : i32
    %c0_i32_1 = arith.constant 0 : i32
    return %c0_i32, %c0_i32_0 : i32, i32
  }
  func.func @transform_14(%arg0: i32) -> (i32, i32) {
    %c0_i32 = arith.constant 0 : i32
    %c0_i32_0 = arith.constant 0 : i32
    %c0_i32_1 = arith.constant 0 : i32
    return %c0_i32, %c0_i32_0 : i32, i32
  }
  func.func @transform_15(%arg0: i32) -> (i32, i32) {
    %c0_i32 = arith.constant 0 : i32
    %c0_i32_0 = arith.constant 0 : i32
    %c0_i32_1 = arith.constant 0 : i32
    return %c0_i32, %c0_i32_0 : i32, i32
  }
  func.func @transform_16(%arg0: i32) -> (i32, i32) {
    %c0_i32 = arith.constant 0 : i32
    %c0_i32_0 = arith.constant 0 : i32
    %c0_i32_1 = arith.constant 0 : i32
    return %c0_i32, %c0_i32_0 : i32, i32
  }
  func.func @transform_17(%arg0: i32) -> (i32, i32) {
    %c0_i32 = arith.constant 0 : i32
    %c0_i32_0 = arith.constant 0 : i32
    %c0_i32_1 = arith.constant 0 : i32
    return %c0_i32, %c0_i32_0 : i32, i32
  }
  func.func @transform_18(%arg0: i32) -> (i32, i32) {
    %c0_i32 = arith.constant 0 : i32
    %c0_i32_0 = arith.constant 0 : i32
    %c0_i32_1 = arith.constant 0 : i32
    return %c0_i32, %c0_i32_0 : i32, i32
  }
  func.func @transform_19(%arg0: i32) -> (i32, i32) {
    %c0_i32 = arith.constant 0 : i32
    %c0_i32_0 = arith.constant 0 : i32
    %c0_i32_1 = arith.constant 0 : i32
    return %c0_i32, %c0_i32_0 : i32, i32
  }
  func.func @transform_20(%arg0: i32) -> (i32, i32) {
    %c0_i32 = arith.constant 0 : i32
    %c0_i32_0 = arith.constant 0 : i32
    %c0_i32_1 = arith.constant 0 : i32
    return %c0_i32, %c0_i32_0 : i32, i32
  }
  func.func @transform_21(%arg0: i32) -> (i32, i32) {
    %c0_i32 = arith.constant 0 : i32
    %c0_i32_0 = arith.constant 0 : i32
    %c0_i32_1 = arith.constant 0 : i32
    return %c0_i32, %c0_i32_0 : i32, i32
  }
  func.func @transform_22(%arg0: i32) -> (i32, i32) {
    %c0_i32 = arith.constant 0 : i32
    %c0_i32_0 = arith.constant 0 : i32
    %c0_i32_1 = arith.constant 0 : i32
    return %c0_i32, %c0_i32_0 : i32, i32
  }
  func.func @transform_23(%arg0: i32) -> (i32, i32) {
    %c0_i32 = arith.constant 0 : i32
    %c0_i32_0 = arith.constant 0 : i32
    %c0_i32_1 = arith.constant 0 : i32
    return %c0_i32, %c0_i32_0 : i32, i32
  }
  func.func @transform_24(%arg0: i32) -> (i32, i32) {
    %c0_i32 = arith.constant 0 : i32
    %c0_i32_0 = arith.constant 0 : i32
    %c0_i32_1 = arith.constant 0 : i32
    return %c0_i32, %c0_i32_0 : i32, i32
  }
  func.func @transform_25(%arg0: i32) -> (i32, i32) {
    %c0_i32 = arith.constant 0 : i32
    %c0_i32_0 = arith.constant 0 : i32
    %c0_i32_1 = arith.constant 0 : i32
    return %c0_i32, %c0_i32_0 : i32, i32
  }
  func.func @transform_26(%arg0: i32) -> (i32, i32) {
    %c0_i32 = arith.constant 0 : i32
    %c0_i32_0 = arith.constant 0 : i32
    %c0_i32_1 = arith.constant 0 : i32
    return %c0_i32, %c0_i32_0 : i32, i32
  }
}

</mosaic_0001>

<llo_original>
// kernel: tpu_custom_call.1
$region0: #{tpu_custom_call.1}
  #allocation0 [shape = 'u32[]', space=smem, size = 0x4, offset = 0x4, fixed_abs, tag = 'smem constant byte address 0x4 - core index']
  #allocation1 [shape = 'u32[144,128]{1,0:T(1,128)}', space=vmem, size = 0x12000, scoped, tag = 'internal scratch']
  #allocation2 [shape = 'bf16[40,128]{1,0:T(8,128)(2,1)}', space=vmem, size = 0x2800, scoped, tag = 'scratch operand']
  %s0 = inlined_call_operand.hbm [shape: bf16[36,64], index: 0, kind: input, shape index: {}]
  %s1 = inlined_call_operand.vmem [shape: f32[36,1], index: 1, kind: input, shape index: {}]
  %s2 = inlined_call_operand.vmem [shape: bf16[64,128], index: 2, kind: input, shape index: {}]
  %s3 = inlined_call_operand.vmem [shape: f32[1,128], index: 3, kind: input, shape index: {}]
  %s4 = inlined_call_operand.hbm [shape: bf16[384,128], index: 4, kind: input, shape index: {}]
  %s5 = inlined_call_operand.vmem [shape: f32[1,128], index: 5, kind: input, shape index: {}]
  %s6 = inlined_call_operand.vmem [shape: f32[1,128], index: 6, kind: input, shape index: {}]
  %s7 = inlined_call_operand.vmem [shape: f32[1,128], index: 7, kind: input, shape index: {}]
  %s8 = inlined_call_operand.hbm [shape: bf16[384,128], index: 8, kind: input, shape index: {}]
  %s9 = inlined_call_operand.vmem [shape: f32[1,128], index: 9, kind: input, shape index: {}]
  %s10 = inlined_call_operand.vmem [shape: f32[1,128], index: 10, kind: input, shape index: {}]
  %s11 = inlined_call_operand.vmem [shape: f32[1,128], index: 11, kind: input, shape index: {}]
  %s12 = inlined_call_operand.hbm [shape: bf16[384,128], index: 12, kind: input, shape index: {}]
  %s13 = inlined_call_operand.vmem [shape: f32[1,128], index: 13, kind: input, shape index: {}]
  %s14 = inlined_call_operand.vmem [shape: f32[1,128], index: 14, kind: input, shape index: {}]
  %s15 = inlined_call_operand.vmem [shape: f32[1,128], index: 15, kind: input, shape index: {}]
  %s16 = inlined_call_operand.hbm [shape: bf16[384,128], index: 16, kind: input, shape index: {}]
  %s17 = inlined_call_operand.vmem [shape: f32[1,128], index: 17, kind: input, shape index: {}]
  %s18 = inlined_call_operand.vmem [shape: f32[1,128], index: 18, kind: input, shape index: {}]
  %s19 = inlined_call_operand.vmem [shape: f32[1,128], index: 19, kind: input, shape index: {}]
  %s20 = inlined_call_operand.hbm [shape: bf16[640,128], index: 20, kind: input, shape index: {}]
  %s21 = inlined_call_operand.vmem [shape: f32[1,128], index: 21, kind: input, shape index: {}]
  %s22 = inlined_call_operand.vmem [shape: f32[1,128], index: 22, kind: input, shape index: {}]
  %s23 = inlined_call_operand.vmem [shape: f32[1,128], index: 23, kind: input, shape index: {}]
  %s24 = inlined_call_operand.hbm [shape: bf16[384,128], index: 24, kind: input, shape index: {}]
  %s25 = inlined_call_operand.vmem [shape: f32[1,128], index: 25, kind: input, shape index: {}]
  %s26 = inlined_call_operand.hbm [shape: f32[36,128], index: 26, kind: output, shape index: {}]
  %s27 = sld [smem:[#allocation0]]
  $region142: #{tpu_custom_call.1} parent=0
    _
  %s29 = ssub.s32 1, %s27
  %s30 = scalar_select 0, %s29, %s27
  $region1: #{tpu_custom_call.1} parent=0
    #allocation3 [shape = 'u8[10240]{0}', space=vmem, size = 0x2800, scoped, tag = 'input window, operand 0, single buffered']
    #allocation4 [shape = 's32[1]{0}', space=sflag, size = 0x4, scoped, tag = 'scoped memory for tpu_custom_call.1']
    #allocation5 [shape = 's32[1]{0}', space=sflag, size = 0x4, scoped, tag = 'scoped memory for tpu_custom_call.1']
    #allocation6 [shape = 'u8[98304]{0}', space=vmem, size = 0x18000, scoped, tag = 'input window, operand 4, single buffered']
    #allocation7 [shape = 's32[1]{0}', space=sflag, size = 0x4, scoped, tag = 'scoped memory for tpu_custom_call.1']
    #allocation8 [shape = 'u8[98304]{0}', space=vmem, size = 0x18000, scoped, tag = 'input window, operand 8, single buffered']
    #allocation9 [shape = 'u8[98304]{0}', space=vmem, size = 0x18000, scoped, tag = 'input window, operand 12, single buffered']
    #allocation10 [shape = 's32[1]{0}', space=sflag, size = 0x4, scoped, tag = 'scoped memory for tpu_custom_call.1']
    #allocation11 [shape = 'u8[98304]{0}', space=vmem, size = 0x18000, scoped, tag = 'input window, operand 16, single buffered']
    #allocation12 [shape = 'u8[163840]{0}', space=vmem, size = 0x28000, scoped, tag = 'input window, operand 20, single buffered']
    #allocation13 [shape = 's32[1]{0}', space=sflag, size = 0x4, scoped, tag = 'scoped memory for tpu_custom_call.1']
    #allocation14 [shape = 'u8[98304]{0}', space=vmem, size = 0x18000, scoped, tag = 'input window, operand 24, single buffered']
    #allocation15 [shape = 'u8[20480]{0}', space=vmem, size = 0x5000, scoped, tag = 'output window, operand 0, single buffered']
    %31 = vsyncpa [#allocation4], 0
    %32 = vsyncpa [#allocation7], 0
    %33 = vsyncpa [#allocation10], 0
    %34 = vsyncpa [#allocation13], 0
    %35 = vsyncpa [#allocation5], 0
    // Predicated region
    $region2: #{tpu_custom_call.1} parent=1 // pred_check
      _
    $region3: #{tpu_custom_call.1} parent=1 // pred_check_branch
      %37 = sbr.rel (0) target = $region5
    $region4: #{tpu_custom_call.1} parent=1 // pred_region
      %s39 = ssub.s32 320, 320
      %40 = vsyncadd [#allocation4], %s39
      %s41 = sshll.u32 [#allocation3], 4
      %s42 = int_to_ptr.vmem [resolvable:$true] %s41
      %47 = dma.hbm_to_vmem [thread:$0]  %s0, 320, %s42, [#allocation4], 64, 64, 4
    $region5: #{tpu_custom_call.1} parent=1 // pred_fallthru
      _
    // Predicated region
    $region6: #{tpu_custom_call.1} parent=1 // pred_check
      _
    $region7: #{tpu_custom_call.1} parent=1 // pred_check_branch
      %49 = sbr.rel (0) target = $region9
    $region8: #{tpu_custom_call.1} parent=1 // pred_region
      _
    $region9: #{tpu_custom_call.1} parent=1 // pred_fallthru
      _
    // Predicated region
    $region10: #{tpu_custom_call.1} parent=1 // pred_check
      _
    $region11: #{tpu_custom_call.1} parent=1 // pred_check_branch
      %51 = sbr.rel (0) target = $region13
    $region12: #{tpu_custom_call.1} parent=1 // pred_region
      _
    $region13: #{tpu_custom_call.1} parent=1 // pred_fallthru
      _
    // Predicated region
    $region14: #{tpu_custom_call.1} parent=1 // pred_check
      _
    $region15: #{tpu_custom_call.1} parent=1 // pred_check_branch
      %53 = sbr.rel (0) target = $region17
    $region16: #{tpu_custom_call.1} parent=1 // pred_region
      _
    $region17: #{tpu_custom_call.1} parent=1 // pred_fallthru
      _
    // Predicated region
    $region18: #{tpu_custom_call.1} parent=1 // pred_check
      _
    $region19: #{tpu_custom_call.1} parent=1 // pred_check_branch
      %55 = sbr.rel (0) target = $region21
    $region20: #{tpu_custom_call.1} parent=1 // pred_region
      %s57 = ssub.s32 3072, 3072
      %58 = vsyncadd [#allocation7], %s57
      %s59 = sshll.u32 [#allocation6], 4
      %s60 = int_to_ptr.vmem [resolvable:$true] %s59
      %65 = dma.hbm_to_vmem [thread:$0]  %s4, 3072, %s60, [#allocation7], 64, 64, 4
    $region21: #{tpu_custom_call.1} parent=1 // pred_fallthru
      _
    // Predicated region
    $region22: #{tpu_custom_call.1} parent=1 // pred_check
      _
    $region23: #{tpu_custom_call.1} parent=1 // pred_check_branch
      %67 = sbr.rel (0) target = $region25
    $region24: #{tpu_custom_call.1} parent=1 // pred_region
      _
    $region25: #{tpu_custom_call.1} parent=1 // pred_fallthru
      _
    // Predicated region
    $region26: #{tpu_custom_call.1} parent=1 // pred_check
      _
    $region27: #{tpu_custom_call.1} parent=1 // pred_check_branch
      %69 = sbr.rel (0) target = $region29
    $region28: #{tpu_custom_call.1} parent=1 // pred_region
      _
    $region29: #{tpu_custom_call.1} parent=1 // pred_fallthru
      _
    // Predicated region
    $region30: #{tpu_custom_call.1} parent=1 // pred_check
      _
    $region31: #{tpu_custom_call.1} parent=1 // pred_check_branch
      %71 = sbr.rel (0) target = $region33
    $region32: #{tpu_custom_call.1} parent=1 // pred_region
      _
    $region33: #{tpu_custom_call.1} parent=1 // pred_fallthru
      _
    // Predicated region
    $region34: #{tpu_custom_call.1} parent=1 // pred_check
      _
    $region35: #{tpu_custom_call.1} parent=1 // pred_check_branch
      %73 = sbr.rel (0) target = $region37
    $region36: #{tpu_custom_call.1} parent=1 // pred_region
      %s75 = ssub.s32 3072, 3072
      %76 = vsyncadd [#allocation7], %s75
      %s77 = sshll.u32 [#allocation8], 4
      %s78 = int_to_ptr.vmem [resolvable:$true] %s77
      %83 = dma.hbm_to_vmem [thread:$0]  %s8, 3072, %s78, [#allocation7], 64, 64, 4
    $region37: #{tpu_custom_call.1} parent=1 // pred_fallthru
      _
    // Predicated region
    $region38: #{tpu_custom_call.1} parent=1 // pred_check
      _
    $region39: #{tpu_custom_call.1} parent=1 // pred_check_branch
      %85 = sbr.rel (0) target = $region41
    $region40: #{tpu_custom_call.1} parent=1 // pred_region
      _
    $region41: #{tpu_custom_call.1} parent=1 // pred_fallthru
      _
    // Predicated region
    $region42: #{tpu_custom_call.1} parent=1 // pred_check
      _
    $region43: #{tpu_custom_call.1} parent=1 // pred_check_branch
      %87 = sbr.rel (0) target = $region45
    $region44: #{tpu_custom_call.1} parent=1 // pred_region
      _
    $region45: #{tpu_custom_call.1} parent=1 // pred_fallthru
      _
    // Predicated region
    $region46: #{tpu_custom_call.1} parent=1 // pred_check
      _
    $region47: #{tpu_custom_call.1} parent=1 // pred_check_branch
      %89 = sbr.rel (0) target = $region49
    $region48: #{tpu_custom_call.1} parent=1 // pred_region
      _
    $region49: #{tpu_custom_call.1} parent=1 // pred_fallthru
      _
    // Predicated region
    $region50: #{tpu_custom_call.1} parent=1 // pred_check
      _
    $region51: #{tpu_custom_call.1} parent=1 // pred_check_branch
      %91 = sbr.rel (0) target = $region53
    $region52: #{tpu_custom_call.1} parent=1 // pred_region
      %s93 = ssub.s32 3072, 3072
      %94 = vsyncadd [#allocation10], %s93
      %s95 = sshll.u32 [#allocation9], 4
      %s96 = int_to_ptr.vmem [resolvable:$true] %s95
      %101 = dma.hbm_to_vmem [thread:$0]  %s12, 3072, %s96, [#allocation10], 64, 64, 4
    $region53: #{tpu_custom_call.1} parent=1 // pred_fallthru
      _
    // Predicated region
    $region54: #{tpu_custom_call.1} parent=1 // pred_check
      _
    $region55: #{tpu_custom_call.1} parent=1 // pred_check_branch
      %103 = sbr.rel (0) target = $region57
    $region56: #{tpu_custom_call.1} parent=1 // pred_region
      _
    $region57: #{tpu_custom_call.1} parent=1 // pred_fallthru
      _
    // Predicated region
    $region58: #{tpu_custom_call.1} parent=1 // pred_check
      _
    $region59: #{tpu_custom_call.1} parent=1 // pred_check_branch
      %105 = sbr.rel (0) target = $region61
    $region60: #{tpu_custom_call.1} parent=1 // pred_region
      _
    $region61: #{tpu_custom_call.1} parent=1 // pred_fallthru
      _
    // Predicated region
    $region62: #{tpu_custom_call.1} parent=1 // pred_check
      _
    $region63: #{tpu_custom_call.1} parent=1 // pred_check_branch
      %107 = sbr.rel (0) target = $region65
    $region64: #{tpu_custom_call.1} parent=1 // pred_region
      _
    $region65: #{tpu_custom_call.1} parent=1 // pred_fallthru
      _
    // Predicated region
    $region66: #{tpu_custom_call.1} parent=1 // pred_check
      _
    $region67: #{tpu_custom_call.1} parent=1 // pred_check_branch
      %109 = sbr.rel (0) target = $region69
    $region68: #{tpu_custom_call.1} parent=1 // pred_region
      %s111 = ssub.s32 3072, 3072
      %112 = vsyncadd [#allocation10], %s111
      %s113 = sshll.u32 [#allocation11], 4
      %s114 = int_to_ptr.vmem [resolvable:$true] %s113
      %119 = dma.hbm_to_vmem [thread:$0]  %s16, 3072, %s114, [#allocation10], 64, 64, 4
    $region69: #{tpu_custom_call.1} parent=1 // pred_fallthru
      _
    // Predicated region
    $region70: #{tpu_custom_call.1} parent=1 // pred_check
      _
    $region71: #{tpu_custom_call.1} parent=1 // pred_check_branch
      %121 = sbr.rel (0) target = $region73
    $region72: #{tpu_custom_call.1} parent=1 // pred_region
      _
    $region73: #{tpu_custom_call.1} parent=1 // pred_fallthru
      _
    // Predicated region
    $region74: #{tpu_custom_call.1} parent=1 // pred_check
      _
    $region75: #{tpu_custom_call.1} parent=1 // pred_check_branch
      %123 = sbr.rel (0) target = $region77
    $region76: #{tpu_custom_call.1} parent=1 // pred_region
      _
    $region77: #{tpu_custom_call.1} parent=1 // pred_fallthru
      _
    // Predicated region
    $region78: #{tpu_custom_call.1} parent=1 // pred_check
      _
    $region79: #{tpu_custom_call.1} parent=1 // pred_check_branch
      %125 = sbr.rel (0) target = $region81
    $region80: #{tpu_custom_call.1} parent=1 // pred_region
      _
    $region81: #{tpu_custom_call.1} parent=1 // pred_fallthru
      _
    // Predicated region
    $region82: #{tpu_custom_call.1} parent=1 // pred_check
      _
    $region83: #{tpu_custom_call.1} parent=1 // pred_check_branch
      %127 = sbr.rel (0) target = $region85
    $region84: #{tpu_custom_call.1} parent=1 // pred_region
      %s129 = ssub.s32 5120, 5120
      %130 = vsyncadd [#allocation13], %s129
      %s131 = sshll.u32 [#allocation12], 4
      %s132 = int_to_ptr.vmem [resolvable:$true] %s131
      %137 = dma.hbm_to_vmem [thread:$0]  %s20, 5120, %s132, [#allocation13], 64, 64, 4
    $region85: #{tpu_custom_call.1} parent=1 // pred_fallthru
      _
    // Predicated region
    $region86: #{tpu_custom_call.1} parent=1 // pred_check
      _
    $region87: #{tpu_custom_call.1} parent=1 // pred_check_branch
      %139 = sbr.rel (0) target = $region89
    $region88: #{tpu_custom_call.1} parent=1 // pred_region
      _
    $region89: #{tpu_custom_call.1} parent=1 // pred_fallthru
      _
    // Predicated region
    $region90: #{tpu_custom_call.1} parent=1 // pred_check
      _
    $region91: #{tpu_custom_call.1} parent=1 // pred_check_branch
      %141 = sbr.rel (0) target = $region93
    $region92: #{tpu_custom_call.1} parent=1 // pred_region
      _
    $region93: #{tpu_custom_call.1} parent=1 // pred_fallthru
      _
    // Predicated region
    $region94: #{tpu_custom_call.1} parent=1 // pred_check
      _
    $region95: #{tpu_custom_call.1} parent=1 // pred_check_branch
      %143 = sbr.rel (0) target = $region97
    $region96: #{tpu_custom_call.1} parent=1 // pred_region
      _
    $region97: #{tpu_custom_call.1} parent=1 // pred_fallthru
      _
    // Predicated region
    $region98: #{tpu_custom_call.1} parent=1 // pred_check
      _
    $region99: #{tpu_custom_call.1} parent=1 // pred_check_branch
      %145 = sbr.rel (0) target = $region101
    $region100: #{tpu_custom_call.1} parent=1 // pred_region
      %s147 = ssub.s32 3072, 3072
      %148 = vsyncadd [#allocation13], %s147
      %s149 = sshll.u32 [#allocation14], 4
      %s150 = int_to_ptr.vmem [resolvable:$true] %s149
      %155 = dma.hbm_to_vmem [thread:$0]  %s24, 3072, %s150, [#allocation13], 64, 64, 4
    $region101: #{tpu_custom_call.1} parent=1 // pred_fallthru
      _
    // Predicated region
    $region102: #{tpu_custom_call.1} parent=1 // pred_check
      _
    $region103: #{tpu_custom_call.1} parent=1 // pred_check_branch
      %157 = sbr.rel (0) target = $region105
    $region104: #{tpu_custom_call.1} parent=1 // pred_region
      _
    $region105: #{tpu_custom_call.1} parent=1 // pred_fallthru
      _
    // Predicated region
    $region106: #{tpu_custom_call.1} parent=1 // pred_check
      _
    $region107: #{tpu_custom_call.1} parent=1 // pred_check_branch
      %159 = sbr.rel (0) target = $region109
    $region108: #{tpu_custom_call.1} parent=1 // pred_region
      %160 = dma.done [#allocation4], 320
    $region109: #{tpu_custom_call.1} parent=1 // pred_fallthru
      _
    // Predicated region
    $region110: #{tpu_custom_call.1} parent=1 // pred_check
      _
    $region111: #{tpu_custom_call.1} parent=1 // pred_check_branch
      %162 = sbr.rel (0) target = $region113
    $region112: #{tpu_custom_call.1} parent=1 // pred_region
      %163 = dma.done [#allocation7], 3072
    $region113: #{tpu_custom_call.1} parent=1 // pred_fallthru
      _
    // Predicated region
    $region114: #{tpu_custom_call.1} parent=1 // pred_check
      _
    $region115: #{tpu_custom_call.1} parent=1 // pred_check_branch
      %165 = sbr.rel (0) target = $region117
    $region116: #{tpu_custom_call.1} parent=1 // pred_region
      %166 = dma.done [#allocation7], 3072
    $region117: #{tpu_custom_call.1} parent=1 // pred_fallthru
      _
    // Predicated region
    $region118: #{tpu_custom_call.1} parent=1 // pred_check
      _
    $region119: #{tpu_custom_call.1} parent=1 // pred_check_branch
      %168 = sbr.rel (0) target = $region121
    $region120: #{tpu_custom_call.1} parent=1 // pred_region
      %169 = dma.done [#allocation10], 3072
    $region121: #{tpu_custom_call.1} parent=1 // pred_fallthru
      _
    // Predicated region
    $region122: #{tpu_custom_call.1} parent=1 // pred_check
      _
    $region123: #{tpu_custom_call.1} parent=1 // pred_check_branch
      %171 = sbr.rel (0) target = $region125
    $region124: #{tpu_custom_call.1} parent=1 // pred_region
      %172 = dma.done [#allocation10], 3072
    $region125: #{tpu_custom_call.1} parent=1 // pred_fallthru
      _
    // Predicated region
    $region126: #{tpu_custom_call.1} parent=1 // pred_check
      _
    $region127: #{tpu_custom_call.1} parent=1 // pred_check_branch
      %174 = sbr.rel (0) target = $region129
    $region128: #{tpu_custom_call.1} parent=1 // pred_region
      %175 = dma.done [#allocation13], 5120
    $region129: #{tpu_custom_call.1} parent=1 // pred_fallthru
      _
    // Predicated region
    $region130: #{tpu_custom_call.1} parent=1 // pred_check
      _
    $region131: #{tpu_custom_call.1} parent=1 // pred_check_branch
      %177 = sbr.rel (0) target = $region133
    $region132: #{tpu_custom_call.1} parent=1 // pred_region
      %178 = dma.done [#allocation13], 3072
    $region133: #{tpu_custom_call.1} parent=1 // pred_fallthru
      _
    %v180 = vld [vmem:[%s1] sm:$0xff]
    %v181 = vld [vmem:[%s1 + $0x8] sm:$0xff]
    %v182 = vld [vmem:[%s1 + $0x10] sm:$0xff]
    %v183 = vld [vmem:[%s1 + $0x18] sm:$0xff]
    %v184 = vld [vmem:[%s1 + $0x20] sm:$0xf]
    %185 = vst [vmem:[#allocation2] sm:$0xf] 0
    %186 = vst [vmem:[#allocation2 + $0x4] sm:$0xf] 0
    %187 = vst [vmem:[#allocation2 + $0x8] sm:$0xf] 0
    %188 = vst [vmem:[#allocation2 + $0xc] sm:$0xf] 0
    %189 = vst [vmem:[#allocation2 + $0x10] sm:$0xf] 0
    %v190 = vld [vmem:[#allocation3] sm:$0xf]
    %v191 = vld [vmem:[#allocation3 + $0x4] sm:$0xf]
    %v192 = vld [vmem:[#allocation3 + $0x8] sm:$0xf]
    %v193 = vld [vmem:[#allocation3 + $0xc] sm:$0xf]
    %v194 = vld [vmem:[#allocation3 + $0x10] sm:$0x3]
    %v195 = vld [vmem:[%s2] sm:$0xf]
    %v196 = vld [vmem:[%s2 + $0x4] sm:$0xf]
    %v197 = vld [vmem:[%s2 + $0x8] sm:$0xf]
    %v198 = vld [vmem:[%s2 + $0xc] sm:$0xf]
    %v199 = vld [vmem:[%s2 + $0x10] sm:$0xf]
    %v200 = vld [vmem:[%s2 + $0x14] sm:$0xf]
    %v201 = vld [vmem:[%s2 + $0x18] sm:$0xf]
    %v202 = vld [vmem:[%s2 + $0x1c] sm:$0xf]
    %v203 = vld [vmem:[%s3] sm:$0x1]
    %v205 = vlaneseq
    %v206 = vshrl.u32 %v205, 7
    %v207 = vsub.s32 0, %v206
    %v208 = vrot.slane %v203, %v207
    %v215 = vunpack.c.l.b16 %v190
    %v216 = vunpack.c.l.b16 %v191
    %v217 = vunpack.c.l.b16 %v192
    %v218 = vunpack.c.l.b16 %v193
    %v219 = vunpack.c.l.b16 %v194
    %v220 = vpack.c.b16 %v216, %v215
    %v221 = vpack.c.b16 %v218, %v217
    %v222 = vpack.c.b16 %v219, %v219
    %v231 = vunpack.c.l.b16 %v195
    %v232 = vunpack.c.l.b16 %v196
    %v233 = vunpack.c.l.b16 %v197
    %v234 = vunpack.c.l.b16 %v198
    %v235 = vunpack.c.l.b16 %v199
    %v236 = vunpack.c.l.b16 %v200
    %v237 = vunpack.c.l.b16 %v201
    %v238 = vunpack.c.l.b16 %v202
    %v239 = vpack.c.b16 %v232, %v231
    %v240 = vpack.c.b16 %v234, %v233
    %v241 = vpack.c.b16 %v236, %v235
    %v242 = vpack.c.b16 %v238, %v237
    %vm247 = vcmask 523264
    %v249 = vsel %vm247, %v220, 0
    %v252 = vsel %vm247, %v221, 0
    %v255 = vsel %vm247, %v222, 0
    %257 = vmatprep.subr.bf16.mxu0 0
    %258 = vmatpush1.bf16.msra.mxu0 %v239
    %259 = vmatprep.subr.bf16.mxu0 0
    %260 = vmatpush1.bf16.msra.mxu0 %v240
    %261 = vmatprep.subr.bf16.mxu0 0
    %262 = vmatpush1.bf16.msra.mxu0 %v241
    %263 = vmatprep.subr.bf16.mxu0 0
    %264 = vmatpush1.bf16.msra.mxu0 %v242
    %265 = vmatprep.subr.bf16.mxu0 0
    %266 = vmatpush1.bf16.msra.mxu0 0
    %267 = vmatprep.subr.bf16.mxu0 0
    %268 = vmatpush1.bf16.msra.mxu0 0
    %269 = vmatprep.subr.bf16.mxu0 0
    %270 = vmatpush1.bf16.msra.mxu0 0
    %271 = vmatprep.subr.bf16.mxu0 0
    %272 = vmatpush1.bf16.msra.mxu0 0
    %273 = vmatprep.subr.bf16.mxu0 0
    %274 = vmatpush1.bf16.msra.mxu0 0
    %275 = vmatprep.subr.bf16.mxu0 0
    %276 = vmatpush1.bf16.msra.mxu0 0
    %277 = vmatprep.subr.bf16.mxu0 0
    %278 = vmatpush1.bf16.msra.mxu0 0
    %279 = vmatprep.subr.bf16.mxu0 0
    %280 = vmatpush1.bf16.msra.mxu0 0
    %281 = vmatprep.subr.bf16.mxu0 0
    %282 = vmatpush1.bf16.msra.mxu0 0
    %283 = vmatprep.subr.bf16.mxu0 0
    %284 = vmatpush1.bf16.msra.mxu0 0
    %285 = vmatprep.subr.bf16.mxu0 0
    %286 = vmatpush1.bf16.msra.mxu0 0
    %287 = vmatprep.subr.bf16.mxu0 0
    %288 = vmatpush1.bf16.msra.mxu0 0
    %289 = vmatprep.mubr.bf16.mxu0 0
    %290 = vmatmul.mubr.bf16.gmra.mrb[0].mxu0 %v249
    %v291 = vpop.f32.mrb[0].mxu0
    %v292 = vadd.f32 %v208, %v291
    %v293 = vpop.f32.mrb[0].mxu0
    %v294 = vpop.f32.mrb[0].mxu0
    %v295 = vadd.f32 %v208, %v294
    %v296 = vpop.f32.mrb[0].mxu0
    %297 = vmatprep.mubr.bf16.mxu0 0
    %298 = vmatmul.mubr.bf16.gmra.mrb[0].mxu0 %v252
    %v299 = vpop.f32.mrb[0].mxu0
    %v300 = vadd.f32 %v208, %v299
    %v301 = vpop.f32.mrb[0].mxu0
    %v302 = vpop.f32.mrb[0].mxu0
    %v303 = vadd.f32 %v208, %v302
    %v304 = vpop.f32.mrb[0].mxu0
    %305 = vmatprep.mubr.bf16.mxu0 0
    %306 = vmatmul.mubr.bf16.gmra.mrb[0].mxu0 %v255
    %v307 = vpop.f32.mrb[0].mxu0
    %v308 = vadd.f32 %v208, %v307
    %v309 = vpop.f32.mrb[0].mxu0
    %v310 = vpop.f32.mrb[0].mxu0
    %v311 = vpop.f32.mrb[0].mxu0
    %312 = vdwg.mxu0
    %314 = vset.pattern.permute.xlu0 0
    %315 = vperm.xlu0 %314, %v180
    %v316 = vpop.permute.xlu0 %315
    %319 = vset.pattern.permute.xlu0 0
    %320 = vperm.xlu0 %319, %v181
    %v321 = vpop.permute.xlu0 %320
    %324 = vset.pattern.permute.xlu0 0
    %325 = vperm.xlu0 %324, %v182
    %v326 = vpop.permute.xlu0 %325
    %329 = vset.pattern.permute.xlu0 0
    %330 = vperm.xlu0 %329, %v183
    %v331 = vpop.permute.xlu0 %330
    %334 = vset.pattern.permute.xlu0 0
    %335 = vperm.xlu0 %334, %v184
    %v336 = vpop.permute.xlu0 %335
    %v338 = vmul.f32 %v292, %v316
    %v339 = vmul.f32 %v295, %v321
    %v340 = vmul.f32 %v300, %v326
    %v341 = vmul.f32 %v303, %v331
    %v342 = vmul.f32 %v308, %v336
    %v343 = vpack.c.bf16 %v339, %v338
    %v344 = vpack.c.bf16 %v341, %v340
    %v345 = vpack.c.bf16 %v342, %v342
    %v349 = vunpack.c.l.b16 %v343
    %v350 = vunpack.c.h.b16 %v343
    %v351 = vunpack.c.l.b16 %v344
    %v352 = vunpack.c.h.b16 %v344
    %v353 = vunpack.c.l.b16 %v345
    %v354 = vpack.c.b16 %v349, %v349
    %v355 = vpack.c.b16 %v350, %v350
    %v356 = vpack.c.b16 %v351, %v351
    %v357 = vpack.c.b16 %v352, %v352
    %v358 = vpack.c.b16 %v353, %v353
    %vm359 = vcmask 1040384
    %vm360 = vcmask 1044484
    %vm361 = vmor %vm359, %vm360
    %v362 = vrot.slane %v354, 7
    %v363 = vrot.slane %v362, 4
    %v364 = vrot.slane %v355, 7
    %v365 = vsel %vm361, %v363, %v364
    %v366 = vrot.slane %v364, 4
    %v367 = vrot.slane %v356, 7
    %v368 = vsel %vm361, %v366, %v367
    %v369 = vrot.slane %v367, 4
    %v370 = vrot.slane %v357, 7
    %v371 = vsel %vm361, %v369, %v370
    %v372 = vrot.slane %v370, 4
    %v373 = vrot.slane %v358, 7
    %v374 = vsel %vm361, %v372, %v373
    %380 = vst [vmem:[#allocation2] sm:$0xe] %v362
    %381 = vst [vmem:[#allocation2 + $0x4] sm:$0xf] %v365
    %382 = vst [vmem:[#allocation2 + $0x8] sm:$0xf] %v368
    %383 = vst [vmem:[#allocation2 + $0xc] sm:$0xf] %v371
    %384 = vst [vmem:[#allocation2 + $0x10] sm:$0x7] %v374
    %v385 = vld [vmem:[#allocation2] sm:$0xf]
    %v386 = vld [vmem:[#allocation2 + $0x4] sm:$0xf]
    %v387 = vld [vmem:[#allocation2 + $0x8] sm:$0xf]
    %v388 = vld [vmem:[#allocation2 + $0xc] sm:$0xf]
    %v389 = vld [vmem:[#allocation2 + $0x10] sm:$0x7]
    %v390 = vld [vmem:[#allocation2] sm:$0xe]
    %v391 = vld [vmem:[#allocation2 + $0x10] sm:$0xf]
    %v397 = vunpack.c.l.b16 %v385
    %v398 = vunpack.c.l.b16 %v386
    %v399 = vunpack.c.l.b16 %v387
    %v400 = vunpack.c.l.b16 %v388
    %v401 = vunpack.c.l.b16 %v389
    %v402 = vpack.c.b16 %v398, %v397
    %v403 = vpack.c.b16 %v400, %v399
    %v404 = vpack.c.b16 %v401, %v401
    %v406 = vunpack.c.l.b16 %v390
    %v407 = vpack.c.b16 %v398, %v406
    %vm408 = vsmask.f32 7424
    %v410 = vshrl.u32 %v407, 16
    %v412 = vshll.u32 %v407, 16
    %v414 = vrot.slane %v412, 1
    %v415 = vor.u32 %v410, %v414
    %v417 = vshll.u32 %v403, 16
    %v419 = vrot.slane %v417, 1
    %v420 = vsel %vm408, %v415, %v419
    %v421 = vshrl.u32 %v403, 16
    %v423 = vor.u32 %v421, %v419
    %v425 = vshll.u32 %v404, 16
    %v427 = vrot.slane %v425, 1
    %v428 = vsel %vm408, %v423, %v427
    %v429 = vshrl.u32 %v404, 16
    %v431 = vor.u32 %v429, %v427
    %v433 = vunpack.c.l.b16 %v391
    %v434 = vpack.c.b16 %v433, %v433
    %vm435 = vcmask 1046528
    %v436 = vrot.slane %v407, 1
    %v437 = vrot.slane %v403, 1
    %v438 = vsel %vm435, %v436, %v437
    %v439 = vrot.slane %v434, 1
    %v440 = vsel %vm435, %v437, %v439
    %v441 = vld [vmem:[#allocation6] sm:$0xf]
    %v442 = vld [vmem:[#allocation6 + $0x4] sm:$0xf]
    %v443 = vld [vmem:[#allocation6 + $0x8] sm:$0xf]
    %v444 = vld [vmem:[#allocation6 + $0xc] sm:$0xf]
    %v445 = vld [vmem:[#allocation6 + $0x10] sm:$0xf]
    %v446 = vld [vmem:[#allocation6 + $0x14] sm:$0xf]
    %v447 = vld [vmem:[#allocation6 + $0x18] sm:$0xf]
    %v448 = vld [vmem:[#allocation6 + $0x1c] sm:$0xf]
    %v449 = vld [vmem:[#allocation6 + $0x20] sm:$0xf]
    %v450 = vld [vmem:[#allocation6 + $0x24] sm:$0xf]
    %v451 = vld [vmem:[#allocation6 + $0x28] sm:$0xf]
    %v452 = vld [vmem:[#allocation6 + $0x2c] sm:$0xf]
    %v453 = vld [vmem:[#allocation6 + $0x30] sm:$0xf]
    %v454 = vld [vmem:[#allocation6 + $0x34] sm:$0xf]
    %v455 = vld [vmem:[#allocation6 + $0x38] sm:$0xf]
    %v456 = vld [vmem:[#allocation6 + $0x3c] sm:$0xf]
    %v457 = vld [vmem:[#allocation6 + $0x40] sm:$0xf]
    %v458 = vld [vmem:[#allocation6 + $0x44] sm:$0xf]
    %v459 = vld [vmem:[#allocation6 + $0x48] sm:$0xf]
    %v460 = vld [vmem:[#allocation6 + $0x4c] sm:$0xf]
    %v461 = vld [vmem:[#allocation6 + $0x50] sm:$0xf]
    %v462 = vld [vmem:[#allocation6 + $0x54] sm:$0xf]
    %v463 = vld [vmem:[#allocation6 + $0x58] sm:$0xf]
    %v464 = vld [vmem:[#allocation6 + $0x5c] sm:$0xf]
    %v465 = vld [vmem:[#allocation6 + $0x60] sm:$0xf]
    %v466 = vld [vmem:[#allocation6 + $0x64] sm:$0xf]
    %v467 = vld [vmem:[#allocation6 + $0x68] sm:$0xf]
    %v468 = vld [vmem:[#allocation6 + $0x6c] sm:$0xf]
    %v469 = vld [vmem:[#allocation6 + $0x70] sm:$0xf]
    %v470 = vld [vmem:[#allocation6 + $0x74] sm:$0xf]
    %v471 = vld [vmem:[#allocation6 + $0x78] sm:$0xf]
    %v472 = vld [vmem:[#allocation6 + $0x7c] sm:$0xf]
    %v473 = vld [vmem:[#allocation6 + $0x80] sm:$0xf]
    %v474 = vld [vmem:[#allocation6 + $0x84] sm:$0xf]
    %v475 = vld [vmem:[#allocation6 + $0x88] sm:$0xf]
    %v476 = vld [vmem:[#allocation6 + $0x8c] sm:$0xf]
    %v477 = vld [vmem:[#allocation6 + $0x90] sm:$0xf]
    %v478 = vld [vmem:[#allocation6 + $0x94] sm:$0xf]
    %v479 = vld [vmem:[#allocation6 + $0x98] sm:$0xf]
    %v480 = vld [vmem:[#allocation6 + $0x9c] sm:$0xf]
    %v481 = vld [vmem:[#allocation6 + $0xa0] sm:$0xf]
    %v482 = vld [vmem:[#allocation6 + $0xa4] sm:$0xf]
    %v483 = vld [vmem:[#allocation6 + $0xa8] sm:$0xf]
    %v484 = vld [vmem:[#allocation6 + $0xac] sm:$0xf]
    %v485 = vld [vmem:[#allocation6 + $0xb0] sm:$0xf]
    %v486 = vld [vmem:[#allocation6 + $0xb4] sm:$0xf]
    %v487 = vld [vmem:[#allocation6 + $0xb8] sm:$0xf]
    %v488 = vld [vmem:[#allocation6 + $0xbc] sm:$0xf]
    %v489 = vld [vmem:[%s5] sm:$0x1]
    %v491 = vlaneseq
    %v492 = vshrl.u32 %v491, 7
    %v493 = vsub.s32 0, %v492
    %v494 = vrot.slane %v489, %v493
    %v497 = vshrl.u32 %v402, 16
    %v499 = vshll.u32 %v402, 16
    %v501 = vrot.slane %v499, 1
    %v502 = vor.u32 %v497, %v501
    %v503 = vsel %vm408, %v502, %v419
    %v505 = vshrl.u32 %v420, 16
    %v507 = vshll.u32 %v420, 16
    %v509 = vrot.slane %v507, 1
    %v510 = vor.u32 %v505, %v509
    %v512 = vshll.u32 %v428, 16
    %v514 = vrot.slane %v512, 1
    %v515 = vsel %vm408, %v510, %v514
    %v517 = vshrl.u32 %v438, 16
    %v519 = vshll.u32 %v438, 16
    %v521 = vrot.slane %v519, 1
    %v522 = vor.u32 %v517, %v521
    %v524 = vshll.u32 %v440, 16
    %v526 = vrot.slane %v524, 1
    %v527 = vsel %vm408, %v522, %v526
    %v528 = vshrl.u32 %v428, 16
    %v530 = vor.u32 %v528, %v514
    %v532 = vshll.u32 %v431, 16
    %v534 = vrot.slane %v532, 1
    %v535 = vsel %vm408, %v530, %v534
    %v536 = vshrl.u32 %v440, 16
    %v538 = vor.u32 %v536, %v526
    %v540 = vshll.u32 %v439, 16
    %v542 = vrot.slane %v540, 1
    %v543 = vsel %vm408, %v538, %v542
    %v544 = vshrl.u32 %v431, 16
    %v546 = vor.u32 %v544, %v534
    %v547 = vshrl.u32 %v439, 16
    %v549 = vor.u32 %v547, %v542
    %v607 = vunpack.c.l.b16 %v441
    %v608 = vunpack.c.l.b16 %v442
    %v609 = vunpack.c.l.b16 %v443
    %v610 = vunpack.c.l.b16 %v444
    %v611 = vunpack.c.l.b16 %v445
    %v612 = vunpack.c.l.b16 %v446
    %v613 = vunpack.c.l.b16 %v447
    %v614 = vunpack.c.l.b16 %v448
    %v615 = vunpack.c.l.b16 %v449
    %v616 = vunpack.c.l.b16 %v450
    %v617 = vunpack.c.l.b16 %v451
    %v618 = vunpack.c.l.b16 %v452
    %v619 = vunpack.c.l.b16 %v453
    %v620 = vunpack.c.l.b16 %v454
    %v621 = vunpack.c.l.b16 %v455
    %v622 = vunpack.c.l.b16 %v456
    %v623 = vunpack.c.l.b16 %v457
    %v624 = vunpack.c.l.b16 %v458
    %v625 = vunpack.c.l.b16 %v459
    %v626 = vunpack.c.l.b16 %v460
    %v627 = vunpack.c.l.b16 %v461
    %v628 = vunpack.c.l.b16 %v462
    %v629 = vunpack.c.l.b16 %v463
    %v630 = vunpack.c.l.b16 %v464
    %v631 = vunpack.c.l.b16 %v465
    %v632 = vunpack.c.l.b16 %v466
    %v633 = vunpack.c.l.b16 %v467
    %v634 = vunpack.c.l.b16 %v468
    %v635 = vunpack.c.l.b16 %v469
    %v636 = vunpack.c.l.b16 %v470
    %v637 = vunpack.c.l.b16 %v471
    %v638 = vunpack.c.l.b16 %v472
    %v639 = vunpack.c.l.b16 %v473
    %v640 = vunpack.c.l.b16 %v474
    %v641 = vunpack.c.l.b16 %v475
    %v642 = vunpack.c.l.b16 %v476
    %v643 = vunpack.c.l.b16 %v477
    %v644 = vunpack.c.l.b16 %v478
    %v645 = vunpack.c.l.b16 %v479
    %v646 = vunpack.c.l.b16 %v480
    %v647 = vunpack.c.l.b16 %v481
    %v648 = vunpack.c.l.b16 %v482
    %v649 = vunpack.c.l.b16 %v483
    %v650 = vunpack.c.l.b16 %v484
    %v651 = vunpack.c.l.b16 %v485
    %v652 = vunpack.c.l.b16 %v486
    %v653 = vunpack.c.l.b16 %v487
    %v654 = vunpack.c.l.b16 %v488
    %v655 = vpack.c.b16 %v608, %v607
    %v656 = vpack.c.b16 %v610, %v609
    %v657 = vpack.c.b16 %v612, %v611
    %v658 = vpack.c.b16 %v614, %v613
    %v659 = vpack.c.b16 %v616, %v615
    %v660 = vpack.c.b16 %v618, %v617
    %v661 = vpack.c.b16 %v620, %v619
    %v662 = vpack.c.b16 %v622, %v621
    %v663 = vpack.c.b16 %v624, %v623
    %v664 = vpack.c.b16 %v626, %v625
    %v665 = vpack.c.b16 %v628, %v627
    %v666 = vpack.c.b16 %v630, %v629
    %v667 = vpack.c.b16 %v632, %v631
    %v668 = vpack.c.b16 %v634, %v633
    %v669 = vpack.c.b16 %v636, %v635
    %v670 = vpack.c.b16 %v638, %v637
    %v671 = vpack.c.b16 %v640, %v639
    %v672 = vpack.c.b16 %v642, %v641
    %v673 = vpack.c.b16 %v644, %v643
    %v674 = vpack.c.b16 %v646, %v645
    %v675 = vpack.c.b16 %v648, %v647
    %v676 = vpack.c.b16 %v650, %v649
    %v677 = vpack.c.b16 %v652, %v651
    %v678 = vpack.c.b16 %v654, %v653
    %703 = vmatprep.subr.bf16.mxu0 0
    %704 = vmatpush1.bf16.msra.mxu0 %v655
    %705 = vmatprep.subr.bf16.mxu0 0
    %706 = vmatpush1.bf16.msra.mxu0 %v656
    %707 = vmatprep.subr.bf16.mxu0 0
    %708 = vmatpush1.bf16.msra.mxu0 %v657
    %709 = vmatprep.subr.bf16.mxu0 0
    %710 = vmatpush1.bf16.msra.mxu0 %v658
    %711 = vmatprep.subr.bf16.mxu0 0
    %712 = vmatpush1.bf16.msra.mxu0 %v659
    %713 = vmatprep.subr.bf16.mxu0 0
    %714 = vmatpush1.bf16.msra.mxu0 %v660
    %715 = vmatprep.subr.bf16.mxu0 0
    %716 = vmatpush1.bf16.msra.mxu0 %v661
    %717 = vmatprep.subr.bf16.mxu0 0
    %718 = vmatpush1.bf16.msra.mxu0 %v662
    %719 = vmatprep.subr.bf16.mxu0 0
    %720 = vmatpush1.bf16.msra.mxu0 %v663
    %721 = vmatprep.subr.bf16.mxu0 0
    %722 = vmatpush1.bf16.msra.mxu0 %v664
    %723 = vmatprep.subr.bf16.mxu0 0
    %724 = vmatpush1.bf16.msra.mxu0 %v665
    %725 = vmatprep.subr.bf16.mxu0 0
    %726 = vmatpush1.bf16.msra.mxu0 %v666
    %727 = vmatprep.subr.bf16.mxu0 0
    %728 = vmatpush1.bf16.msra.mxu0 %v667
    %729 = vmatprep.subr.bf16.mxu0 0
    %730 = vmatpush1.bf16.msra.mxu0 %v668
    %731 = vmatprep.subr.bf16.mxu0 0
    %732 = vmatpush1.bf16.msra.mxu0 %v669
    %733 = vmatprep.subr.bf16.mxu0 0
    %734 = vmatpush1.bf16.msra.mxu0 %v670
    %735 = vmatprep.mubr.bf16.mxu0 %v515
    %736 = vmatmul.mubr.bf16.gmra.mrb[0].mxu0 %v503
    %v737 = vpop.f32.mrb[0].mxu0
    %v738 = vadd.f32 %v494, %v737
    %v739 = vpop.f32.mrb[0].mxu0
    %v740 = vpop.f32.mrb[0].mxu0
    %v741 = vadd.f32 %v494, %v740
    %v742 = vpop.f32.mrb[0].mxu0
    %743 = vmatprep.mubr.bf16.mxu0 %v535
    %744 = vmatmul.mubr.bf16.gmra.mrb[0].mxu0 %v428
    %v745 = vpop.f32.mrb[0].mxu0
    %v746 = vadd.f32 %v494, %v745
    %v747 = vpop.f32.mrb[0].mxu0
    %v748 = vpop.f32.mrb[0].mxu0
    %v749 = vadd.f32 %v494, %v748
    %v750 = vpop.f32.mrb[0].mxu0
    %751 = vmatprep.mubr.bf16.mxu0 %v546
    %752 = vmatmul.mubr.bf16.gmra.mrb[0].mxu0 %v431
    %v753 = vpop.f32.mrb[0].mxu0
    %v754 = vadd.f32 %v494, %v753
    %v755 = vpop.f32.mrb[0].mxu0
    %v756 = vpop.f32.mrb[0].mxu0
    %v757 = vpop.f32.mrb[0].mxu0
    %758 = vdwg.mxu0
    %759 = vmatprep.subr.bf16.mxu0 0
    %760 = vmatpush1.bf16.msra.mxu0 %v671
    %761 = vmatprep.subr.bf16.mxu0 0
    %762 = vmatpush1.bf16.msra.mxu0 %v672
    %763 = vmatprep.subr.bf16.mxu0 0
    %764 = vmatpush1.bf16.msra.mxu0 %v673
    %765 = vmatprep.subr.bf16.mxu0 0
    %766 = vmatpush1.bf16.msra.mxu0 %v674
    %767 = vmatprep.subr.bf16.mxu0 0
    %768 = vmatpush1.bf16.msra.mxu0 %v675
    %769 = vmatprep.subr.bf16.mxu0 0
    %770 = vmatpush1.bf16.msra.mxu0 %v676
    %771 = vmatprep.subr.bf16.mxu0 0
    %772 = vmatpush1.bf16.msra.mxu0 %v677
    %773 = vmatprep.subr.bf16.mxu0 0
    %774 = vmatpush1.bf16.msra.mxu0 %v678
    %775 = vmatprep.subr.bf16.mxu0 0
    %776 = vmatpush1.bf16.msra.mxu0 0
    %777 = vmatprep.subr.bf16.mxu0 0
    %778 = vmatpush1.bf16.msra.mxu0 0
    %779 = vmatprep.subr.bf16.mxu0 0
    %780 = vmatpush1.bf16.msra.mxu0 0
    %781 = vmatprep.subr.bf16.mxu0 0
    %782 = vmatpush1.bf16.msra.mxu0 0
    %783 = vmatprep.subr.bf16.mxu0 0
    %784 = vmatpush1.bf16.msra.mxu0 0
    %785 = vmatprep.subr.bf16.mxu0 0
    %786 = vmatpush1.bf16.msra.mxu0 0
    %787 = vmatprep.subr.bf16.mxu0 0
    %788 = vmatpush1.bf16.msra.mxu0 0
    %789 = vmatprep.subr.bf16.mxu0 0
    %790 = vmatpush1.bf16.msra.mxu0 0
    %791 = vmatprep.mubr.bf16.mxu0 0
    %792 = vmatmul.mubr.bf16.gmra.mrb[0].mxu0 %v527
    %v793 = vpop.f32.mrb[0].mxu0
    %v794 = vadd.f32 %v738, %v793
    %v795 = vpop.f32.mrb[0].mxu0
    %v796 = vpop.f32.mrb[0].mxu0
    %v797 = vadd.f32 %v741, %v796
    %v798 = vpop.f32.mrb[0].mxu0
    %799 = vmatprep.mubr.bf16.mxu0 0
    %800 = vmatmul.mubr.bf16.gmra.mrb[0].mxu0 %v543
    %v801 = vpop.f32.mrb[0].mxu0
    %v802 = vadd.f32 %v746, %v801
    %v803 = vpop.f32.mrb[0].mxu0
    %v804 = vpop.f32.mrb[0].mxu0
    %v805 = vadd.f32 %v749, %v804
    %v806 = vpop.f32.mrb[0].mxu0
    %807 = vmatprep.mubr.bf16.mxu0 0
    %808 = vmatmul.mubr.bf16.gmra.mrb[0].mxu0 %v549
    %v809 = vpop.f32.mrb[0].mxu0
    %v810 = vadd.f32 %v754, %v809
    %v811 = vpop.f32.mrb[0].mxu0
    %v812 = vpop.f32.mrb[0].mxu0
    %v813 = vpop.f32.mrb[0].mxu0
    %814 = vdwg.mxu0
    %v815 = vmul.f32 %v794, %v316
    %v816 = vmul.f32 %v797, %v321
    %v817 = vmul.f32 %v802, %v326
    %v818 = vmul.f32 %v805, %v331
    %v819 = vmul.f32 %v810, %v336
    %v820 = vadd.f32 %v815, %v816
    %v821 = vadd.f32 %v820, %v817
    %v822 = vadd.f32 %v821, %v818
    %vm823 = vcmask 1043456
    %v824 = vsel %vm823, %v819, 0.0
    %v825 = vadd.f32 %v822, %v824
    %v826 = vrot.slane %v825, 4
    %v827 = vadd.f32 %v825, %v826
    %v828 = vrot.slane %v827, 2
    %v829 = vadd.f32 %v827, %v828
    %v830 = vrot.slane %v829, 1
    %v831 = vadd.f32 %v829, %v830
    %832 = vrot.lane.b32.xlu0 %v831, 8
    %v833 = vpop.permute.xlu0 %832
    %v834 = vadd.f32 %v831, %v833
    %835 = vrot.lane.b32.xlu0 %v834, 16
    %v836 = vpop.permute.xlu0 %835
    %v837 = vadd.f32 %v834, %v836
    %838 = vrot.lane.b32.xlu0 %v837, 32
    %v839 = vpop.permute.xlu0 %838
    %v840 = vadd.f32 %v837, %v839
    %841 = vrot.lane.b32.xlu0 %v840, 64
    %v842 = vpop.permute.xlu0 %841
    %v843 = vadd.f32 %v840, %v842
    %v844 = vmul.f32 %v843, 0.001953125
    %v845 = vlaneseq
    %v846 = vshrl.u32 %v845, 7
    %v847 = vsub.s32 0, %v846
    %v848 = vrot.slane %v844, %v847
    %v849 = vsub.f32 %v815, %v848
    %v850 = vsub.f32 %v816, %v848
    %v851 = vsub.f32 %v817, %v848
    %v852 = vsub.f32 %v818, %v848
    %v853 = vsub.f32 %v819, %v848
    %v854 = vmul.f32 %v849, %v316
    %v855 = vmul.f32 %v850, %v321
    %v856 = vmul.f32 %v851, %v326
    %v857 = vmul.f32 %v852, %v331
    %v858 = vmul.f32 %v853, %v336
    %v859 = vmul.f32 %v854, %v854
    %v860 = vmul.f32 %v855, %v855
    %v861 = vmul.f32 %v856, %v856
    %v862 = vmul.f32 %v857, %v857
    %v863 = vmul.f32 %v858, %v858
    %v864 = vadd.f32 %v859, %v860
    %v865 = vadd.f32 %v864, %v861
    %v866 = vadd.f32 %v865, %v862
    %v867 = vsel %vm823, %v863, 0.0
    %v868 = vadd.f32 %v866, %v867
    %v869 = vrot.slane %v868, 4
    %v870 = vadd.f32 %v868, %v869
    %v871 = vrot.slane %v870, 2
    %v872 = vadd.f32 %v870, %v871
    %v873 = vrot.slane %v872, 1
    %v874 = vadd.f32 %v872, %v873
    %875 = vrot.lane.b32.xlu0 %v874, 8
    %v876 = vpop.permute.xlu0 %875
    %v877 = vadd.f32 %v874, %v876
    %878 = vrot.lane.b32.xlu0 %v877, 16
    %v879 = vpop.permute.xlu0 %878
    %v880 = vadd.f32 %v877, %v879
    %881 = vrot.lane.b32.xlu0 %v880, 32
    %v882 = vpop.permute.xlu0 %881
    %v883 = vadd.f32 %v880, %v882
    %884 = vrot.lane.b32.xlu0 %v883, 64
    %v885 = vpop.permute.xlu0 %884
    %v886 = vadd.f32 %v883, %v885
    %v887 = vmul.f32 %v886, 0.001953125
    %v888 = vadd.f32 %v887, 1e-05
    %v889 = vrsqrt.pop %v888
    %v890 = vlaneseq
    %v891 = vshrl.u32 %v890, 7
    %v892 = vsub.s32 0, %v891
    %v893 = vrot.slane %v889, %v892
    %v894 = vmul.f32 %v854, %v893
    %v895 = vmul.f32 %v855, %v893
    %v896 = vmul.f32 %v856, %v893
    %v897 = vmul.f32 %v857, %v893
    %v898 = vmul.f32 %v858, %v893
    %v899 = vld [vmem:[%s6] sm:$0x1]
    %v901 = vlaneseq
    %v902 = vshrl.u32 %v901, 7
    %v903 = vsub.s32 0, %v902
    %v904 = vrot.slane %v899, %v903
    %v906 = vmul.f32 %v894, %v904
    %v907 = vmul.f32 %v895, %v904
    %v908 = vmul.f32 %v896, %v904
    %v909 = vmul.f32 %v897, %v904
    %v910 = vmul.f32 %v898, %v904
    %v911 = vld [vmem:[%s7] sm:$0x1]
    %v913 = vlaneseq
    %v914 = vshrl.u32 %v913, 7
    %v915 = vsub.s32 0, %v914
    %v916 = vrot.slane %v911, %v915
    %v918 = vadd.f32 %v906, %v916
    %v919 = vadd.f32 %v907, %v916
    %v920 = vadd.f32 %v908, %v916
    %v921 = vadd.f32 %v909, %v916
    %v922 = vadd.f32 %v910, %v916
    %v923 = vmax.f32 %v918, 0.0
    %v924 = vmax.f32 %v919, 0.0
    %v925 = vmax.f32 %v920, 0.0
    %v926 = vmax.f32 %v921, 0.0
    %v927 = vmax.f32 %v922, 0.0
    %v928 = vmul.f32 %v923, %v316
    %v929 = vmul.f32 %v924, %v321
    %v930 = vmul.f32 %v925, %v326
    %v931 = vmul.f32 %v926, %v331
    %v932 = vmul.f32 %v927, %v336
    %v933 = vpack.c.bf16 %v929, %v928
    %v934 = vpack.c.bf16 %v931, %v930
    %v935 = vpack.c.bf16 %v932, %v932
    %v939 = vunpack.c.l.b16 %v933
    %v940 = vunpack.c.h.b16 %v933
    %v941 = vunpack.c.l.b16 %v934
    %v942 = vunpack.c.h.b16 %v934
    %v943 = vunpack.c.l.b16 %v935
    %v944 = vpack.c.b16 %v939, %v939
    %v945 = vpack.c.b16 %v940, %v940
    %v946 = vpack.c.b16 %v941, %v941
    %v947 = vpack.c.b16 %v942, %v942
    %v948 = vpack.c.b16 %v943, %v943
    %v949 = vrot.slane %v944, 7
    %v950 = vrot.slane %v949, 4
    %v951 = vrot.slane %v945, 7
    %v952 = vsel %vm361, %v950, %v951
    %v953 = vrot.slane %v951, 4
    %v954 = vrot.slane %v946, 7
    %v955 = vsel %vm361, %v953, %v954
    %v956 = vrot.slane %v954, 4
    %v957 = vrot.slane %v947, 7
    %v958 = vsel %vm361, %v956, %v957
    %v959 = vrot.slane %v957, 4
    %v960 = vrot.slane %v948, 7
    %v961 = vsel %vm361, %v959, %v960
    %967 = vst [vmem:[#allocation2] sm:$0xe] %v949
    %968 = vst [vmem:[#allocation2 + $0x4] sm:$0xf] %v952
    %969 = vst [vmem:[#allocation2 + $0x8] sm:$0xf] %v955
    %970 = vst [vmem:[#allocation2 + $0xc] sm:$0xf] %v958
    %971 = vst [vmem:[#allocation2 + $0x10] sm:$0x7] %v961
    %v972 = vld [vmem:[#allocation2] sm:$0xf]
    %v973 = vld [vmem:[#allocation2 + $0x4] sm:$0xf]
    %v974 = vld [vmem:[#allocation2 + $0x8] sm:$0xf]
    %v975 = vld [vmem:[#allocation2 + $0xc] sm:$0xf]
    %v976 = vld [vmem:[#allocation2 + $0x10] sm:$0x7]
    %v977 = vld [vmem:[#allocation2] sm:$0xe]
    %v978 = vld [vmem:[#allocation2 + $0x10] sm:$0xf]
    %v984 = vunpack.c.l.b16 %v972
    %v985 = vunpack.c.l.b16 %v973
    %v986 = vunpack.c.l.b16 %v974
    %v987 = vunpack.c.l.b16 %v975
    %v988 = vunpack.c.l.b16 %v976
    %v989 = vpack.c.b16 %v985, %v984
    %v990 = vpack.c.b16 %v987, %v986
    %v991 = vpack.c.b16 %v988, %v988
    %v993 = vunpack.c.l.b16 %v977
    %v994 = vpack.c.b16 %v985, %v993
    %v996 = vshrl.u32 %v994, 16
    %v998 = vshll.u32 %v994, 16
    %v1000 = vrot.slane %v998, 1
    %v1001 = vor.u32 %v996, %v1000
    %v1003 = vshll.u32 %v990, 16
    %v1005 = vrot.slane %v1003, 1
    %v1006 = vsel %vm408, %v1001, %v1005
    %v1007 = vshrl.u32 %v990, 16
    %v1009 = vor.u32 %v1007, %v1005
    %v1011 = vshll.u32 %v991, 16
    %v1013 = vrot.slane %v1011, 1
    %v1014 = vsel %vm408, %v1009, %v1013
    %v1015 = vshrl.u32 %v991, 16
    %v1017 = vor.u32 %v1015, %v1013
    %v1019 = vunpack.c.l.b16 %v978
    %v1020 = vpack.c.b16 %v1019, %v1019
    %v1021 = vrot.slane %v994, 1
    %v1022 = vrot.slane %v990, 1
    %v1023 = vsel %vm435, %v1021, %v1022
    %v1024 = vrot.slane %v1020, 1
    %v1025 = vsel %vm435, %v1022, %v1024
    %v1026 = vld [vmem:[#allocation8] sm:$0xf]
    %v1027 = vld [vmem:[#allocation8 + $0x4] sm:$0xf]
    %v1028 = vld [vmem:[#allocation8 + $0x8] sm:$0xf]
    %v1029 = vld [vmem:[#allocation8 + $0xc] sm:$0xf]
    %v1030 = vld [vmem:[#allocation8 + $0x10] sm:$0xf]
    %v1031 = vld [vmem:[#allocation8 + $0x14] sm:$0xf]
    %v1032 = vld [vmem:[#allocation8 + $0x18] sm:$0xf]
    %v1033 = vld [vmem:[#allocation8 + $0x1c] sm:$0xf]
    %v1034 = vld [vmem:[#allocation8 + $0x20] sm:$0xf]
    %v1035 = vld [vmem:[#allocation8 + $0x24] sm:$0xf]
    %v1036 = vld [vmem:[#allocation8 + $0x28] sm:$0xf]
    %v1037 = vld [vmem:[#allocation8 + $0x2c] sm:$0xf]
    %v1038 = vld [vmem:[#allocation8 + $0x30] sm:$0xf]
    %v1039 = vld [vmem:[#allocation8 + $0x34] sm:$0xf]
    %v1040 = vld [vmem:[#allocation8 + $0x38] sm:$0xf]
    %v1041 = vld [vmem:[#allocation8 + $0x3c] sm:$0xf]
    %v1042 = vld [vmem:[#allocation8 + $0x40] sm:$0xf]
    %v1043 = vld [vmem:[#allocation8 + $0x44] sm:$0xf]
    %v1044 = vld [vmem:[#allocation8 + $0x48] sm:$0xf]
    %v1045 = vld [vmem:[#allocation8 + $0x4c] sm:$0xf]
    %v1046 = vld [vmem:[#allocation8 + $0x50] sm:$0xf]
    %v1047 = vld [vmem:[#allocation8 + $0x54] sm:$0xf]
    %v1048 = vld [vmem:[#allocation8 + $0x58] sm:$0xf]
    %v1049 = vld [vmem:[#allocation8 + $0x5c] sm:$0xf]
    %v1050 = vld [vmem:[#allocation8 + $0x60] sm:$0xf]
    %v1051 = vld [vmem:[#allocation8 + $0x64] sm:$0xf]
    %v1052 = vld [vmem:[#allocation8 + $0x68] sm:$0xf]
    %v1053 = vld [vmem:[#allocation8 + $0x6c] sm:$0xf]
    %v1054 = vld [vmem:[#allocation8 + $0x70] sm:$0xf]
    %v1055 = vld [vmem:[#allocation8 + $0x74] sm:$0xf]
    %v1056 = vld [vmem:[#allocation8 + $0x78] sm:$0xf]
    %v1057 = vld [vmem:[#allocation8 + $0x7c] sm:$0xf]
    %v1058 = vld [vmem:[#allocation8 + $0x80] sm:$0xf]
    %v1059 = vld [vmem:[#allocation8 + $0x84] sm:$0xf]
    %v1060 = vld [vmem:[#allocation8 + $0x88] sm:$0xf]
    %v1061 = vld [vmem:[#allocation8 + $0x8c] sm:$0xf]
    %v1062 = vld [vmem:[#allocation8 + $0x90] sm:$0xf]
    %v1063 = vld [vmem:[#allocation8 + $0x94] sm:$0xf]
    %v1064 = vld [vmem:[#allocation8 + $0x98] sm:$0xf]
    %v1065 = vld [vmem:[#allocation8 + $0x9c] sm:$0xf]
    %v1066 = vld [vmem:[#allocation8 + $0xa0] sm:$0xf]
    %v1067 = vld [vmem:[#allocation8 + $0xa4] sm:$0xf]
    %v1068 = vld [vmem:[#allocation8 + $0xa8] sm:$0xf]
    %v1069 = vld [vmem:[#allocation8 + $0xac] sm:$0xf]
    %v1070 = vld [vmem:[#allocation8 + $0xb0] sm:$0xf]
    %v1071 = vld [vmem:[#allocation8 + $0xb4] sm:$0xf]
    %v1072 = vld [vmem:[#allocation8 + $0xb8] sm:$0xf]
    %v1073 = vld [vmem:[#allocation8 + $0xbc] sm:$0xf]
    %v1074 = vld [vmem:[%s9] sm:$0x1]
    %v1076 = vlaneseq
    %v1077 = vshrl.u32 %v1076, 7
    %v1078 = vsub.s32 0, %v1077
    %v1079 = vrot.slane %v1074, %v1078
    %v1082 = vshrl.u32 %v989, 16
    %v1084 = vshll.u32 %v989, 16
    %v1086 = vrot.slane %v1084, 1
    %v1087 = vor.u32 %v1082, %v1086
    %v1088 = vsel %vm408, %v1087, %v1005
    %v1090 = vshrl.u32 %v1006, 16
    %v1092 = vshll.u32 %v1006, 16
    %v1094 = vrot.slane %v1092, 1
    %v1095 = vor.u32 %v1090, %v1094
    %v1097 = vshll.u32 %v1014, 16
    %v1099 = vrot.slane %v1097, 1
    %v1100 = vsel %vm408, %v1095, %v1099
    %v1102 = vshrl.u32 %v1023, 16
    %v1104 = vshll.u32 %v1023, 16
    %v1106 = vrot.slane %v1104, 1
    %v1107 = vor.u32 %v1102, %v1106
    %v1109 = vshll.u32 %v1025, 16
    %v1111 = vrot.slane %v1109, 1
    %v1112 = vsel %vm408, %v1107, %v1111
    %v1113 = vshrl.u32 %v1014, 16
    %v1115 = vor.u32 %v1113, %v1099
    %v1117 = vshll.u32 %v1017, 16
    %v1119 = vrot.slane %v1117, 1
    %v1120 = vsel %vm408, %v1115, %v1119
    %v1121 = vshrl.u32 %v1025, 16
    %v1123 = vor.u32 %v1121, %v1111
    %v1125 = vshll.u32 %v1024, 16
    %v1127 = vrot.slane %v1125, 1
    %v1128 = vsel %vm408, %v1123, %v1127
    %v1129 = vshrl.u32 %v1017, 16
    %v1131 = vor.u32 %v1129, %v1119
    %v1132 = vshrl.u32 %v1024, 16
    %v1134 = vor.u32 %v1132, %v1127
    %v1192 = vunpack.c.l.b16 %v1026
    %v1193 = vunpack.c.l.b16 %v1027
    %v1194 = vunpack.c.l.b16 %v1028
    %v1195 = vunpack.c.l.b16 %v1029
    %v1196 = vunpack.c.l.b16 %v1030
    %v1197 = vunpack.c.l.b16 %v1031
    %v1198 = vunpack.c.l.b16 %v1032
    %v1199 = vunpack.c.l.b16 %v1033
    %v1200 = vunpack.c.l.b16 %v1034
    %v1201 = vunpack.c.l.b16 %v1035
    %v1202 = vunpack.c.l.b16 %v1036
    %v1203 = vunpack.c.l.b16 %v1037
    %v1204 = vunpack.c.l.b16 %v1038
    %v1205 = vunpack.c.l.b16 %v1039
    %v1206 = vunpack.c.l.b16 %v1040
    %v1207 = vunpack.c.l.b16 %v1041
    %v1208 = vunpack.c.l.b16 %v1042
    %v1209 = vunpack.c.l.b16 %v1043
    %v1210 = vunpack.c.l.b16 %v1044
    %v1211 = vunpack.c.l.b16 %v1045
    %v1212 = vunpack.c.l.b16 %v1046
    %v1213 = vunpack.c.l.b16 %v1047
    %v1214 = vunpack.c.l.b16 %v1048
    %v1215 = vunpack.c.l.b16 %v1049
    %v1216 = vunpack.c.l.b16 %v1050
    %v1217 = vunpack.c.l.b16 %v1051
    %v1218 = vunpack.c.l.b16 %v1052
    %v1219 = vunpack.c.l.b16 %v1053
    %v1220 = vunpack.c.l.b16 %v1054
    %v1221 = vunpack.c.l.b16 %v1055
    %v1222 = vunpack.c.l.b16 %v1056
    %v1223 = vunpack.c.l.b16 %v1057
    %v1224 = vunpack.c.l.b16 %v1058
    %v1225 = vunpack.c.l.b16 %v1059
    %v1226 = vunpack.c.l.b16 %v1060
    %v1227 = vunpack.c.l.b16 %v1061
    %v1228 = vunpack.c.l.b16 %v1062
    %v1229 = vunpack.c.l.b16 %v1063
    %v1230 = vunpack.c.l.b16 %v1064
    %v1231 = vunpack.c.l.b16 %v1065
    %v1232 = vunpack.c.l.b16 %v1066
    %v1233 = vunpack.c.l.b16 %v1067
    %v1234 = vunpack.c.l.b16 %v1068
    %v1235 = vunpack.c.l.b16 %v1069
    %v1236 = vunpack.c.l.b16 %v1070
    %v1237 = vunpack.c.l.b16 %v1071
    %v1238 = vunpack.c.l.b16 %v1072
    %v1239 = vunpack.c.l.b16 %v1073
    %v1240 = vpack.c.b16 %v1193, %v1192
    %v1241 = vpack.c.b16 %v1195, %v1194
    %v1242 = vpack.c.b16 %v1197, %v1196
    %v1243 = vpack.c.b16 %v1199, %v1198
    %v1244 = vpack.c.b16 %v1201, %v1200
    %v1245 = vpack.c.b16 %v1203, %v1202
    %v1246 = vpack.c.b16 %v1205, %v1204
    %v1247 = vpack.c.b16 %v1207, %v1206
    %v1248 = vpack.c.b16 %v1209, %v1208
    %v1249 = vpack.c.b16 %v1211, %v1210
    %v1250 = vpack.c.b16 %v1213, %v1212
    %v1251 = vpack.c.b16 %v1215, %v1214
    %v1252 = vpack.c.b16 %v1217, %v1216
    %v1253 = vpack.c.b16 %v1219, %v1218
    %v1254 = vpack.c.b16 %v1221, %v1220
    %v1255 = vpack.c.b16 %v1223, %v1222
    %v1256 = vpack.c.b16 %v1225, %v1224
    %v1257 = vpack.c.b16 %v1227, %v1226
    %v1258 = vpack.c.b16 %v1229, %v1228
    %v1259 = vpack.c.b16 %v1231, %v1230
    %v1260 = vpack.c.b16 %v1233, %v1232
    %v1261 = vpack.c.b16 %v1235, %v1234
    %v1262 = vpack.c.b16 %v1237, %v1236
    %v1263 = vpack.c.b16 %v1239, %v1238
    %1288 = vmatprep.subr.bf16.mxu0 0
    %1289 = vmatpush1.bf16.msra.mxu0 %v1240
    %1290 = vmatprep.subr.bf16.mxu0 0
    %1291 = vmatpush1.bf16.msra.mxu0 %v1241
    %1292 = vmatprep.subr.bf16.mxu0 0
    %1293 = vmatpush1.bf16.msra.mxu0 %v1242
    %1294 = vmatprep.subr.bf16.mxu0 0
    %1295 = vmatpush1.bf16.msra.mxu0 %v1243
    %1296 = vmatprep.subr.bf16.mxu0 0
    %1297 = vmatpush1.bf16.msra.mxu0 %v1244
    %1298 = vmatprep.subr.bf16.mxu0 0
    %1299 = vmatpush1.bf16.msra.mxu0 %v1245
    %1300 = vmatprep.subr.bf16.mxu0 0
    %1301 = vmatpush1.bf16.msra.mxu0 %v1246
    %1302 = vmatprep.subr.bf16.mxu0 0
    %1303 = vmatpush1.bf16.msra.mxu0 %v1247
    %1304 = vmatprep.subr.bf16.mxu0 0
    %1305 = vmatpush1.bf16.msra.mxu0 %v1248
    %1306 = vmatprep.subr.bf16.mxu0 0
    %1307 = vmatpush1.bf16.msra.mxu0 %v1249
    %1308 = vmatprep.subr.bf16.mxu0 0
    %1309 = vmatpush1.bf16.msra.mxu0 %v1250
    %1310 = vmatprep.subr.bf16.mxu0 0
    %1311 = vmatpush1.bf16.msra.mxu0 %v1251
    %1312 = vmatprep.subr.bf16.mxu0 0
    %1313 = vmatpush1.bf16.msra.mxu0 %v1252
    %1314 = vmatprep.subr.bf16.mxu0 0
    %1315 = vmatpush1.bf16.msra.mxu0 %v1253
    %1316 = vmatprep.subr.bf16.mxu0 0
    %1317 = vmatpush1.bf16.msra.mxu0 %v1254
    %1318 = vmatprep.subr.bf16.mxu0 0
    %1319 = vmatpush1.bf16.msra.mxu0 %v1255
    %1320 = vmatprep.mubr.bf16.mxu0 %v1100
    %1321 = vmatmul.mubr.bf16.gmra.mrb[0].mxu0 %v1088
    %v1322 = vpop.f32.mrb[0].mxu0
    %v1323 = vadd.f32 %v1079, %v1322
    %v1324 = vpop.f32.mrb[0].mxu0
    %v1325 = vpop.f32.mrb[0].mxu0
    %v1326 = vadd.f32 %v1079, %v1325
    %v1327 = vpop.f32.mrb[0].mxu0
    %1328 = vmatprep.mubr.bf16.mxu0 %v1120
    %1329 = vmatmul.mubr.bf16.gmra.mrb[0].mxu0 %v1014
    %v1330 = vpop.f32.mrb[0].mxu0
    %v1331 = vadd.f32 %v1079, %v1330
    %v1332 = vpop.f32.mrb[0].mxu0
    %v1333 = vpop.f32.mrb[0].mxu0
    %v1334 = vadd.f32 %v1079, %v1333
    %v1335 = vpop.f32.mrb[0].mxu0
    %1336 = vmatprep.mubr.bf16.mxu0 %v1131
    %1337 = vmatmul.mubr.bf16.gmra.mrb[0].mxu0 %v1017
    %v1338 = vpop.f32.mrb[0].mxu0
    %v1339 = vadd.f32 %v1079, %v1338
    %v1340 = vpop.f32.mrb[0].mxu0
    %v1341 = vpop.f32.mrb[0].mxu0
    %v1342 = vpop.f32.mrb[0].mxu0
    %1343 = vdwg.mxu0
    %1344 = vmatprep.subr.bf16.mxu0 0
    %1345 = vmatpush1.bf16.msra.mxu0 %v1256
    %1346 = vmatprep.subr.bf16.mxu0 0
    %1347 = vmatpush1.bf16.msra.mxu0 %v1257
    %1348 = vmatprep.subr.bf16.mxu0 0
    %1349 = vmatpush1.bf16.msra.mxu0 %v1258
    %1350 = vmatprep.subr.bf16.mxu0 0
    %1351 = vmatpush1.bf16.msra.mxu0 %v1259
    %1352 = vmatprep.subr.bf16.mxu0 0
    %1353 = vmatpush1.bf16.msra.mxu0 %v1260
    %1354 = vmatprep.subr.bf16.mxu0 0
    %1355 = vmatpush1.bf16.msra.mxu0 %v1261
    %1356 = vmatprep.subr.bf16.mxu0 0
    %1357 = vmatpush1.bf16.msra.mxu0 %v1262
    %1358 = vmatprep.subr.bf16.mxu0 0
    %1359 = vmatpush1.bf16.msra.mxu0 %v1263
    %1360 = vmatprep.subr.bf16.mxu0 0
    %1361 = vmatpush1.bf16.msra.mxu0 0
    %1362 = vmatprep.subr.bf16.mxu0 0
    %1363 = vmatpush1.bf16.msra.mxu0 0
    %1364 = vmatprep.subr.bf16.mxu0 0
    %1365 = vmatpush1.bf16.msra.mxu0 0
    %1366 = vmatprep.subr.bf16.mxu0 0
    %1367 = vmatpush1.bf16.msra.mxu0 0
    %1368 = vmatprep.subr.bf16.mxu0 0
    %1369 = vmatpush1.bf16.msra.mxu0 0
    %1370 = vmatprep.subr.bf16.mxu0 0
    %1371 = vmatpush1.bf16.msra.mxu0 0
    %1372 = vmatprep.subr.bf16.mxu0 0
    %1373 = vmatpush1.bf16.msra.mxu0 0
    %1374 = vmatprep.subr.bf16.mxu0 0
    %1375 = vmatpush1.bf16.msra.mxu0 0
    %1376 = vmatprep.mubr.bf16.mxu0 0
    %1377 = vmatmul.mubr.bf16.gmra.mrb[0].mxu0 %v1112
    %v1378 = vpop.f32.mrb[0].mxu0
    %v1379 = vadd.f32 %v1323, %v1378
    %v1380 = vpop.f32.mrb[0].mxu0
    %v1381 = vpop.f32.mrb[0].mxu0
    %v1382 = vadd.f32 %v1326, %v1381
    %v1383 = vpop.f32.mrb[0].mxu0
    %1384 = vmatprep.mubr.bf16.mxu0 0
    %1385 = vmatmul.mubr.bf16.gmra.mrb[0].mxu0 %v1128
    %v1386 = vpop.f32.mrb[0].mxu0
    %v1387 = vadd.f32 %v1331, %v1386
    %v1388 = vpop.f32.mrb[0].mxu0
    %v1389 = vpop.f32.mrb[0].mxu0
    %v1390 = vadd.f32 %v1334, %v1389
    %v1391 = vpop.f32.mrb[0].mxu0
    %1392 = vmatprep.mubr.bf16.mxu0 0
    %1393 = vmatmul.mubr.bf16.gmra.mrb[0].mxu0 %v1134
    %v1394 = vpop.f32.mrb[0].mxu0
    %v1395 = vadd.f32 %v1339, %v1394
    %v1396 = vpop.f32.mrb[0].mxu0
    %v1397 = vpop.f32.mrb[0].mxu0
    %v1398 = vpop.f32.mrb[0].mxu0
    %1399 = vdwg.mxu0
    %v1400 = vmul.f32 %v1379, %v316
    %v1401 = vmul.f32 %v1382, %v321
    %v1402 = vmul.f32 %v1387, %v326
    %v1403 = vmul.f32 %v1390, %v331
    %v1404 = vmul.f32 %v1395, %v336
    %v1405 = vadd.f32 %v1400, %v1401
    %v1406 = vadd.f32 %v1405, %v1402
    %v1407 = vadd.f32 %v1406, %v1403
    %v1408 = vsel %vm823, %v1404, 0.0
    %v1409 = vadd.f32 %v1407, %v1408
    %v1410 = vrot.slane %v1409, 4
    %v1411 = vadd.f32 %v1409, %v1410
    %v1412 = vrot.slane %v1411, 2
    %v1413 = vadd.f32 %v1411, %v1412
    %v1414 = vrot.slane %v1413, 1
    %v1415 = vadd.f32 %v1413, %v1414
    %1416 = vrot.lane.b32.xlu0 %v1415, 8
    %v1417 = vpop.permute.xlu0 %1416
    %v1418 = vadd.f32 %v1415, %v1417
    %1419 = vrot.lane.b32.xlu0 %v1418, 16
    %v1420 = vpop.permute.xlu0 %1419
    %v1421 = vadd.f32 %v1418, %v1420
    %1422 = vrot.lane.b32.xlu0 %v1421, 32
    %v1423 = vpop.permute.xlu0 %1422
    %v1424 = vadd.f32 %v1421, %v1423
    %1425 = vrot.lane.b32.xlu0 %v1424, 64
    %v1426 = vpop.permute.xlu0 %1425
    %v1427 = vadd.f32 %v1424, %v1426
    %v1428 = vmul.f32 %v1427, 0.001953125
    %v1429 = vlaneseq
    %v1430 = vshrl.u32 %v1429, 7
    %v1431 = vsub.s32 0, %v1430
    %v1432 = vrot.slane %v1428, %v1431
    %v1433 = vsub.f32 %v1400, %v1432
    %v1434 = vsub.f32 %v1401, %v1432
    %v1435 = vsub.f32 %v1402, %v1432
    %v1436 = vsub.f32 %v1403, %v1432
    %v1437 = vsub.f32 %v1404, %v1432
    %v1438 = vmul.f32 %v1433, %v316
    %v1439 = vmul.f32 %v1434, %v321
    %v1440 = vmul.f32 %v1435, %v326
    %v1441 = vmul.f32 %v1436, %v331
    %v1442 = vmul.f32 %v1437, %v336
    %v1443 = vmul.f32 %v1438, %v1438
    %v1444 = vmul.f32 %v1439, %v1439
    %v1445 = vmul.f32 %v1440, %v1440
    %v1446 = vmul.f32 %v1441, %v1441
    %v1447 = vmul.f32 %v1442, %v1442
    %v1448 = vadd.f32 %v1443, %v1444
    %v1449 = vadd.f32 %v1448, %v1445
    %v1450 = vadd.f32 %v1449, %v1446
    %v1451 = vsel %vm823, %v1447, 0.0
    %v1452 = vadd.f32 %v1450, %v1451
    %v1453 = vrot.slane %v1452, 4
    %v1454 = vadd.f32 %v1452, %v1453
    %v1455 = vrot.slane %v1454, 2
    %v1456 = vadd.f32 %v1454, %v1455
    %v1457 = vrot.slane %v1456, 1
    %v1458 = vadd.f32 %v1456, %v1457
    %1459 = vrot.lane.b32.xlu0 %v1458, 8
    %v1460 = vpop.permute.xlu0 %1459
    %v1461 = vadd.f32 %v1458, %v1460
    %1462 = vrot.lane.b32.xlu0 %v1461, 16
    %v1463 = vpop.permute.xlu0 %1462
    %v1464 = vadd.f32 %v1461, %v1463
    %1465 = vrot.lane.b32.xlu0 %v1464, 32
    %v1466 = vpop.permute.xlu0 %1465
    %v1467 = vadd.f32 %v1464, %v1466
    %1468 = vrot.lane.b32.xlu0 %v1467, 64
    %v1469 = vpop.permute.xlu0 %1468
    %v1470 = vadd.f32 %v1467, %v1469
    %v1471 = vmul.f32 %v1470, 0.001953125
    %v1472 = vadd.f32 %v1471, 1e-05
    %v1473 = vrsqrt.pop %v1472
    %v1474 = vlaneseq
    %v1475 = vshrl.u32 %v1474, 7
    %v1476 = vsub.s32 0, %v1475
    %v1477 = vrot.slane %v1473, %v1476
    %v1478 = vmul.f32 %v1438, %v1477
    %v1479 = vmul.f32 %v1439, %v1477
    %v1480 = vmul.f32 %v1440, %v1477
    %v1481 = vmul.f32 %v1441, %v1477
    %v1482 = vmul.f32 %v1442, %v1477
    %v1483 = vld [vmem:[%s10] sm:$0x1]
    %v1485 = vlaneseq
    %v1486 = vshrl.u32 %v1485, 7
    %v1487 = vsub.s32 0, %v1486
    %v1488 = vrot.slane %v1483, %v1487
    %v1490 = vmul.f32 %v1478, %v1488
    %v1491 = vmul.f32 %v1479, %v1488
    %v1492 = vmul.f32 %v1480, %v1488
    %v1493 = vmul.f32 %v1481, %v1488
    %v1494 = vmul.f32 %v1482, %v1488
    %v1495 = vld [vmem:[%s11] sm:$0x1]
    %v1497 = vlaneseq
    %v1498 = vshrl.u32 %v1497, 7
    %v1499 = vsub.s32 0, %v1498
    %v1500 = vrot.slane %v1495, %v1499
    %v1502 = vadd.f32 %v1490, %v1500
    %v1503 = vadd.f32 %v1491, %v1500
    %v1504 = vadd.f32 %v1492, %v1500
    %v1505 = vadd.f32 %v1493, %v1500
    %v1506 = vadd.f32 %v1494, %v1500
    %v1507 = vmax.f32 %v1502, 0.0
    %v1508 = vmax.f32 %v1503, 0.0
    %v1509 = vmax.f32 %v1504, 0.0
    %v1510 = vmax.f32 %v1505, 0.0
    %v1511 = vmax.f32 %v1506, 0.0
    %v1512 = vmul.f32 %v1507, %v316
    %v1513 = vmul.f32 %v1508, %v321
    %v1514 = vmul.f32 %v1509, %v326
    %v1515 = vmul.f32 %v1510, %v331
    %v1516 = vmul.f32 %v1511, %v336
    %v1517 = vadd.f32 %v338, %v1512
    %v1518 = vadd.f32 %v339, %v1513
    %v1519 = vadd.f32 %v340, %v1514
    %v1520 = vadd.f32 %v341, %v1515
    %v1521 = vadd.f32 %v342, %v1516
    %v1522 = vpack.c.bf16 %v1518, %v1517
    %v1523 = vpack.c.bf16 %v1520, %v1519
    %v1524 = vpack.c.bf16 %v1521, %v1521
    %v1528 = vunpack.c.l.b16 %v1522
    %v1529 = vunpack.c.h.b16 %v1522
    %v1530 = vunpack.c.l.b16 %v1523
    %v1531 = vunpack.c.h.b16 %v1523
    %v1532 = vunpack.c.l.b16 %v1524
    %v1533 = vpack.c.b16 %v1528, %v1528
    %v1534 = vpack.c.b16 %v1529, %v1529
    %v1535 = vpack.c.b16 %v1530, %v1530
    %v1536 = vpack.c.b16 %v1531, %v1531
    %v1537 = vpack.c.b16 %v1532, %v1532
    %v1538 = vrot.slane %v1533, 7
    %v1539 = vrot.slane %v1538, 4
    %v1540 = vrot.slane %v1534, 7
    %v1541 = vsel %vm361, %v1539, %v1540
    %v1542 = vrot.slane %v1540, 4
    %v1543 = vrot.slane %v1535, 7
    %v1544 = vsel %vm361, %v1542, %v1543
    %v1545 = vrot.slane %v1543, 4
    %v1546 = vrot.slane %v1536, 7
    %v1547 = vsel %vm361, %v1545, %v1546
    %v1548 = vrot.slane %v1546, 4
    %v1549 = vrot.slane %v1537, 7
    %v1550 = vsel %vm361, %v1548, %v1549
    %1556 = vst [vmem:[#allocation2] sm:$0xe] %v1538
    %1557 = vst [vmem:[#allocation2 + $0x4] sm:$0xf] %v1541
    %1558 = vst [vmem:[#allocation2 + $0x8] sm:$0xf] %v1544
    %1559 = vst [vmem:[#allocation2 + $0xc] sm:$0xf] %v1547
    %1560 = vst [vmem:[#allocation2 + $0x10] sm:$0x7] %v1550
    %v1561 = vld [vmem:[#allocation2] sm:$0xf]
    %v1562 = vld [vmem:[#allocation2 + $0x4] sm:$0xf]
    %v1563 = vld [vmem:[#allocation2 + $0x8] sm:$0xf]
    %v1564 = vld [vmem:[#allocation2 + $0xc] sm:$0xf]
    %v1565 = vld [vmem:[#allocation2 + $0x10] sm:$0x7]
    %v1566 = vld [vmem:[#allocation2] sm:$0xe]
    %v1567 = vld [vmem:[#allocation2 + $0x10] sm:$0xf]
    %v1573 = vunpack.c.l.b16 %v1561
    %v1574 = vunpack.c.l.b16 %v1562
    %v1575 = vunpack.c.l.b16 %v1563
    %v1576 = vunpack.c.l.b16 %v1564
    %v1577 = vunpack.c.l.b16 %v1565
    %v1578 = vpack.c.b16 %v1574, %v1573
    %v1579 = vpack.c.b16 %v1576, %v1575
    %v1580 = vpack.c.b16 %v1577, %v1577
    %v1582 = vunpack.c.l.b16 %v1566
    %v1583 = vpack.c.b16 %v1574, %v1582
    %v1585 = vshrl.u32 %v1583, 16
    %v1587 = vshll.u32 %v1583, 16
    %v1589 = vrot.slane %v1587, 1
    %v1590 = vor.u32 %v1585, %v1589
    %v1592 = vshll.u32 %v1579, 16
    %v1594 = vrot.slane %v1592, 1
    %v1595 = vsel %vm408, %v1590, %v1594
    %v1596 = vshrl.u32 %v1579, 16
    %v1598 = vor.u32 %v1596, %v1594
    %v1600 = vshll.u32 %v1580, 16
    %v1602 = vrot.slane %v1600, 1
    %v1603 = vsel %vm408, %v1598, %v1602
    %v1604 = vshrl.u32 %v1580, 16
    %v1606 = vor.u32 %v1604, %v1602
    %v1608 = vunpack.c.l.b16 %v1567
    %v1609 = vpack.c.b16 %v1608, %v1608
    %v1610 = vrot.slane %v1583, 1
    %v1611 = vrot.slane %v1579, 1
    %v1612 = vsel %vm435, %v1610, %v1611
    %v1613 = vrot.slane %v1609, 1
    %v1614 = vsel %vm435, %v1611, %v1613
    %v1615 = vld [vmem:[#allocation9] sm:$0xf]
    %v1616 = vld [vmem:[#allocation9 + $0x4] sm:$0xf]
    %v1617 = vld [vmem:[#allocation9 + $0x8] sm:$0xf]
    %v1618 = vld [vmem:[#allocation9 + $0xc] sm:$0xf]
    %v1619 = vld [vmem:[#allocation9 + $0x10] sm:$0xf]
    %v1620 = vld [vmem:[#allocation9 + $0x14] sm:$0xf]
    %v1621 = vld [vmem:[#allocation9 + $0x18] sm:$0xf]
    %v1622 = vld [vmem:[#allocation9 + $0x1c] sm:$0xf]
    %v1623 = vld [vmem:[#allocation9 + $0x20] sm:$0xf]
    %v1624 = vld [vmem:[#allocation9 + $0x24] sm:$0xf]
    %v1625 = vld [vmem:[#allocation9 + $0x28] sm:$0xf]
    %v1626 = vld [vmem:[#allocation9 + $0x2c] sm:$0xf]
    %v1627 = vld [vmem:[#allocation9 + $0x30] sm:$0xf]
    %v1628 = vld [vmem:[#allocation9 + $0x34] sm:$0xf]
    %v1629 = vld [vmem:[#allocation9 + $0x38] sm:$0xf]
    %v1630 = vld [vmem:[#allocation9 + $0x3c] sm:$0xf]
    %v1631 = vld [vmem:[#allocation9 + $0x40] sm:$0xf]
    %v1632 = vld [vmem:[#allocation9 + $0x44] sm:$0xf]
    %v1633 = vld [vmem:[#allocation9 + $0x48] sm:$0xf]
    %v1634 = vld [vmem:[#allocation9 + $0x4c] sm:$0xf]
    %v1635 = vld [vmem:[#allocation9 + $0x50] sm:$0xf]
    %v1636 = vld [vmem:[#allocation9 + $0x54] sm:$0xf]
    %v1637 = vld [vmem:[#allocation9 + $0x58] sm:$0xf]
    %v1638 = vld [vmem:[#allocation9 + $0x5c] sm:$0xf]
    %v1639 = vld [vmem:[#allocation9 + $0x60] sm:$0xf]
    %v1640 = vld [vmem:[#allocation9 + $0x64] sm:$0xf]
    %v1641 = vld [vmem:[#allocation9 + $0x68] sm:$0xf]
    %v1642 = vld [vmem:[#allocation9 + $0x6c] sm:$0xf]
    %v1643 = vld [vmem:[#allocation9 + $0x70] sm:$0xf]
    %v1644 = vld [vmem:[#allocation9 + $0x74] sm:$0xf]
    %v1645 = vld [vmem:[#allocation9 + $0x78] sm:$0xf]
    %v1646 = vld [vmem:[#allocation9 + $0x7c] sm:$0xf]
    %v1647 = vld [vmem:[#allocation9 + $0x80] sm:$0xf]
    %v1648 = vld [vmem:[#allocation9 + $0x84] sm:$0xf]
    %v1649 = vld [vmem:[#allocation9 + $0x88] sm:$0xf]
    %v1650 = vld [vmem:[#allocation9 + $0x8c] sm:$0xf]
    %v1651 = vld [vmem:[#allocation9 + $0x90] sm:$0xf]
    %v1652 = vld [vmem:[#allocation9 + $0x94] sm:$0xf]
    %v1653 = vld [vmem:[#allocation9 + $0x98] sm:$0xf]
    %v1654 = vld [vmem:[#allocation9 + $0x9c] sm:$0xf]
    %v1655 = vld [vmem:[#allocation9 + $0xa0] sm:$0xf]
    %v1656 = vld [vmem:[#allocation9 + $0xa4] sm:$0xf]
    %v1657 = vld [vmem:[#allocation9 + $0xa8] sm:$0xf]
    %v1658 = vld [vmem:[#allocation9 + $0xac] sm:$0xf]
    %v1659 = vld [vmem:[#allocation9 + $0xb0] sm:$0xf]
    %v1660 = vld [vmem:[#allocation9 + $0xb4] sm:$0xf]
    %v1661 = vld [vmem:[#allocation9 + $0xb8] sm:$0xf]
    %v1662 = vld [vmem:[#allocation9 + $0xbc] sm:$0xf]
    %v1663 = vld [vmem:[%s13] sm:$0x1]
    %v1665 = vlaneseq
    %v1666 = vshrl.u32 %v1665, 7
    %v1667 = vsub.s32 0, %v1666
    %v1668 = vrot.slane %v1663, %v1667
    %v1671 = vshrl.u32 %v1578, 16
    %v1673 = vshll.u32 %v1578, 16
    %v1675 = vrot.slane %v1673, 1
    %v1676 = vor.u32 %v1671, %v1675
    %v1677 = vsel %vm408, %v1676, %v1594
    %v1679 = vshrl.u32 %v1595, 16
    %v1681 = vshll.u32 %v1595, 16
    %v1683 = vrot.slane %v1681, 1
    %v1684 = vor.u32 %v1679, %v1683
    %v1686 = vshll.u32 %v1603, 16
    %v1688 = vrot.slane %v1686, 1
    %v1689 = vsel %vm408, %v1684, %v1688
    %v1691 = vshrl.u32 %v1612, 16
    %v1693 = vshll.u32 %v1612, 16
    %v1695 = vrot.slane %v1693, 1
    %v1696 = vor.u32 %v1691, %v1695
    %v1698 = vshll.u32 %v1614, 16
    %v1700 = vrot.slane %v1698, 1
    %v1701 = vsel %vm408, %v1696, %v1700
    %v1702 = vshrl.u32 %v1603, 16
    %v1704 = vor.u32 %v1702, %v1688
    %v1706 = vshll.u32 %v1606, 16
    %v1708 = vrot.slane %v1706, 1
    %v1709 = vsel %vm408, %v1704, %v1708
    %v1710 = vshrl.u32 %v1614, 16
    %v1712 = vor.u32 %v1710, %v1700
    %v1714 = vshll.u32 %v1613, 16
    %v1716 = vrot.slane %v1714, 1
    %v1717 = vsel %vm408, %v1712, %v1716
    %v1718 = vshrl.u32 %v1606, 16
    %v1720 = vor.u32 %v1718, %v1708
    %v1721 = vshrl.u32 %v1613, 16
    %v1723 = vor.u32 %v1721, %v1716
    %v1781 = vunpack.c.l.b16 %v1615
    %v1782 = vunpack.c.l.b16 %v1616
    %v1783 = vunpack.c.l.b16 %v1617
    %v1784 = vunpack.c.l.b16 %v1618
    %v1785 = vunpack.c.l.b16 %v1619
    %v1786 = vunpack.c.l.b16 %v1620
    %v1787 = vunpack.c.l.b16 %v1621
    %v1788 = vunpack.c.l.b16 %v1622
    %v1789 = vunpack.c.l.b16 %v1623
    %v1790 = vunpack.c.l.b16 %v1624
    %v1791 = vunpack.c.l.b16 %v1625
    %v1792 = vunpack.c.l.b16 %v1626
    %v1793 = vunpack.c.l.b16 %v1627
    %v1794 = vunpack.c.l.b16 %v1628
    %v1795 = vunpack.c.l.b16 %v1629
    %v1796 = vunpack.c.l.b16 %v1630
    %v1797 = vunpack.c.l.b16 %v1631
    %v1798 = vunpack.c.l.b16 %v1632
    %v1799 = vunpack.c.l.b16 %v1633
    %v1800 = vunpack.c.l.b16 %v1634
    %v1801 = vunpack.c.l.b16 %v1635
    %v1802 = vunpack.c.l.b16 %v1636
    %v1803 = vunpack.c.l.b16 %v1637
    %v1804 = vunpack.c.l.b16 %v1638
    %v1805 = vunpack.c.l.b16 %v1639
    %v1806 = vunpack.c.l.b16 %v1640
    %v1807 = vunpack.c.l.b16 %v1641
    %v1808 = vunpack.c.l.b16 %v1642
    %v1809 = vunpack.c.l.b16 %v1643
    %v1810 = vunpack.c.l.b16 %v1644
    %v1811 = vunpack.c.l.b16 %v1645
    %v1812 = vunpack.c.l.b16 %v1646
    %v1813 = vunpack.c.l.b16 %v1647
    %v1814 = vunpack.c.l.b16 %v1648
    %v1815 = vunpack.c.l.b16 %v1649
    %v1816 = vunpack.c.l.b16 %v1650
    %v1817 = vunpack.c.l.b16 %v1651
    %v1818 = vunpack.c.l.b16 %v1652
    %v1819 = vunpack.c.l.b16 %v1653
    %v1820 = vunpack.c.l.b16 %v1654
    %v1821 = vunpack.c.l.b16 %v1655
    %v1822 = vunpack.c.l.b16 %v1656
    %v1823 = vunpack.c.l.b16 %v1657
    %v1824 = vunpack.c.l.b16 %v1658
    %v1825 = vunpack.c.l.b16 %v1659
    %v1826 = vunpack.c.l.b16 %v1660
    %v1827 = vunpack.c.l.b16 %v1661
    %v1828 = vunpack.c.l.b16 %v1662
    %v1829 = vpack.c.b16 %v1782, %v1781
    %v1830 = vpack.c.b16 %v1784, %v1783
    %v1831 = vpack.c.b16 %v1786, %v1785
    %v1832 = vpack.c.b16 %v1788, %v1787
    %v1833 = vpack.c.b16 %v1790, %v1789
    %v1834 = vpack.c.b16 %v1792, %v1791
    %v1835 = vpack.c.b16 %v1794, %v1793
    %v1836 = vpack.c.b16 %v1796, %v1795
    %v1837 = vpack.c.b16 %v1798, %v1797
    %v1838 = vpack.c.b16 %v1800, %v1799
    %v1839 = vpack.c.b16 %v1802, %v1801
    %v1840 = vpack.c.b16 %v1804, %v1803
    %v1841 = vpack.c.b16 %v1806, %v1805
    %v1842 = vpack.c.b16 %v1808, %v1807
    %v1843 = vpack.c.b16 %v1810, %v1809
    %v1844 = vpack.c.b16 %v1812, %v1811
    %v1845 = vpack.c.b16 %v1814, %v1813
    %v1846 = vpack.c.b16 %v1816, %v1815
    %v1847 = vpack.c.b16 %v1818, %v1817
    %v1848 = vpack.c.b16 %v1820, %v1819
    %v1849 = vpack.c.b16 %v1822, %v1821
    %v1850 = vpack.c.b16 %v1824, %v1823
    %v1851 = vpack.c.b16 %v1826, %v1825
    %v1852 = vpack.c.b16 %v1828, %v1827
    %1877 = vmatprep.subr.bf16.mxu0 0
    %1878 = vmatpush1.bf16.msra.mxu0 %v1829
    %1879 = vmatprep.subr.bf16.mxu0 0
    %1880 = vmatpush1.bf16.msra.mxu0 %v1830
    %1881 = vmatprep.subr.bf16.mxu0 0
    %1882 = vmatpush1.bf16.msra.mxu0 %v1831
    %1883 = vmatprep.subr.bf16.mxu0 0
    %1884 = vmatpush1.bf16.msra.mxu0 %v1832
    %1885 = vmatprep.subr.bf16.mxu0 0
    %1886 = vmatpush1.bf16.msra.mxu0 %v1833
    %1887 = vmatprep.subr.bf16.mxu0 0
    %1888 = vmatpush1.bf16.msra.mxu0 %v1834
    %1889 = vmatprep.subr.bf16.mxu0 0
    %1890 = vmatpush1.bf16.msra.mxu0 %v1835
    %1891 = vmatprep.subr.bf16.mxu0 0
    %1892 = vmatpush1.bf16.msra.mxu0 %v1836
    %1893 = vmatprep.subr.bf16.mxu0 0
    %1894 = vmatpush1.bf16.msra.mxu0 %v1837
    %1895 = vmatprep.subr.bf16.mxu0 0
    %1896 = vmatpush1.bf16.msra.mxu0 %v1838
    %1897 = vmatprep.subr.bf16.mxu0 0
    %1898 = vmatpush1.bf16.msra.mxu0 %v1839
    %1899 = vmatprep.subr.bf16.mxu0 0
    %1900 = vmatpush1.bf16.msra.mxu0 %v1840
    %1901 = vmatprep.subr.bf16.mxu0 0
    %1902 = vmatpush1.bf16.msra.mxu0 %v1841
    %1903 = vmatprep.subr.bf16.mxu0 0
    %1904 = vmatpush1.bf16.msra.mxu0 %v1842
    %1905 = vmatprep.subr.bf16.mxu0 0
    %1906 = vmatpush1.bf16.msra.mxu0 %v1843
    %1907 = vmatprep.subr.bf16.mxu0 0
    %1908 = vmatpush1.bf16.msra.mxu0 %v1844
    %1909 = vmatprep.mubr.bf16.mxu0 %v1689
    %1910 = vmatmul.mubr.bf16.gmra.mrb[0].mxu0 %v1677
    %v1911 = vpop.f32.mrb[0].mxu0
    %v1912 = vadd.f32 %v1668, %v1911
    %v1913 = vpop.f32.mrb[0].mxu0
    %v1914 = vpop.f32.mrb[0].mxu0
    %v1915 = vadd.f32 %v1668, %v1914
    %v1916 = vpop.f32.mrb[0].mxu0
    %1917 = vmatprep.mubr.bf16.mxu0 %v1709
    %1918 = vmatmul.mubr.bf16.gmra.mrb[0].mxu0 %v1603
    %v1919 = vpop.f32.mrb[0].mxu0
    %v1920 = vadd.f32 %v1668, %v1919
    %v1921 = vpop.f32.mrb[0].mxu0
    %v1922 = vpop.f32.mrb[0].mxu0
    %v1923 = vadd.f32 %v1668, %v1922
    %v1924 = vpop.f32.mrb[0].mxu0
    %1925 = vmatprep.mubr.bf16.mxu0 %v1720
    %1926 = vmatmul.mubr.bf16.gmra.mrb[0].mxu0 %v1606
    %v1927 = vpop.f32.mrb[0].mxu0
    %v1928 = vadd.f32 %v1668, %v1927
    %v1929 = vpop.f32.mrb[0].mxu0
    %v1930 = vpop.f32.mrb[0].mxu0
    %v1931 = vpop.f32.mrb[0].mxu0
    %1932 = vdwg.mxu0
    %1933 = vmatprep.subr.bf16.mxu0 0
    %1934 = vmatpush1.bf16.msra.mxu0 %v1845
    %1935 = vmatprep.subr.bf16.mxu0 0
    %1936 = vmatpush1.bf16.msra.mxu0 %v1846
    %1937 = vmatprep.subr.bf16.mxu0 0
    %1938 = vmatpush1.bf16.msra.mxu0 %v1847
    %1939 = vmatprep.subr.bf16.mxu0 0
    %1940 = vmatpush1.bf16.msra.mxu0 %v1848
    %1941 = vmatprep.subr.bf16.mxu0 0
    %1942 = vmatpush1.bf16.msra.mxu0 %v1849
    %1943 = vmatprep.subr.bf16.mxu0 0
    %1944 = vmatpush1.bf16.msra.mxu0 %v1850
    %1945 = vmatprep.subr.bf16.mxu0 0
    %1946 = vmatpush1.bf16.msra.mxu0 %v1851
    %1947 = vmatprep.subr.bf16.mxu0 0
    %1948 = vmatpush1.bf16.msra.mxu0 %v1852
    %1949 = vmatprep.subr.bf16.mxu0 0
    %1950 = vmatpush1.bf16.msra.mxu0 0
    %1951 = vmatprep.subr.bf16.mxu0 0
    %1952 = vmatpush1.bf16.msra.mxu0 0
    %1953 = vmatprep.subr.bf16.mxu0 0
    %1954 = vmatpush1.bf16.msra.mxu0 0
    %1955 = vmatprep.subr.bf16.mxu0 0
    %1956 = vmatpush1.bf16.msra.mxu0 0
    %1957 = vmatprep.subr.bf16.mxu0 0
    %1958 = vmatpush1.bf16.msra.mxu0 0
    %1959 = vmatprep.subr.bf16.mxu0 0
    %1960 = vmatpush1.bf16.msra.mxu0 0
    %1961 = vmatprep.subr.bf16.mxu0 0
    %1962 = vmatpush1.bf16.msra.mxu0 0
    %1963 = vmatprep.subr.bf16.mxu0 0
    %1964 = vmatpush1.bf16.msra.mxu0 0
    %1965 = vmatprep.mubr.bf16.mxu0 0
    %1966 = vmatmul.mubr.bf16.gmra.mrb[0].mxu0 %v1701
    %v1967 = vpop.f32.mrb[0].mxu0
    %v1968 = vadd.f32 %v1912, %v1967
    %v1969 = vpop.f32.mrb[0].mxu0
    %v1970 = vpop.f32.mrb[0].mxu0
    %v1971 = vadd.f32 %v1915, %v1970
    %v1972 = vpop.f32.mrb[0].mxu0
    %1973 = vmatprep.mubr.bf16.mxu0 0
    %1974 = vmatmul.mubr.bf16.gmra.mrb[0].mxu0 %v1717
    %v1975 = vpop.f32.mrb[0].mxu0
    %v1976 = vadd.f32 %v1920, %v1975
    %v1977 = vpop.f32.mrb[0].mxu0
    %v1978 = vpop.f32.mrb[0].mxu0
    %v1979 = vadd.f32 %v1923, %v1978
    %v1980 = vpop.f32.mrb[0].mxu0
    %1981 = vmatprep.mubr.bf16.mxu0 0
    %1982 = vmatmul.mubr.bf16.gmra.mrb[0].mxu0 %v1723
    %v1983 = vpop.f32.mrb[0].mxu0
    %v1984 = vadd.f32 %v1928, %v1983
    %v1985 = vpop.f32.mrb[0].mxu0
    %v1986 = vpop.f32.mrb[0].mxu0
    %v1987 = vpop.f32.mrb[0].mxu0
    %1988 = vdwg.mxu0
    %v1989 = vmul.f32 %v1968, %v316
    %v1990 = vmul.f32 %v1971, %v321
    %v1991 = vmul.f32 %v1976, %v326
    %v1992 = vmul.f32 %v1979, %v331
    %v1993 = vmul.f32 %v1984, %v336
    %v1994 = vadd.f32 %v1989, %v1990
    %v1995 = vadd.f32 %v1994, %v1991
    %v1996 = vadd.f32 %v1995, %v1992
    %v1997 = vsel %vm823, %v1993, 0.0
    %v1998 = vadd.f32 %v1996, %v1997
    %v1999 = vrot.slane %v1998, 4
    %v2000 = vadd.f32 %v1998, %v1999
    %v2001 = vrot.slane %v2000, 2
    %v2002 = vadd.f32 %v2000, %v2001
    %v2003 = vrot.slane %v2002, 1
    %v2004 = vadd.f32 %v2002, %v2003
    %2005 = vrot.lane.b32.xlu0 %v2004, 8
    %v2006 = vpop.permute.xlu0 %2005
    %v2007 = vadd.f32 %v2004, %v2006
    %2008 = vrot.lane.b32.xlu0 %v2007, 16
    %v2009 = vpop.permute.xlu0 %2008
    %v2010 = vadd.f32 %v2007, %v2009
    %2011 = vrot.lane.b32.xlu0 %v2010, 32
    %v2012 = vpop.permute.xlu0 %2011
    %v2013 = vadd.f32 %v2010, %v2012
    %2014 = vrot.lane.b32.xlu0 %v2013, 64
    %v2015 = vpop.permute.xlu0 %2014
    %v2016 = vadd.f32 %v2013, %v2015
    %v2017 = vmul.f32 %v2016, 0.001953125
    %v2018 = vlaneseq
    %v2019 = vshrl.u32 %v2018, 7
    %v2020 = vsub.s32 0, %v2019
    %v2021 = vrot.slane %v2017, %v2020
    %v2022 = vsub.f32 %v1989, %v2021
    %v2023 = vsub.f32 %v1990, %v2021
    %v2024 = vsub.f32 %v1991, %v2021
    %v2025 = vsub.f32 %v1992, %v2021
    %v2026 = vsub.f32 %v1993, %v2021
    %v2027 = vmul.f32 %v2022, %v316
    %v2028 = vmul.f32 %v2023, %v321
    %v2029 = vmul.f32 %v2024, %v326
    %v2030 = vmul.f32 %v2025, %v331
    %v2031 = vmul.f32 %v2026, %v336
    %v2032 = vmul.f32 %v2027, %v2027
    %v2033 = vmul.f32 %v2028, %v2028
    %v2034 = vmul.f32 %v2029, %v2029
    %v2035 = vmul.f32 %v2030, %v2030
    %v2036 = vmul.f32 %v2031, %v2031
    %v2037 = vadd.f32 %v2032, %v2033
    %v2038 = vadd.f32 %v2037, %v2034
    %v2039 = vadd.f32 %v2038, %v2035
    %v2040 = vsel %vm823, %v2036, 0.0
    %v2041 = vadd.f32 %v2039, %v2040
    %v2042 = vrot.slane %v2041, 4
    %v2043 = vadd.f32 %v2041, %v2042
    %v2044 = vrot.slane %v2043, 2
    %v2045 = vadd.f32 %v2043, %v2044
    %v2046 = vrot.slane %v2045, 1
    %v2047 = vadd.f32 %v2045, %v2046
    %2048 = vrot.lane.b32.xlu0 %v2047, 8
    %v2049 = vpop.permute.xlu0 %2048
    %v2050 = vadd.f32 %v2047, %v2049
    %2051 = vrot.lane.b32.xlu0 %v2050, 16
    %v2052 = vpop.permute.xlu0 %2051
    %v2053 = vadd.f32 %v2050, %v2052
    %2054 = vrot.lane.b32.xlu0 %v2053, 32
    %v2055 = vpop.permute.xlu0 %2054
    %v2056 = vadd.f32 %v2053, %v2055
    %2057 = vrot.lane.b32.xlu0 %v2056, 64
    %v2058 = vpop.permute.xlu0 %2057
    %v2059 = vadd.f32 %v2056, %v2058
    %v2060 = vmul.f32 %v2059, 0.001953125
    %v2061 = vadd.f32 %v2060, 1e-05
    %v2062 = vrsqrt.pop %v2061
    %v2063 = vlaneseq
    %v2064 = vshrl.u32 %v2063, 7
    %v2065 = vsub.s32 0, %v2064
    %v2066 = vrot.slane %v2062, %v2065
    %v2067 = vmul.f32 %v2027, %v2066
    %v2068 = vmul.f32 %v2028, %v2066
    %v2069 = vmul.f32 %v2029, %v2066
    %v2070 = vmul.f32 %v2030, %v2066
    %v2071 = vmul.f32 %v2031, %v2066
    %v2072 = vld [vmem:[%s14] sm:$0x1]
    %v2074 = vlaneseq
    %v2075 = vshrl.u32 %v2074, 7
    %v2076 = vsub.s32 0, %v2075
    %v2077 = vrot.slane %v2072, %v2076
    %v2079 = vmul.f32 %v2067, %v2077
    %v2080 = vmul.f32 %v2068, %v2077
    %v2081 = vmul.f32 %v2069, %v2077
    %v2082 = vmul.f32 %v2070, %v2077
    %v2083 = vmul.f32 %v2071, %v2077
    %v2084 = vld [vmem:[%s15] sm:$0x1]
    %v2086 = vlaneseq
    %v2087 = vshrl.u32 %v2086, 7
    %v2088 = vsub.s32 0, %v2087
    %v2089 = vrot.slane %v2084, %v2088
    %v2091 = vadd.f32 %v2079, %v2089
    %v2092 = vadd.f32 %v2080, %v2089
    %v2093 = vadd.f32 %v2081, %v2089
    %v2094 = vadd.f32 %v2082, %v2089
    %v2095 = vadd.f32 %v2083, %v2089
    %v2096 = vmax.f32 %v2091, 0.0
    %v2097 = vmax.f32 %v2092, 0.0
    %v2098 = vmax.f32 %v2093, 0.0
    %v2099 = vmax.f32 %v2094, 0.0
    %v2100 = vmax.f32 %v2095, 0.0
    %v2101 = vmul.f32 %v2096, %v316
    %v2102 = vmul.f32 %v2097, %v321
    %v2103 = vmul.f32 %v2098, %v326
    %v2104 = vmul.f32 %v2099, %v331
    %v2105 = vmul.f32 %v2100, %v336
    %v2106 = vpack.c.bf16 %v2102, %v2101
    %v2107 = vpack.c.bf16 %v2104, %v2103
    %v2108 = vpack.c.bf16 %v2105, %v2105
    %v2112 = vunpack.c.l.b16 %v2106
    %v2113 = vunpack.c.h.b16 %v2106
    %v2114 = vunpack.c.l.b16 %v2107
    %v2115 = vunpack.c.h.b16 %v2107
    %v2116 = vunpack.c.l.b16 %v2108
    %v2117 = vpack.c.b16 %v2112, %v2112
    %v2118 = vpack.c.b16 %v2113, %v2113
    %v2119 = vpack.c.b16 %v2114, %v2114
    %v2120 = vpack.c.b16 %v2115, %v2115
    %v2121 = vpack.c.b16 %v2116, %v2116
    %v2122 = vrot.slane %v2117, 7
    %v2123 = vrot.slane %v2122, 4
    %v2124 = vrot.slane %v2118, 7
    %v2125 = vsel %vm361, %v2123, %v2124
    %v2126 = vrot.slane %v2124, 4
    %v2127 = vrot.slane %v2119, 7
    %v2128 = vsel %vm361, %v2126, %v2127
    %v2129 = vrot.slane %v2127, 4
    %v2130 = vrot.slane %v2120, 7
    %v2131 = vsel %vm361, %v2129, %v2130
    %v2132 = vrot.slane %v2130, 4
    %v2133 = vrot.slane %v2121, 7
    %v2134 = vsel %vm361, %v2132, %v2133
    %2140 = vst [vmem:[#allocation2] sm:$0xe] %v2122
    %2141 = vst [vmem:[#allocation2 + $0x4] sm:$0xf] %v2125
    %2142 = vst [vmem:[#allocation2 + $0x8] sm:$0xf] %v2128
    %2143 = vst [vmem:[#allocation2 + $0xc] sm:$0xf] %v2131
    %2144 = vst [vmem:[#allocation2 + $0x10] sm:$0x7] %v2134
    %v2145 = vld [vmem:[#allocation2] sm:$0xf]
    %v2146 = vld [vmem:[#allocation2 + $0x4] sm:$0xf]
    %v2147 = vld [vmem:[#allocation2 + $0x8] sm:$0xf]
    %v2148 = vld [vmem:[#allocation2 + $0xc] sm:$0xf]
    %v2149 = vld [vmem:[#allocation2 + $0x10] sm:$0x7]
    %v2150 = vld [vmem:[#allocation2] sm:$0xe]
    %v2151 = vld [vmem:[#allocation2 + $0x10] sm:$0xf]
    %v2157 = vunpack.c.l.b16 %v2145
    %v2158 = vunpack.c.l.b16 %v2146
    %v2159 = vunpack.c.l.b16 %v2147
    %v2160 = vunpack.c.l.b16 %v2148
    %v2161 = vunpack.c.l.b16 %v2149
    %v2162 = vpack.c.b16 %v2158, %v2157
    %v2163 = vpack.c.b16 %v2160, %v2159
    %v2164 = vpack.c.b16 %v2161, %v2161
    %v2166 = vunpack.c.l.b16 %v2150
    %v2167 = vpack.c.b16 %v2158, %v2166
    %v2169 = vshrl.u32 %v2167, 16
    %v2171 = vshll.u32 %v2167, 16
    %v2173 = vrot.slane %v2171, 1
    %v2174 = vor.u32 %v2169, %v2173
    %v2176 = vshll.u32 %v2163, 16
    %v2178 = vrot.slane %v2176, 1
    %v2179 = vsel %vm408, %v2174, %v2178
    %v2180 = vshrl.u32 %v2163, 16
    %v2182 = vor.u32 %v2180, %v2178
    %v2184 = vshll.u32 %v2164, 16
    %v2186 = vrot.slane %v2184, 1
    %v2187 = vsel %vm408, %v2182, %v2186
    %v2188 = vshrl.u32 %v2164, 16
    %v2190 = vor.u32 %v2188, %v2186
    %v2192 = vunpack.c.l.b16 %v2151
    %v2193 = vpack.c.b16 %v2192, %v2192
    %v2194 = vrot.slane %v2167, 1
    %v2195 = vrot.slane %v2163, 1
    %v2196 = vsel %vm435, %v2194, %v2195
    %v2197 = vrot.slane %v2193, 1
    %v2198 = vsel %vm435, %v2195, %v2197
    %v2199 = vld [vmem:[#allocation11] sm:$0xf]
    %v2200 = vld [vmem:[#allocation11 + $0x4] sm:$0xf]
    %v2201 = vld [vmem:[#allocation11 + $0x8] sm:$0xf]
    %v2202 = vld [vmem:[#allocation11 + $0xc] sm:$0xf]
    %v2203 = vld [vmem:[#allocation11 + $0x10] sm:$0xf]
    %v2204 = vld [vmem:[#allocation11 + $0x14] sm:$0xf]
    %v2205 = vld [vmem:[#allocation11 + $0x18] sm:$0xf]
    %v2206 = vld [vmem:[#allocation11 + $0x1c] sm:$0xf]
    %v2207 = vld [vmem:[#allocation11 + $0x20] sm:$0xf]
    %v2208 = vld [vmem:[#allocation11 + $0x24] sm:$0xf]
    %v2209 = vld [vmem:[#allocation11 + $0x28] sm:$0xf]
    %v2210 = vld [vmem:[#allocation11 + $0x2c] sm:$0xf]
    %v2211 = vld [vmem:[#allocation11 + $0x30] sm:$0xf]
    %v2212 = vld [vmem:[#allocation11 + $0x34] sm:$0xf]
    %v2213 = vld [vmem:[#allocation11 + $0x38] sm:$0xf]
    %v2214 = vld [vmem:[#allocation11 + $0x3c] sm:$0xf]
    %v2215 = vld [vmem:[#allocation11 + $0x40] sm:$0xf]
    %v2216 = vld [vmem:[#allocation11 + $0x44] sm:$0xf]
    %v2217 = vld [vmem:[#allocation11 + $0x48] sm:$0xf]
    %v2218 = vld [vmem:[#allocation11 + $0x4c] sm:$0xf]
    %v2219 = vld [vmem:[#allocation11 + $0x50] sm:$0xf]
    %v2220 = vld [vmem:[#allocation11 + $0x54] sm:$0xf]
    %v2221 = vld [vmem:[#allocation11 + $0x58] sm:$0xf]
    %v2222 = vld [vmem:[#allocation11 + $0x5c] sm:$0xf]
    %v2223 = vld [vmem:[#allocation11 + $0x60] sm:$0xf]
    %v2224 = vld [vmem:[#allocation11 + $0x64] sm:$0xf]
    %v2225 = vld [vmem:[#allocation11 + $0x68] sm:$0xf]
    %v2226 = vld [vmem:[#allocation11 + $0x6c] sm:$0xf]
    %v2227 = vld [vmem:[#allocation11 + $0x70] sm:$0xf]
    %v2228 = vld [vmem:[#allocation11 + $0x74] sm:$0xf]
    %v2229 = vld [vmem:[#allocation11 + $0x78] sm:$0xf]
    %v2230 = vld [vmem:[#allocation11 + $0x7c] sm:$0xf]
    %v2231 = vld [vmem:[#allocation11 + $0x80] sm:$0xf]
    %v2232 = vld [vmem:[#allocation11 + $0x84] sm:$0xf]
    %v2233 = vld [vmem:[#allocation11 + $0x88] sm:$0xf]
    %v2234 = vld [vmem:[#allocation11 + $0x8c] sm:$0xf]
    %v2235 = vld [vmem:[#allocation11 + $0x90] sm:$0xf]
    %v2236 = vld [vmem:[#allocation11 + $0x94] sm:$0xf]
    %v2237 = vld [vmem:[#allocation11 + $0x98] sm:$0xf]
    %v2238 = vld [vmem:[#allocation11 + $0x9c] sm:$0xf]
    %v2239 = vld [vmem:[#allocation11 + $0xa0] sm:$0xf]
    %v2240 = vld [vmem:[#allocation11 + $0xa4] sm:$0xf]
    %v2241 = vld [vmem:[#allocation11 + $0xa8] sm:$0xf]
    %v2242 = vld [vmem:[#allocation11 + $0xac] sm:$0xf]
    %v2243 = vld [vmem:[#allocation11 + $0xb0] sm:$0xf]
    %v2244 = vld [vmem:[#allocation11 + $0xb4] sm:$0xf]
    %v2245 = vld [vmem:[#allocation11 + $0xb8] sm:$0xf]
    %v2246 = vld [vmem:[#allocation11 + $0xbc] sm:$0xf]
    %v2247 = vld [vmem:[%s17] sm:$0x1]
    %v2249 = vlaneseq
    %v2250 = vshrl.u32 %v2249, 7
    %v2251 = vsub.s32 0, %v2250
    %v2252 = vrot.slane %v2247, %v2251
    %v2255 = vshrl.u32 %v2162, 16
    %v2257 = vshll.u32 %v2162, 16
    %v2259 = vrot.slane %v2257, 1
    %v2260 = vor.u32 %v2255, %v2259
    %v2261 = vsel %vm408, %v2260, %v2178
    %v2263 = vshrl.u32 %v2179, 16
    %v2265 = vshll.u32 %v2179, 16
    %v2267 = vrot.slane %v2265, 1
    %v2268 = vor.u32 %v2263, %v2267
    %v2270 = vshll.u32 %v2187, 16
    %v2272 = vrot.slane %v2270, 1
    %v2273 = vsel %vm408, %v2268, %v2272
    %v2275 = vshrl.u32 %v2196, 16
    %v2277 = vshll.u32 %v2196, 16
    %v2279 = vrot.slane %v2277, 1
    %v2280 = vor.u32 %v2275, %v2279
    %v2282 = vshll.u32 %v2198, 16
    %v2284 = vrot.slane %v2282, 1
    %v2285 = vsel %vm408, %v2280, %v2284
    %v2286 = vshrl.u32 %v2187, 16
    %v2288 = vor.u32 %v2286, %v2272
    %v2290 = vshll.u32 %v2190, 16
    %v2292 = vrot.slane %v2290, 1
    %v2293 = vsel %vm408, %v2288, %v2292
    %v2294 = vshrl.u32 %v2198, 16
    %v2296 = vor.u32 %v2294, %v2284
    %v2298 = vshll.u32 %v2197, 16
    %v2300 = vrot.slane %v2298, 1
    %v2301 = vsel %vm408, %v2296, %v2300
    %v2302 = vshrl.u32 %v2190, 16
    %v2304 = vor.u32 %v2302, %v2292
    %v2305 = vshrl.u32 %v2197, 16
    %v2307 = vor.u32 %v2305, %v2300
    %v2365 = vunpack.c.l.b16 %v2199
    %v2366 = vunpack.c.l.b16 %v2200
    %v2367 = vunpack.c.l.b16 %v2201
    %v2368 = vunpack.c.l.b16 %v2202
    %v2369 = vunpack.c.l.b16 %v2203
    %v2370 = vunpack.c.l.b16 %v2204
    %v2371 = vunpack.c.l.b16 %v2205
    %v2372 = vunpack.c.l.b16 %v2206
    %v2373 = vunpack.c.l.b16 %v2207
    %v2374 = vunpack.c.l.b16 %v2208
    %v2375 = vunpack.c.l.b16 %v2209
    %v2376 = vunpack.c.l.b16 %v2210
    %v2377 = vunpack.c.l.b16 %v2211
    %v2378 = vunpack.c.l.b16 %v2212
    %v2379 = vunpack.c.l.b16 %v2213
    %v2380 = vunpack.c.l.b16 %v2214
    %v2381 = vunpack.c.l.b16 %v2215
    %v2382 = vunpack.c.l.b16 %v2216
    %v2383 = vunpack.c.l.b16 %v2217
    %v2384 = vunpack.c.l.b16 %v2218
    %v2385 = vunpack.c.l.b16 %v2219
    %v2386 = vunpack.c.l.b16 %v2220
    %v2387 = vunpack.c.l.b16 %v2221
    %v2388 = vunpack.c.l.b16 %v2222
    %v2389 = vunpack.c.l.b16 %v2223
    %v2390 = vunpack.c.l.b16 %v2224
    %v2391 = vunpack.c.l.b16 %v2225
    %v2392 = vunpack.c.l.b16 %v2226
    %v2393 = vunpack.c.l.b16 %v2227
    %v2394 = vunpack.c.l.b16 %v2228
    %v2395 = vunpack.c.l.b16 %v2229
    %v2396 = vunpack.c.l.b16 %v2230
    %v2397 = vunpack.c.l.b16 %v2231
    %v2398 = vunpack.c.l.b16 %v2232
    %v2399 = vunpack.c.l.b16 %v2233
    %v2400 = vunpack.c.l.b16 %v2234
    %v2401 = vunpack.c.l.b16 %v2235
    %v2402 = vunpack.c.l.b16 %v2236
    %v2403 = vunpack.c.l.b16 %v2237
    %v2404 = vunpack.c.l.b16 %v2238
    %v2405 = vunpack.c.l.b16 %v2239
    %v2406 = vunpack.c.l.b16 %v2240
    %v2407 = vunpack.c.l.b16 %v2241
    %v2408 = vunpack.c.l.b16 %v2242
    %v2409 = vunpack.c.l.b16 %v2243
    %v2410 = vunpack.c.l.b16 %v2244
    %v2411 = vunpack.c.l.b16 %v2245
    %v2412 = vunpack.c.l.b16 %v2246
    %v2413 = vpack.c.b16 %v2366, %v2365
    %v2414 = vpack.c.b16 %v2368, %v2367
    %v2415 = vpack.c.b16 %v2370, %v2369
    %v2416 = vpack.c.b16 %v2372, %v2371
    %v2417 = vpack.c.b16 %v2374, %v2373
    %v2418 = vpack.c.b16 %v2376, %v2375
    %v2419 = vpack.c.b16 %v2378, %v2377
    %v2420 = vpack.c.b16 %v2380, %v2379
    %v2421 = vpack.c.b16 %v2382, %v2381
    %v2422 = vpack.c.b16 %v2384, %v2383
    %v2423 = vpack.c.b16 %v2386, %v2385
    %v2424 = vpack.c.b16 %v2388, %v2387
    %v2425 = vpack.c.b16 %v2390, %v2389
    %v2426 = vpack.c.b16 %v2392, %v2391
    %v2427 = vpack.c.b16 %v2394, %v2393
    %v2428 = vpack.c.b16 %v2396, %v2395
    %v2429 = vpack.c.b16 %v2398, %v2397
    %v2430 = vpack.c.b16 %v2400, %v2399
    %v2431 = vpack.c.b16 %v2402, %v2401
    %v2432 = vpack.c.b16 %v2404, %v2403
    %v2433 = vpack.c.b16 %v2406, %v2405
    %v2434 = vpack.c.b16 %v2408, %v2407
    %v2435 = vpack.c.b16 %v2410, %v2409
    %v2436 = vpack.c.b16 %v2412, %v2411
    %2461 = vmatprep.subr.bf16.mxu0 0
    %2462 = vmatpush1.bf16.msra.mxu0 %v2413
    %2463 = vmatprep.subr.bf16.mxu0 0
    %2464 = vmatpush1.bf16.msra.mxu0 %v2414
    %2465 = vmatprep.subr.bf16.mxu0 0
    %2466 = vmatpush1.bf16.msra.mxu0 %v2415
    %2467 = vmatprep.subr.bf16.mxu0 0
    %2468 = vmatpush1.bf16.msra.mxu0 %v2416
    %2469 = vmatprep.subr.bf16.mxu0 0
    %2470 = vmatpush1.bf16.msra.mxu0 %v2417
    %2471 = vmatprep.subr.bf16.mxu0 0
    %2472 = vmatpush1.bf16.msra.mxu0 %v2418
    %2473 = vmatprep.subr.bf16.mxu0 0
    %2474 = vmatpush1.bf16.msra.mxu0 %v2419
    %2475 = vmatprep.subr.bf16.mxu0 0
    %2476 = vmatpush1.bf16.msra.mxu0 %v2420
    %2477 = vmatprep.subr.bf16.mxu0 0
    %2478 = vmatpush1.bf16.msra.mxu0 %v2421
    %2479 = vmatprep.subr.bf16.mxu0 0
    %2480 = vmatpush1.bf16.msra.mxu0 %v2422
    %2481 = vmatprep.subr.bf16.mxu0 0
    %2482 = vmatpush1.bf16.msra.mxu0 %v2423
    %2483 = vmatprep.subr.bf16.mxu0 0
    %2484 = vmatpush1.bf16.msra.mxu0 %v2424
    %2485 = vmatprep.subr.bf16.mxu0 0
    %2486 = vmatpush1.bf16.msra.mxu0 %v2425
    %2487 = vmatprep.subr.bf16.mxu0 0
    %2488 = vmatpush1.bf16.msra.mxu0 %v2426
    %2489 = vmatprep.subr.bf16.mxu0 0
    %2490 = vmatpush1.bf16.msra.mxu0 %v2427
    %2491 = vmatprep.subr.bf16.mxu0 0
    %2492 = vmatpush1.bf16.msra.mxu0 %v2428
    %2493 = vmatprep.mubr.bf16.mxu0 %v2273
    %2494 = vmatmul.mubr.bf16.gmra.mrb[0].mxu0 %v2261
    %v2495 = vpop.f32.mrb[0].mxu0
    %v2496 = vadd.f32 %v2252, %v2495
    %v2497 = vpop.f32.mrb[0].mxu0
    %v2498 = vpop.f32.mrb[0].mxu0
    %v2499 = vadd.f32 %v2252, %v2498
    %v2500 = vpop.f32.mrb[0].mxu0
    %2501 = vmatprep.mubr.bf16.mxu0 %v2293
    %2502 = vmatmul.mubr.bf16.gmra.mrb[0].mxu0 %v2187
    %v2503 = vpop.f32.mrb[0].mxu0
    %v2504 = vadd.f32 %v2252, %v2503
    %v2505 = vpop.f32.mrb[0].mxu0
    %v2506 = vpop.f32.mrb[0].mxu0
    %v2507 = vadd.f32 %v2252, %v2506
    %v2508 = vpop.f32.mrb[0].mxu0
    %2509 = vmatprep.mubr.bf16.mxu0 %v2304
    %2510 = vmatmul.mubr.bf16.gmra.mrb[0].mxu0 %v2190
    %v2511 = vpop.f32.mrb[0].mxu0
    %v2512 = vadd.f32 %v2252, %v2511
    %v2513 = vpop.f32.mrb[0].mxu0
    %v2514 = vpop.f32.mrb[0].mxu0
    %v2515 = vpop.f32.mrb[0].mxu0
    %2516 = vdwg.mxu0
    %2517 = vmatprep.subr.bf16.mxu0 0
    %2518 = vmatpush1.bf16.msra.mxu0 %v2429
    %2519 = vmatprep.subr.bf16.mxu0 0
    %2520 = vmatpush1.bf16.msra.mxu0 %v2430
    %2521 = vmatprep.subr.bf16.mxu0 0
    %2522 = vmatpush1.bf16.msra.mxu0 %v2431
    %2523 = vmatprep.subr.bf16.mxu0 0
    %2524 = vmatpush1.bf16.msra.mxu0 %v2432
    %2525 = vmatprep.subr.bf16.mxu0 0
    %2526 = vmatpush1.bf16.msra.mxu0 %v2433
    %2527 = vmatprep.subr.bf16.mxu0 0
    %2528 = vmatpush1.bf16.msra.mxu0 %v2434
    %2529 = vmatprep.subr.bf16.mxu0 0
    %2530 = vmatpush1.bf16.msra.mxu0 %v2435
    %2531 = vmatprep.subr.bf16.mxu0 0
    %2532 = vmatpush1.bf16.msra.mxu0 %v2436
    %2533 = vmatprep.subr.bf16.mxu0 0
    %2534 = vmatpush1.bf16.msra.mxu0 0
    %2535 = vmatprep.subr.bf16.mxu0 0
    %2536 = vmatpush1.bf16.msra.mxu0 0
    %2537 = vmatprep.subr.bf16.mxu0 0
    %2538 = vmatpush1.bf16.msra.mxu0 0
    %2539 = vmatprep.subr.bf16.mxu0 0
    %2540 = vmatpush1.bf16.msra.mxu0 0
    %2541 = vmatprep.subr.bf16.mxu0 0
    %2542 = vmatpush1.bf16.msra.mxu0 0
    %2543 = vmatprep.subr.bf16.mxu0 0
    %2544 = vmatpush1.bf16.msra.mxu0 0
    %2545 = vmatprep.subr.bf16.mxu0 0
    %2546 = vmatpush1.bf16.msra.mxu0 0
    %2547 = vmatprep.subr.bf16.mxu0 0
    %2548 = vmatpush1.bf16.msra.mxu0 0
    %2549 = vmatprep.mubr.bf16.mxu0 0
    %2550 = vmatmul.mubr.bf16.gmra.mrb[0].mxu0 %v2285
    %v2551 = vpop.f32.mrb[0].mxu0
    %v2552 = vadd.f32 %v2496, %v2551
    %v2553 = vpop.f32.mrb[0].mxu0
    %v2554 = vpop.f32.mrb[0].mxu0
    %v2555 = vadd.f32 %v2499, %v2554
    %v2556 = vpop.f32.mrb[0].mxu0
    %2557 = vmatprep.mubr.bf16.mxu0 0
    %2558 = vmatmul.mubr.bf16.gmra.mrb[0].mxu0 %v2301
    %v2559 = vpop.f32.mrb[0].mxu0
    %v2560 = vadd.f32 %v2504, %v2559
    %v2561 = vpop.f32.mrb[0].mxu0
    %v2562 = vpop.f32.mrb[0].mxu0
    %v2563 = vadd.f32 %v2507, %v2562
    %v2564 = vpop.f32.mrb[0].mxu0
    %2565 = vmatprep.mubr.bf16.mxu0 0
    %2566 = vmatmul.mubr.bf16.gmra.mrb[0].mxu0 %v2307
    %v2567 = vpop.f32.mrb[0].mxu0
    %v2568 = vadd.f32 %v2512, %v2567
    %v2569 = vpop.f32.mrb[0].mxu0
    %v2570 = vpop.f32.mrb[0].mxu0
    %v2571 = vpop.f32.mrb[0].mxu0
    %2572 = vdwg.mxu0
    %v2573 = vmul.f32 %v2552, %v316
    %v2574 = vmul.f32 %v2555, %v321
    %v2575 = vmul.f32 %v2560, %v326
    %v2576 = vmul.f32 %v2563, %v331
    %v2577 = vmul.f32 %v2568, %v336
    %v2578 = vadd.f32 %v2573, %v2574
    %v2579 = vadd.f32 %v2578, %v2575
    %v2580 = vadd.f32 %v2579, %v2576
    %v2581 = vsel %vm823, %v2577, 0.0
    %v2582 = vadd.f32 %v2580, %v2581
    %v2583 = vrot.slane %v2582, 4
    %v2584 = vadd.f32 %v2582, %v2583
    %v2585 = vrot.slane %v2584, 2
    %v2586 = vadd.f32 %v2584, %v2585
    %v2587 = vrot.slane %v2586, 1
    %v2588 = vadd.f32 %v2586, %v2587
    %2589 = vrot.lane.b32.xlu0 %v2588, 8
    %v2590 = vpop.permute.xlu0 %2589
    %v2591 = vadd.f32 %v2588, %v2590
    %2592 = vrot.lane.b32.xlu0 %v2591, 16
    %v2593 = vpop.permute.xlu0 %2592
    %v2594 = vadd.f32 %v2591, %v2593
    %2595 = vrot.lane.b32.xlu0 %v2594, 32
    %v2596 = vpop.permute.xlu0 %2595
    %v2597 = vadd.f32 %v2594, %v2596
    %2598 = vrot.lane.b32.xlu0 %v2597, 64
    %v2599 = vpop.permute.xlu0 %2598
    %v2600 = vadd.f32 %v2597, %v2599
    %v2601 = vmul.f32 %v2600, 0.001953125
    %v2602 = vlaneseq
    %v2603 = vshrl.u32 %v2602, 7
    %v2604 = vsub.s32 0, %v2603
    %v2605 = vrot.slane %v2601, %v2604
    %v2606 = vsub.f32 %v2573, %v2605
    %v2607 = vsub.f32 %v2574, %v2605
    %v2608 = vsub.f32 %v2575, %v2605
    %v2609 = vsub.f32 %v2576, %v2605
    %v2610 = vsub.f32 %v2577, %v2605
    %v2611 = vmul.f32 %v2606, %v316
    %v2612 = vmul.f32 %v2607, %v321
    %v2613 = vmul.f32 %v2608, %v326
    %v2614 = vmul.f32 %v2609, %v331
    %v2615 = vmul.f32 %v2610, %v336
    %v2616 = vmul.f32 %v2611, %v2611
    %v2617 = vmul.f32 %v2612, %v2612
    %v2618 = vmul.f32 %v2613, %v2613
    %v2619 = vmul.f32 %v2614, %v2614
    %v2620 = vmul.f32 %v2615, %v2615
    %v2621 = vadd.f32 %v2616, %v2617
    %v2622 = vadd.f32 %v2621, %v2618
    %v2623 = vadd.f32 %v2622, %v2619
    %v2624 = vsel %vm823, %v2620, 0.0
    %v2625 = vadd.f32 %v2623, %v2624
    %v2626 = vrot.slane %v2625, 4
    %v2627 = vadd.f32 %v2625, %v2626
    %v2628 = vrot.slane %v2627, 2
    %v2629 = vadd.f32 %v2627, %v2628
    %v2630 = vrot.slane %v2629, 1
    %v2631 = vadd.f32 %v2629, %v2630
    %2632 = vrot.lane.b32.xlu0 %v2631, 8
    %v2633 = vpop.permute.xlu0 %2632
    %v2634 = vadd.f32 %v2631, %v2633
    %2635 = vrot.lane.b32.xlu0 %v2634, 16
    %v2636 = vpop.permute.xlu0 %2635
    %v2637 = vadd.f32 %v2634, %v2636
    %2638 = vrot.lane.b32.xlu0 %v2637, 32
    %v2639 = vpop.permute.xlu0 %2638
    %v2640 = vadd.f32 %v2637, %v2639
    %2641 = vrot.lane.b32.xlu0 %v2640, 64
    %v2642 = vpop.permute.xlu0 %2641
    %v2643 = vadd.f32 %v2640, %v2642
    %v2644 = vmul.f32 %v2643, 0.001953125
    %v2645 = vadd.f32 %v2644, 1e-05
    %v2646 = vrsqrt.pop %v2645
    %v2647 = vlaneseq
    %v2648 = vshrl.u32 %v2647, 7
    %v2649 = vsub.s32 0, %v2648
    %v2650 = vrot.slane %v2646, %v2649
    %v2651 = vmul.f32 %v2611, %v2650
    %v2652 = vmul.f32 %v2612, %v2650
    %v2653 = vmul.f32 %v2613, %v2650
    %v2654 = vmul.f32 %v2614, %v2650
    %v2655 = vmul.f32 %v2615, %v2650
    %v2656 = vld [vmem:[%s18] sm:$0x1]
    %v2658 = vlaneseq
    %v2659 = vshrl.u32 %v2658, 7
    %v2660 = vsub.s32 0, %v2659
    %v2661 = vrot.slane %v2656, %v2660
    %v2663 = vmul.f32 %v2651, %v2661
    %v2664 = vmul.f32 %v2652, %v2661
    %v2665 = vmul.f32 %v2653, %v2661
    %v2666 = vmul.f32 %v2654, %v2661
    %v2667 = vmul.f32 %v2655, %v2661
    %v2668 = vld [vmem:[%s19] sm:$0x1]
    %v2670 = vlaneseq
    %v2671 = vshrl.u32 %v2670, 7
    %v2672 = vsub.s32 0, %v2671
    %v2673 = vrot.slane %v2668, %v2672
    %v2675 = vadd.f32 %v2663, %v2673
    %v2676 = vadd.f32 %v2664, %v2673
    %v2677 = vadd.f32 %v2665, %v2673
    %v2678 = vadd.f32 %v2666, %v2673
    %v2679 = vadd.f32 %v2667, %v2673
    %v2680 = vmax.f32 %v2675, 0.0
    %v2681 = vmax.f32 %v2676, 0.0
    %v2682 = vmax.f32 %v2677, 0.0
    %v2683 = vmax.f32 %v2678, 0.0
    %v2684 = vmax.f32 %v2679, 0.0
    %v2685 = vmul.f32 %v2680, %v316
    %v2686 = vmul.f32 %v2681, %v321
    %v2687 = vmul.f32 %v2682, %v326
    %v2688 = vmul.f32 %v2683, %v331
    %v2689 = vmul.f32 %v2684, %v336
    %v2690 = vadd.f32 %v1517, %v2685
    %v2691 = vadd.f32 %v1518, %v2686
    %v2692 = vadd.f32 %v1519, %v2687
    %v2693 = vadd.f32 %v1520, %v2688
    %v2694 = vadd.f32 %v1521, %v2689
    %v2695 = vpack.c.bf16 %v2691, %v2690
    %v2696 = vpack.c.bf16 %v2693, %v2692
    %v2697 = vpack.c.bf16 %v2694, %v2694
    %v2701 = vunpack.c.l.b16 %v2695
    %v2702 = vunpack.c.h.b16 %v2695
    %v2703 = vunpack.c.l.b16 %v2696
    %v2704 = vunpack.c.h.b16 %v2696
    %v2705 = vunpack.c.l.b16 %v2697
    %v2706 = vpack.c.b16 %v2701, %v2701
    %v2707 = vpack.c.b16 %v2702, %v2702
    %v2708 = vpack.c.b16 %v2703, %v2703
    %v2709 = vpack.c.b16 %v2704, %v2704
    %v2710 = vpack.c.b16 %v2705, %v2705
    %v2711 = vrot.slane %v2706, 7
    %v2712 = vrot.slane %v2711, 4
    %v2713 = vrot.slane %v2707, 7
    %v2714 = vsel %vm361, %v2712, %v2713
    %v2715 = vrot.slane %v2713, 4
    %v2716 = vrot.slane %v2708, 7
    %v2717 = vsel %vm361, %v2715, %v2716
    %v2718 = vrot.slane %v2716, 4
    %v2719 = vrot.slane %v2709, 7
    %v2720 = vsel %vm361, %v2718, %v2719
    %v2721 = vrot.slane %v2719, 4
    %v2722 = vrot.slane %v2710, 7
    %v2723 = vsel %vm361, %v2721, %v2722
    %2729 = vst [vmem:[#allocation2] sm:$0xe] %v2711
    %2730 = vst [vmem:[#allocation2 + $0x4] sm:$0xf] %v2714
    %2731 = vst [vmem:[#allocation2 + $0x8] sm:$0xf] %v2717
    %2732 = vst [vmem:[#allocation2 + $0xc] sm:$0xf] %v2720
    %2733 = vst [vmem:[#allocation2 + $0x10] sm:$0x7] %v2723
    %v2734 = vld [vmem:[#allocation2] sm:$0xf]
    %v2735 = vld [vmem:[#allocation2 + $0x4] sm:$0xf]
    %v2736 = vld [vmem:[#allocation2 + $0x8] sm:$0xf]
    %v2737 = vld [vmem:[#allocation2 + $0xc] sm:$0xf]
    %v2738 = vld [vmem:[#allocation2 + $0x10] sm:$0x3]
    %v2739 = vld [vmem:[#allocation2 + $0x10] sm:$0x7]
    %v2740 = vld [vmem:[#allocation2] sm:$0xe]
    %v2741 = vld [vmem:[#allocation2 + $0x10] sm:$0xf]
    %v2742 = vld [vmem:[#allocation2] sm:$0xc]
    %v2748 = vunpack.c.l.b16 %v2734
    %v2749 = vunpack.c.l.b16 %v2735
    %v2750 = vunpack.c.l.b16 %v2736
    %v2751 = vunpack.c.l.b16 %v2737
    %v2752 = vunpack.c.l.b16 %v2738
    %v2753 = vpack.c.b16 %v2749, %v2748
    %v2754 = vpack.c.b16 %v2751, %v2750
    %v2755 = vpack.c.b16 %v2752, %v2752
    %v2760 = vunpack.c.l.b16 %v2739
    %v2761 = vpack.c.b16 %v2760, %v2760
    %v2763 = vshrl.u32 %v2753, 16
    %v2765 = vshll.u32 %v2753, 16
    %v2767 = vrot.slane %v2765, 1
    %v2768 = vor.u32 %v2763, %v2767
    %v2770 = vshll.u32 %v2754, 16
    %v2772 = vrot.slane %v2770, 1
    %v2773 = vsel %vm408, %v2768, %v2772
    %v2774 = vshrl.u32 %v2754, 16
    %v2776 = vor.u32 %v2774, %v2772
    %v2778 = vshll.u32 %v2761, 16
    %v2780 = vrot.slane %v2778, 1
    %v2781 = vsel %vm408, %v2776, %v2780
    %v2782 = vshrl.u32 %v2761, 16
    %v2784 = vor.u32 %v2782, %v2780
    %v2789 = vunpack.c.l.b16 %v2740
    %v2790 = vpack.c.b16 %v2749, %v2789
    %v2791 = vrot.slane %v2790, 1
    %v2792 = vrot.slane %v2754, 1
    %v2793 = vsel %vm435, %v2791, %v2792
    %v2794 = vrot.slane %v2761, 1
    %v2795 = vsel %vm435, %v2792, %v2794
    %v2800 = vunpack.c.l.b16 %v2741
    %v2801 = vpack.c.b16 %v2800, %v2800
    %vm2802 = vsmask.f32 6400
    %v2804 = vshrl.u32 %v2790, 16
    %v2806 = vrot.slane %v2804, 1
    %v2807 = vshll.u32 %v2790, 16
    %v2809 = vrot.slane %v2807, 2
    %v2810 = vor.u32 %v2806, %v2809
    %v2811 = vrot.slane %v2774, 1
    %v2812 = vrot.slane %v2770, 2
    %v2813 = vor.u32 %v2811, %v2812
    %v2814 = vsel %vm2802, %v2810, %v2813
    %v2816 = vshrl.u32 %v2801, 16
    %v2818 = vrot.slane %v2816, 1
    %v2819 = vshll.u32 %v2801, 16
    %v2821 = vrot.slane %v2819, 2
    %v2822 = vor.u32 %v2818, %v2821
    %v2823 = vsel %vm2802, %v2813, %v2822
    %v2828 = vunpack.c.l.b16 %v2742
    %v2829 = vpack.c.b16 %v2749, %v2828
    %vm2830 = vcmask 1045504
    %v2831 = vrot.slane %v2829, 2
    %v2832 = vrot.slane %v2754, 2
    %v2833 = vsel %vm2830, %v2831, %v2832
    %v2834 = vrot.slane %v2801, 2
    %v2835 = vsel %vm2830, %v2832, %v2834
    %v2839 = vld [vmem:[#allocation12] sm:$0xf]
    %v2840 = vld [vmem:[#allocation12 + $0x4] sm:$0xf]
    %v2841 = vld [vmem:[#allocation12 + $0x8] sm:$0xf]
    %v2842 = vld [vmem:[#allocation12 + $0xc] sm:$0xf]
    %v2843 = vld [vmem:[#allocation12 + $0x10] sm:$0xf]
    %v2844 = vld [vmem:[#allocation12 + $0x14] sm:$0xf]
    %v2845 = vld [vmem:[#allocation12 + $0x18] sm:$0xf]
    %v2846 = vld [vmem:[#allocation12 + $0x1c] sm:$0xf]
    %v2847 = vld [vmem:[#allocation12 + $0x20] sm:$0xf]
    %v2848 = vld [vmem:[#allocation12 + $0x24] sm:$0xf]
    %v2849 = vld [vmem:[#allocation12 + $0x28] sm:$0xf]
    %v2850 = vld [vmem:[#allocation12 + $0x2c] sm:$0xf]
    %v2851 = vld [vmem:[#allocation12 + $0x30] sm:$0xf]
    %v2852 = vld [vmem:[#allocation12 + $0x34] sm:$0xf]
    %v2853 = vld [vmem:[#allocation12 + $0x38] sm:$0xf]
    %v2854 = vld [vmem:[#allocation12 + $0x3c] sm:$0xf]
    %v2855 = vld [vmem:[#allocation12 + $0x40] sm:$0xf]
    %v2856 = vld [vmem:[#allocation12 + $0x44] sm:$0xf]
    %v2857 = vld [vmem:[#allocation12 + $0x48] sm:$0xf]
    %v2858 = vld [vmem:[#allocation12 + $0x4c] sm:$0xf]
    %v2859 = vld [vmem:[#allocation12 + $0x50] sm:$0xf]
    %v2860 = vld [vmem:[#allocation12 + $0x54] sm:$0xf]
    %v2861 = vld [vmem:[#allocation12 + $0x58] sm:$0xf]
    %v2862 = vld [vmem:[#allocation12 + $0x5c] sm:$0xf]
    %v2863 = vld [vmem:[#allocation12 + $0x60] sm:$0xf]
    %v2864 = vld [vmem:[#allocation12 + $0x64] sm:$0xf]
    %v2865 = vld [vmem:[#allocation12 + $0x68] sm:$0xf]
    %v2866 = vld [vmem:[#allocation12 + $0x6c] sm:$0xf]
    %v2867 = vld [vmem:[#allocation12 + $0x70] sm:$0xf]
    %v2868 = vld [vmem:[#allocation12 + $0x74] sm:$0xf]
    %v2869 = vld [vmem:[#allocation12 + $0x78] sm:$0xf]
    %v2870 = vld [vmem:[#allocation12 + $0x7c] sm:$0xf]
    %v2871 = vld [vmem:[#allocation12 + $0x80] sm:$0xf]
    %v2872 = vld [vmem:[#allocation12 + $0x84] sm:$0xf]
    %v2873 = vld [vmem:[#allocation12 + $0x88] sm:$0xf]
    %v2874 = vld [vmem:[#allocation12 + $0x8c] sm:$0xf]
    %v2875 = vld [vmem:[#allocation12 + $0x90] sm:$0xf]
    %v2876 = vld [vmem:[#allocation12 + $0x94] sm:$0xf]
    %v2877 = vld [vmem:[#allocation12 + $0x98] sm:$0xf]
    %v2878 = vld [vmem:[#allocation12 + $0x9c] sm:$0xf]
    %v2879 = vld [vmem:[#allocation12 + $0xa0] sm:$0xf]
    %v2880 = vld [vmem:[#allocation12 + $0xa4] sm:$0xf]
    %v2881 = vld [vmem:[#allocation12 + $0xa8] sm:$0xf]
    %v2882 = vld [vmem:[#allocation12 + $0xac] sm:$0xf]
    %v2883 = vld [vmem:[#allocation12 + $0xb0] sm:$0xf]
    %v2884 = vld [vmem:[#allocation12 + $0xb4] sm:$0xf]
    %v2885 = vld [vmem:[#allocation12 + $0xb8] sm:$0xf]
    %v2886 = vld [vmem:[#allocation12 + $0xbc] sm:$0xf]
    %v2887 = vld [vmem:[#allocation12 + $0xc0] sm:$0xf]
    %v2888 = vld [vmem:[#allocation12 + $0xc4] sm:$0xf]
    %v2889 = vld [vmem:[#allocation12 + $0xc8] sm:$0xf]
    %v2890 = vld [vmem:[#allocation12 + $0xcc] sm:$0xf]
    %v2891 = vld [vmem:[#allocation12 + $0xd0] sm:$0xf]
    %v2892 = vld [vmem:[#allocation12 + $0xd4] sm:$0xf]
    %v2893 = vld [vmem:[#allocation12 + $0xd8] sm:$0xf]
    %v2894 = vld [vmem:[#allocation12 + $0xdc] sm:$0xf]
    %v2895 = vld [vmem:[#allocation12 + $0xe0] sm:$0xf]
    %v2896 = vld [vmem:[#allocation12 + $0xe4] sm:$0xf]
    %v2897 = vld [vmem:[#allocation12 + $0xe8] sm:$0xf]
    %v2898 = vld [vmem:[#allocation12 + $0xec] sm:$0xf]
    %v2899 = vld [vmem:[#allocation12 + $0xf0] sm:$0xf]
    %v2900 = vld [vmem:[#allocation12 + $0xf4] sm:$0xf]
    %v2901 = vld [vmem:[#allocation12 + $0xf8] sm:$0xf]
    %v2902 = vld [vmem:[#allocation12 + $0xfc] sm:$0xf]
    %v2903 = vld [vmem:[#allocation12 + $0x100] sm:$0xf]
    %v2904 = vld [vmem:[#allocation12 + $0x104] sm:$0xf]
    %v2905 = vld [vmem:[#allocation12 + $0x108] sm:$0xf]
    %v2906 = vld [vmem:[#allocation12 + $0x10c] sm:$0xf]
    %v2907 = vld [vmem:[#allocation12 + $0x110] sm:$0xf]
    %v2908 = vld [vmem:[#allocation12 + $0x114] sm:$0xf]
    %v2909 = vld [vmem:[#allocation12 + $0x118] sm:$0xf]
    %v2910 = vld [vmem:[#allocation12 + $0x11c] sm:$0xf]
    %v2911 = vld [vmem:[#allocation12 + $0x120] sm:$0xf]
    %v2912 = vld [vmem:[#allocation12 + $0x124] sm:$0xf]
    %v2913 = vld [vmem:[#allocation12 + $0x128] sm:$0xf]
    %v2914 = vld [vmem:[#allocation12 + $0x12c] sm:$0xf]
    %v2915 = vld [vmem:[#allocation12 + $0x130] sm:$0xf]
    %v2916 = vld [vmem:[#allocation12 + $0x134] sm:$0xf]
    %v2917 = vld [vmem:[#allocation12 + $0x138] sm:$0xf]
    %v2918 = vld [vmem:[#allocation12 + $0x13c] sm:$0xf]
    %v2919 = vld [vmem:[%s21] sm:$0x1]
    %v2921 = vlaneseq
    %v2922 = vshrl.u32 %v2921, 7
    %v2923 = vsub.s32 0, %v2922
    %v2924 = vrot.slane %v2919, %v2923
    %v3006 = vunpack.c.l.b16 %v2839
    %v3007 = vunpack.c.l.b16 %v2840
    %v3008 = vunpack.c.l.b16 %v2841
    %v3009 = vunpack.c.l.b16 %v2842
    %v3010 = vunpack.c.l.b16 %v2843
    %v3011 = vunpack.c.l.b16 %v2844
    %v3012 = vunpack.c.l.b16 %v2845
    %v3013 = vunpack.c.l.b16 %v2846
    %v3014 = vunpack.c.l.b16 %v2847
    %v3015 = vunpack.c.l.b16 %v2848
    %v3016 = vunpack.c.l.b16 %v2849
    %v3017 = vunpack.c.l.b16 %v2850
    %v3018 = vunpack.c.l.b16 %v2851
    %v3019 = vunpack.c.l.b16 %v2852
    %v3020 = vunpack.c.l.b16 %v2853
    %v3021 = vunpack.c.l.b16 %v2854
    %v3022 = vunpack.c.l.b16 %v2855
    %v3023 = vunpack.c.l.b16 %v2856
    %v3024 = vunpack.c.l.b16 %v2857
    %v3025 = vunpack.c.l.b16 %v2858
    %v3026 = vunpack.c.l.b16 %v2859
    %v3027 = vunpack.c.l.b16 %v2860
    %v3028 = vunpack.c.l.b16 %v2861
    %v3029 = vunpack.c.l.b16 %v2862
    %v3030 = vunpack.c.l.b16 %v2863
    %v3031 = vunpack.c.l.b16 %v2864
    %v3032 = vunpack.c.l.b16 %v2865
    %v3033 = vunpack.c.l.b16 %v2866
    %v3034 = vunpack.c.l.b16 %v2867
    %v3035 = vunpack.c.l.b16 %v2868
    %v3036 = vunpack.c.l.b16 %v2869
    %v3037 = vunpack.c.l.b16 %v2870
    %v3038 = vunpack.c.l.b16 %v2871
    %v3039 = vunpack.c.l.b16 %v2872
    %v3040 = vunpack.c.l.b16 %v2873
    %v3041 = vunpack.c.l.b16 %v2874
    %v3042 = vunpack.c.l.b16 %v2875
    %v3043 = vunpack.c.l.b16 %v2876
    %v3044 = vunpack.c.l.b16 %v2877
    %v3045 = vunpack.c.l.b16 %v2878
    %v3046 = vunpack.c.l.b16 %v2879
    %v3047 = vunpack.c.l.b16 %v2880
    %v3048 = vunpack.c.l.b16 %v2881
    %v3049 = vunpack.c.l.b16 %v2882
    %v3050 = vunpack.c.l.b16 %v2883
    %v3051 = vunpack.c.l.b16 %v2884
    %v3052 = vunpack.c.l.b16 %v2885
    %v3053 = vunpack.c.l.b16 %v2886
    %v3054 = vunpack.c.l.b16 %v2887
    %v3055 = vunpack.c.l.b16 %v2888
    %v3056 = vunpack.c.l.b16 %v2889
    %v3057 = vunpack.c.l.b16 %v2890
    %v3058 = vunpack.c.l.b16 %v2891
    %v3059 = vunpack.c.l.b16 %v2892
    %v3060 = vunpack.c.l.b16 %v2893
    %v3061 = vunpack.c.l.b16 %v2894
    %v3062 = vunpack.c.l.b16 %v2895
    %v3063 = vunpack.c.l.b16 %v2896
    %v3064 = vunpack.c.l.b16 %v2897
    %v3065 = vunpack.c.l.b16 %v2898
    %v3066 = vunpack.c.l.b16 %v2899
    %v3067 = vunpack.c.l.b16 %v2900
    %v3068 = vunpack.c.l.b16 %v2901
    %v3069 = vunpack.c.l.b16 %v2902
    %v3070 = vunpack.c.l.b16 %v2903
    %v3071 = vunpack.c.l.b16 %v2904
    %v3072 = vunpack.c.l.b16 %v2905
    %v3073 = vunpack.c.l.b16 %v2906
    %v3074 = vunpack.c.l.b16 %v2907
    %v3075 = vunpack.c.l.b16 %v2908
    %v3076 = vunpack.c.l.b16 %v2909
    %v3077 = vunpack.c.l.b16 %v2910
    %v3078 = vunpack.c.l.b16 %v2911
    %v3079 = vunpack.c.l.b16 %v2912
    %v3080 = vunpack.c.l.b16 %v2913
    %v3081 = vunpack.c.l.b16 %v2914
    %v3082 = vunpack.c.l.b16 %v2915
    %v3083 = vunpack.c.l.b16 %v2916
    %v3084 = vunpack.c.l.b16 %v2917
    %v3085 = vunpack.c.l.b16 %v2918
    %v3086 = vpack.c.b16 %v3007, %v3006
    %v3087 = vpack.c.b16 %v3009, %v3008
    %v3088 = vpack.c.b16 %v3011, %v3010
    %v3089 = vpack.c.b16 %v3013, %v3012
    %v3090 = vpack.c.b16 %v3015, %v3014
    %v3091 = vpack.c.b16 %v3017, %v3016
    %v3092 = vpack.c.b16 %v3019, %v3018
    %v3093 = vpack.c.b16 %v3021, %v3020
    %v3094 = vpack.c.b16 %v3023, %v3022
    %v3095 = vpack.c.b16 %v3025, %v3024
    %v3096 = vpack.c.b16 %v3027, %v3026
    %v3097 = vpack.c.b16 %v3029, %v3028
    %v3098 = vpack.c.b16 %v3031, %v3030
    %v3099 = vpack.c.b16 %v3033, %v3032
    %v3100 = vpack.c.b16 %v3035, %v3034
    %v3101 = vpack.c.b16 %v3037, %v3036
    %v3102 = vpack.c.b16 %v3039, %v3038
    %v3103 = vpack.c.b16 %v3041, %v3040
    %v3104 = vpack.c.b16 %v3043, %v3042
    %v3105 = vpack.c.b16 %v3045, %v3044
    %v3106 = vpack.c.b16 %v3047, %v3046
    %v3107 = vpack.c.b16 %v3049, %v3048
    %v3108 = vpack.c.b16 %v3051, %v3050
    %v3109 = vpack.c.b16 %v3053, %v3052
    %v3110 = vpack.c.b16 %v3055, %v3054
    %v3111 = vpack.c.b16 %v3057, %v3056
    %v3112 = vpack.c.b16 %v3059, %v3058
    %v3113 = vpack.c.b16 %v3061, %v3060
    %v3114 = vpack.c.b16 %v3063, %v3062
    %v3115 = vpack.c.b16 %v3065, %v3064
    %v3116 = vpack.c.b16 %v3067, %v3066
    %v3117 = vpack.c.b16 %v3069, %v3068
    %v3118 = vpack.c.b16 %v3071, %v3070
    %v3119 = vpack.c.b16 %v3073, %v3072
    %v3120 = vpack.c.b16 %v3075, %v3074
    %v3121 = vpack.c.b16 %v3077, %v3076
    %v3122 = vpack.c.b16 %v3079, %v3078
    %v3123 = vpack.c.b16 %v3081, %v3080
    %v3124 = vpack.c.b16 %v3083, %v3082
    %v3125 = vpack.c.b16 %v3085, %v3084
    %3166 = vmatprep.subr.bf16.mxu0 0
    %3167 = vmatpush1.bf16.msra.mxu0 %v3086
    %3168 = vmatprep.subr.bf16.mxu0 0
    %3169 = vmatpush1.bf16.msra.mxu0 %v3087
    %3170 = vmatprep.subr.bf16.mxu0 0
    %3171 = vmatpush1.bf16.msra.mxu0 %v3088
    %3172 = vmatprep.subr.bf16.mxu0 0
    %3173 = vmatpush1.bf16.msra.mxu0 %v3089
    %3174 = vmatprep.subr.bf16.mxu0 0
    %3175 = vmatpush1.bf16.msra.mxu0 %v3090
    %3176 = vmatprep.subr.bf16.mxu0 0
    %3177 = vmatpush1.bf16.msra.mxu0 %v3091
    %3178 = vmatprep.subr.bf16.mxu0 0
    %3179 = vmatpush1.bf16.msra.mxu0 %v3092
    %3180 = vmatprep.subr.bf16.mxu0 0
    %3181 = vmatpush1.bf16.msra.mxu0 %v3093
    %3182 = vmatprep.subr.bf16.mxu0 0
    %3183 = vmatpush1.bf16.msra.mxu0 %v3094
    %3184 = vmatprep.subr.bf16.mxu0 0
    %3185 = vmatpush1.bf16.msra.mxu0 %v3095
    %3186 = vmatprep.subr.bf16.mxu0 0
    %3187 = vmatpush1.bf16.msra.mxu0 %v3096
    %3188 = vmatprep.subr.bf16.mxu0 0
    %3189 = vmatpush1.bf16.msra.mxu0 %v3097
    %3190 = vmatprep.subr.bf16.mxu0 0
    %3191 = vmatpush1.bf16.msra.mxu0 %v3098
    %3192 = vmatprep.subr.bf16.mxu0 0
    %3193 = vmatpush1.bf16.msra.mxu0 %v3099
    %3194 = vmatprep.subr.bf16.mxu0 0
    %3195 = vmatpush1.bf16.msra.mxu0 %v3100
    %3196 = vmatprep.subr.bf16.mxu0 0
    %3197 = vmatpush1.bf16.msra.mxu0 %v3101
    %3198 = vmatprep.mubr.bf16.mxu0 %v2773
    %3199 = vmatmul.mubr.bf16.gmra.mrb[0].mxu0 %v2753
    %v3200 = vpop.f32.mrb[0].mxu0
    %v3201 = vadd.f32 %v2924, %v3200
    %v3202 = vpop.f32.mrb[0].mxu0
    %v3203 = vpop.f32.mrb[0].mxu0
    %v3204 = vadd.f32 %v2924, %v3203
    %v3205 = vpop.f32.mrb[0].mxu0
    %3206 = vmatprep.mubr.bf16.mxu0 %v2781
    %3207 = vmatmul.mubr.bf16.gmra.mrb[0].mxu0 %v2754
    %v3208 = vpop.f32.mrb[0].mxu0
    %v3209 = vadd.f32 %v2924, %v3208
    %v3210 = vpop.f32.mrb[0].mxu0
    %v3211 = vpop.f32.mrb[0].mxu0
    %v3212 = vadd.f32 %v2924, %v3211
    %v3213 = vpop.f32.mrb[0].mxu0
    %3214 = vmatprep.mubr.bf16.mxu0 %v2784
    %3215 = vmatmul.mubr.bf16.gmra.mrb[0].mxu0 %v2755
    %v3216 = vpop.f32.mrb[0].mxu0
    %v3217 = vadd.f32 %v2924, %v3216
    %v3218 = vpop.f32.mrb[0].mxu0
    %v3219 = vpop.f32.mrb[0].mxu0
    %v3220 = vpop.f32.mrb[0].mxu0
    %3221 = vdwg.mxu0
    %3222 = vmatprep.subr.bf16.mxu0 0
    %3223 = vmatpush1.bf16.msra.mxu0 %v3102
    %3224 = vmatprep.subr.bf16.mxu0 0
    %3225 = vmatpush1.bf16.msra.mxu0 %v3103
    %3226 = vmatprep.subr.bf16.mxu0 0
    %3227 = vmatpush1.bf16.msra.mxu0 %v3104
    %3228 = vmatprep.subr.bf16.mxu0 0
    %3229 = vmatpush1.bf16.msra.mxu0 %v3105
    %3230 = vmatprep.subr.bf16.mxu0 0
    %3231 = vmatpush1.bf16.msra.mxu0 %v3106
    %3232 = vmatprep.subr.bf16.mxu0 0
    %3233 = vmatpush1.bf16.msra.mxu0 %v3107
    %3234 = vmatprep.subr.bf16.mxu0 0
    %3235 = vmatpush1.bf16.msra.mxu0 %v3108
    %3236 = vmatprep.subr.bf16.mxu0 0
    %3237 = vmatpush1.bf16.msra.mxu0 %v3109
    %3238 = vmatprep.subr.bf16.mxu0 0
    %3239 = vmatpush1.bf16.msra.mxu0 %v3110
    %3240 = vmatprep.subr.bf16.mxu0 0
    %3241 = vmatpush1.bf16.msra.mxu0 %v3111
    %3242 = vmatprep.subr.bf16.mxu0 0
    %3243 = vmatpush1.bf16.msra.mxu0 %v3112
    %3244 = vmatprep.subr.bf16.mxu0 0
    %3245 = vmatpush1.bf16.msra.mxu0 %v3113
    %3246 = vmatprep.subr.bf16.mxu0 0
    %3247 = vmatpush1.bf16.msra.mxu0 %v3114
    %3248 = vmatprep.subr.bf16.mxu0 0
    %3249 = vmatpush1.bf16.msra.mxu0 %v3115
    %3250 = vmatprep.subr.bf16.mxu0 0
    %3251 = vmatpush1.bf16.msra.mxu0 %v3116
    %3252 = vmatprep.subr.bf16.mxu0 0
    %3253 = vmatpush1.bf16.msra.mxu0 %v3117
    %3254 = vmatprep.mubr.bf16.mxu0 %v2814
    %3255 = vmatmul.mubr.bf16.gmra.mrb[0].mxu0 %v2793
    %v3256 = vpop.f32.mrb[0].mxu0
    %v3257 = vadd.f32 %v3201, %v3256
    %v3258 = vpop.f32.mrb[0].mxu0
    %v3259 = vpop.f32.mrb[0].mxu0
    %v3260 = vadd.f32 %v3204, %v3259
    %v3261 = vpop.f32.mrb[0].mxu0
    %3262 = vmatprep.mubr.bf16.mxu0 %v2823
    %3263 = vmatmul.mubr.bf16.gmra.mrb[0].mxu0 %v2795
    %v3264 = vpop.f32.mrb[0].mxu0
    %v3265 = vadd.f32 %v3209, %v3264
    %v3266 = vpop.f32.mrb[0].mxu0
    %v3267 = vpop.f32.mrb[0].mxu0
    %v3268 = vadd.f32 %v3212, %v3267
    %v3269 = vpop.f32.mrb[0].mxu0
    %3270 = vmatprep.mubr.bf16.mxu0 %v2822
    %3271 = vmatmul.mubr.bf16.gmra.mrb[0].mxu0 %v2794
    %v3272 = vpop.f32.mrb[0].mxu0
    %v3273 = vadd.f32 %v3217, %v3272
    %v3274 = vpop.f32.mrb[0].mxu0
    %v3275 = vpop.f32.mrb[0].mxu0
    %v3276 = vpop.f32.mrb[0].mxu0
    %3277 = vdwg.mxu0
    %3278 = vmatprep.subr.bf16.mxu0 0
    %3279 = vmatpush1.bf16.msra.mxu0 %v3118
    %3280 = vmatprep.subr.bf16.mxu0 0
    %3281 = vmatpush1.bf16.msra.mxu0 %v3119
    %3282 = vmatprep.subr.bf16.mxu0 0
    %3283 = vmatpush1.bf16.msra.mxu0 %v3120
    %3284 = vmatprep.subr.bf16.mxu0 0
    %3285 = vmatpush1.bf16.msra.mxu0 %v3121
    %3286 = vmatprep.subr.bf16.mxu0 0
    %3287 = vmatpush1.bf16.msra.mxu0 %v3122
    %3288 = vmatprep.subr.bf16.mxu0 0
    %3289 = vmatpush1.bf16.msra.mxu0 %v3123
    %3290 = vmatprep.subr.bf16.mxu0 0
    %3291 = vmatpush1.bf16.msra.mxu0 %v3124
    %3292 = vmatprep.subr.bf16.mxu0 0
    %3293 = vmatpush1.bf16.msra.mxu0 %v3125
    %3294 = vmatprep.subr.bf16.mxu0 0
    %3295 = vmatpush1.bf16.msra.mxu0 0
    %3296 = vmatprep.subr.bf16.mxu0 0
    %3297 = vmatpush1.bf16.msra.mxu0 0
    %3298 = vmatprep.subr.bf16.mxu0 0
    %3299 = vmatpush1.bf16.msra.mxu0 0
    %3300 = vmatprep.subr.bf16.mxu0 0
    %3301 = vmatpush1.bf16.msra.mxu0 0
    %3302 = vmatprep.subr.bf16.mxu0 0
    %3303 = vmatpush1.bf16.msra.mxu0 0
    %3304 = vmatprep.subr.bf16.mxu0 0
    %3305 = vmatpush1.bf16.msra.mxu0 0
    %3306 = vmatprep.subr.bf16.mxu0 0
    %3307 = vmatpush1.bf16.msra.mxu0 0
    %3308 = vmatprep.subr.bf16.mxu0 0
    %3309 = vmatpush1.bf16.msra.mxu0 0
    %3310 = vmatprep.mubr.bf16.mxu0 0
    %3311 = vmatmul.mubr.bf16.gmra.mrb[0].mxu0 %v2833
    %v3312 = vpop.f32.mrb[0].mxu0
    %v3313 = vadd.f32 %v3257, %v3312
    %v3314 = vpop.f32.mrb[0].mxu0
    %v3315 = vpop.f32.mrb[0].mxu0
    %v3316 = vadd.f32 %v3260, %v3315
    %v3317 = vpop.f32.mrb[0].mxu0
    %3318 = vmatprep.mubr.bf16.mxu0 0
    %3319 = vmatmul.mubr.bf16.gmra.mrb[0].mxu0 %v2835
    %v3320 = vpop.f32.mrb[0].mxu0
    %v3321 = vadd.f32 %v3265, %v3320
    %v3322 = vpop.f32.mrb[0].mxu0
    %v3323 = vpop.f32.mrb[0].mxu0
    %v3324 = vadd.f32 %v3268, %v3323
    %v3325 = vpop.f32.mrb[0].mxu0
    %3326 = vmatprep.mubr.bf16.mxu0 0
    %3327 = vmatmul.mubr.bf16.gmra.mrb[0].mxu0 %v2834
    %v3328 = vpop.f32.mrb[0].mxu0
    %v3329 = vadd.f32 %v3273, %v3328
    %v3330 = vpop.f32.mrb[0].mxu0
    %v3331 = vpop.f32.mrb[0].mxu0
    %v3332 = vpop.f32.mrb[0].mxu0
    %3333 = vdwg.mxu0
    %v3334 = vmul.f32 %v3313, %v316
    %v3335 = vmul.f32 %v3316, %v321
    %v3336 = vmul.f32 %v3321, %v326
    %v3337 = vmul.f32 %v3324, %v331
    %v3338 = vmul.f32 %v3329, %v336
    %v3339 = vadd.f32 %v3334, %v3335
    %v3340 = vadd.f32 %v3339, %v3336
    %v3341 = vadd.f32 %v3340, %v3337
    %v3342 = vsel %vm823, %v3338, 0.0
    %v3343 = vadd.f32 %v3341, %v3342
    %v3344 = vrot.slane %v3343, 4
    %v3345 = vadd.f32 %v3343, %v3344
    %v3346 = vrot.slane %v3345, 2
    %v3347 = vadd.f32 %v3345, %v3346
    %v3348 = vrot.slane %v3347, 1
    %v3349 = vadd.f32 %v3347, %v3348
    %3350 = vrot.lane.b32.xlu0 %v3349, 8
    %v3351 = vpop.permute.xlu0 %3350
    %v3352 = vadd.f32 %v3349, %v3351
    %3353 = vrot.lane.b32.xlu0 %v3352, 16
    %v3354 = vpop.permute.xlu0 %3353
    %v3355 = vadd.f32 %v3352, %v3354
    %3356 = vrot.lane.b32.xlu0 %v3355, 32
    %v3357 = vpop.permute.xlu0 %3356
    %v3358 = vadd.f32 %v3355, %v3357
    %3359 = vrot.lane.b32.xlu0 %v3358, 64
    %v3360 = vpop.permute.xlu0 %3359
    %v3361 = vadd.f32 %v3358, %v3360
    %v3362 = vmul.f32 %v3361, 0.001953125
    %v3363 = vlaneseq
    %v3364 = vshrl.u32 %v3363, 7
    %v3365 = vsub.s32 0, %v3364
    %v3366 = vrot.slane %v3362, %v3365
    %v3367 = vsub.f32 %v3334, %v3366
    %v3368 = vsub.f32 %v3335, %v3366
    %v3369 = vsub.f32 %v3336, %v3366
    %v3370 = vsub.f32 %v3337, %v3366
    %v3371 = vsub.f32 %v3338, %v3366
    %v3372 = vmul.f32 %v3367, %v316
    %v3373 = vmul.f32 %v3368, %v321
    %v3374 = vmul.f32 %v3369, %v326
    %v3375 = vmul.f32 %v3370, %v331
    %v3376 = vmul.f32 %v3371, %v336
    %v3377 = vmul.f32 %v3372, %v3372
    %v3378 = vmul.f32 %v3373, %v3373
    %v3379 = vmul.f32 %v3374, %v3374
    %v3380 = vmul.f32 %v3375, %v3375
    %v3381 = vmul.f32 %v3376, %v3376
    %v3382 = vadd.f32 %v3377, %v3378
    %v3383 = vadd.f32 %v3382, %v3379
    %v3384 = vadd.f32 %v3383, %v3380
    %v3385 = vsel %vm823, %v3381, 0.0
    %v3386 = vadd.f32 %v3384, %v3385
    %v3387 = vrot.slane %v3386, 4
    %v3388 = vadd.f32 %v3386, %v3387
    %v3389 = vrot.slane %v3388, 2
    %v3390 = vadd.f32 %v3388, %v3389
    %v3391 = vrot.slane %v3390, 1
    %v3392 = vadd.f32 %v3390, %v3391
    %3393 = vrot.lane.b32.xlu0 %v3392, 8
    %v3394 = vpop.permute.xlu0 %3393
    %v3395 = vadd.f32 %v3392, %v3394
    %3396 = vrot.lane.b32.xlu0 %v3395, 16
    %v3397 = vpop.permute.xlu0 %3396
    %v3398 = vadd.f32 %v3395, %v3397
    %3399 = vrot.lane.b32.xlu0 %v3398, 32
    %v3400 = vpop.permute.xlu0 %3399
    %v3401 = vadd.f32 %v3398, %v3400
    %3402 = vrot.lane.b32.xlu0 %v3401, 64
    %v3403 = vpop.permute.xlu0 %3402
    %v3404 = vadd.f32 %v3401, %v3403
    %v3405 = vmul.f32 %v3404, 0.001953125
    %v3406 = vadd.f32 %v3405, 1e-05
    %v3407 = vrsqrt.pop %v3406
    %v3408 = vlaneseq
    %v3409 = vshrl.u32 %v3408, 7
    %v3410 = vsub.s32 0, %v3409
    %v3411 = vrot.slane %v3407, %v3410
    %v3412 = vmul.f32 %v3372, %v3411
    %v3413 = vmul.f32 %v3373, %v3411
    %v3414 = vmul.f32 %v3374, %v3411
    %v3415 = vmul.f32 %v3375, %v3411
    %v3416 = vmul.f32 %v3376, %v3411
    %v3417 = vld [vmem:[%s22] sm:$0x1]
    %v3419 = vlaneseq
    %v3420 = vshrl.u32 %v3419, 7
    %v3421 = vsub.s32 0, %v3420
    %v3422 = vrot.slane %v3417, %v3421
    %v3424 = vmul.f32 %v3412, %v3422
    %v3425 = vmul.f32 %v3413, %v3422
    %v3426 = vmul.f32 %v3414, %v3422
    %v3427 = vmul.f32 %v3415, %v3422
    %v3428 = vmul.f32 %v3416, %v3422
    %v3429 = vld [vmem:[%s23] sm:$0x1]
    %v3431 = vlaneseq
    %v3432 = vshrl.u32 %v3431, 7
    %v3433 = vsub.s32 0, %v3432
    %v3434 = vrot.slane %v3429, %v3433
    %v3436 = vadd.f32 %v3424, %v3434
    %v3437 = vadd.f32 %v3425, %v3434
    %v3438 = vadd.f32 %v3426, %v3434
    %v3439 = vadd.f32 %v3427, %v3434
    %v3440 = vadd.f32 %v3428, %v3434
    %v3441 = vmax.f32 %v3436, 0.0
    %v3442 = vmax.f32 %v3437, 0.0
    %v3443 = vmax.f32 %v3438, 0.0
    %v3444 = vmax.f32 %v3439, 0.0
    %v3445 = vmax.f32 %v3440, 0.0
    %v3446 = vmul.f32 %v3441, %v316
    %v3447 = vmul.f32 %v3442, %v321
    %v3448 = vmul.f32 %v3443, %v326
    %v3449 = vmul.f32 %v3444, %v331
    %v3450 = vmul.f32 %v3445, %v336
    %v3451 = vpack.c.bf16 %v3447, %v3446
    %v3452 = vpack.c.bf16 %v3449, %v3448
    %v3453 = vpack.c.bf16 %v3450, %v3450
    %v3457 = vunpack.c.l.b16 %v3451
    %v3458 = vunpack.c.h.b16 %v3451
    %v3459 = vunpack.c.l.b16 %v3452
    %v3460 = vunpack.c.h.b16 %v3452
    %v3461 = vunpack.c.l.b16 %v3453
    %v3462 = vpack.c.b16 %v3457, %v3457
    %v3463 = vpack.c.b16 %v3458, %v3458
    %v3464 = vpack.c.b16 %v3459, %v3459
    %v3465 = vpack.c.b16 %v3460, %v3460
    %v3466 = vpack.c.b16 %v3461, %v3461
    %v3467 = vrot.slane %v3462, 7
    %v3468 = vrot.slane %v3467, 4
    %v3469 = vrot.slane %v3463, 7
    %v3470 = vsel %vm361, %v3468, %v3469
    %v3471 = vrot.slane %v3469, 4
    %v3472 = vrot.slane %v3464, 7
    %v3473 = vsel %vm361, %v3471, %v3472
    %v3474 = vrot.slane %v3472, 4
    %v3475 = vrot.slane %v3465, 7
    %v3476 = vsel %vm361, %v3474, %v3475
    %v3477 = vrot.slane %v3475, 4
    %v3478 = vrot.slane %v3466, 7
    %v3479 = vsel %vm361, %v3477, %v3478
    %3485 = vst [vmem:[#allocation2] sm:$0xe] %v3467
    %3486 = vst [vmem:[#allocation2 + $0x4] sm:$0xf] %v3470
    %3487 = vst [vmem:[#allocation2 + $0x8] sm:$0xf] %v3473
    %3488 = vst [vmem:[#allocation2 + $0xc] sm:$0xf] %v3476
    %3489 = vst [vmem:[#allocation2 + $0x10] sm:$0x7] %v3479
    %v3490 = vld [vmem:[#allocation2] sm:$0xf]
    %v3491 = vld [vmem:[#allocation2 + $0x4] sm:$0xf]
    %v3492 = vld [vmem:[#allocation2 + $0x8] sm:$0xf]
    %v3493 = vld [vmem:[#allocation2 + $0xc] sm:$0xf]
    %v3494 = vld [vmem:[#allocation2 + $0x10] sm:$0x7]
    %v3495 = vld [vmem:[#allocation2] sm:$0xe]
    %v3496 = vld [vmem:[#allocation2 + $0x10] sm:$0xf]
    %v3502 = vunpack.c.l.b16 %v3490
    %v3503 = vunpack.c.l.b16 %v3491
    %v3504 = vunpack.c.l.b16 %v3492
    %v3505 = vunpack.c.l.b16 %v3493
    %v3506 = vunpack.c.l.b16 %v3494
    %v3507 = vpack.c.b16 %v3503, %v3502
    %v3508 = vpack.c.b16 %v3505, %v3504
    %v3509 = vpack.c.b16 %v3506, %v3506
    %v3511 = vunpack.c.l.b16 %v3495
    %v3512 = vpack.c.b16 %v3503, %v3511
    %v3514 = vshrl.u32 %v3512, 16
    %v3516 = vshll.u32 %v3512, 16
    %v3518 = vrot.slane %v3516, 1
    %v3519 = vor.u32 %v3514, %v3518
    %v3521 = vshll.u32 %v3508, 16
    %v3523 = vrot.slane %v3521, 1
    %v3524 = vsel %vm408, %v3519, %v3523
    %v3525 = vshrl.u32 %v3508, 16
    %v3527 = vor.u32 %v3525, %v3523
    %v3529 = vshll.u32 %v3509, 16
    %v3531 = vrot.slane %v3529, 1
    %v3532 = vsel %vm408, %v3527, %v3531
    %v3533 = vshrl.u32 %v3509, 16
    %v3535 = vor.u32 %v3533, %v3531
    %v3537 = vunpack.c.l.b16 %v3496
    %v3538 = vpack.c.b16 %v3537, %v3537
    %v3539 = vrot.slane %v3512, 1
    %v3540 = vrot.slane %v3508, 1
    %v3541 = vsel %vm435, %v3539, %v3540
    %v3542 = vrot.slane %v3538, 1
    %v3543 = vsel %vm435, %v3540, %v3542
    %v3544 = vld [vmem:[#allocation14] sm:$0xf]
    %v3545 = vld [vmem:[#allocation14 + $0x4] sm:$0xf]
    %v3546 = vld [vmem:[#allocation14 + $0x8] sm:$0xf]
    %v3547 = vld [vmem:[#allocation14 + $0xc] sm:$0xf]
    %v3548 = vld [vmem:[#allocation14 + $0x10] sm:$0xf]
    %v3549 = vld [vmem:[#allocation14 + $0x14] sm:$0xf]
    %v3550 = vld [vmem:[#allocation14 + $0x18] sm:$0xf]
    %v3551 = vld [vmem:[#allocation14 + $0x1c] sm:$0xf]
    %v3552 = vld [vmem:[#allocation14 + $0x20] sm:$0xf]
    %v3553 = vld [vmem:[#allocation14 + $0x24] sm:$0xf]
    %v3554 = vld [vmem:[#allocation14 + $0x28] sm:$0xf]
    %v3555 = vld [vmem:[#allocation14 + $0x2c] sm:$0xf]
    %v3556 = vld [vmem:[#allocation14 + $0x30] sm:$0xf]
    %v3557 = vld [vmem:[#allocation14 + $0x34] sm:$0xf]
    %v3558 = vld [vmem:[#allocation14 + $0x38] sm:$0xf]
    %v3559 = vld [vmem:[#allocation14 + $0x3c] sm:$0xf]
    %v3560 = vld [vmem:[#allocation14 + $0x40] sm:$0xf]
    %v3561 = vld [vmem:[#allocation14 + $0x44] sm:$0xf]
    %v3562 = vld [vmem:[#allocation14 + $0x48] sm:$0xf]
    %v3563 = vld [vmem:[#allocation14 + $0x4c] sm:$0xf]
    %v3564 = vld [vmem:[#allocation14 + $0x50] sm:$0xf]
    %v3565 = vld [vmem:[#allocation14 + $0x54] sm:$0xf]
    %v3566 = vld [vmem:[#allocation14 + $0x58] sm:$0xf]
    %v3567 = vld [vmem:[#allocation14 + $0x5c] sm:$0xf]
    %v3568 = vld [vmem:[#allocation14 + $0x60] sm:$0xf]
    %v3569 = vld [vmem:[#allocation14 + $0x64] sm:$0xf]
    %v3570 = vld [vmem:[#allocation14 + $0x68] sm:$0xf]
    %v3571 = vld [vmem:[#allocation14 + $0x6c] sm:$0xf]
    %v3572 = vld [vmem:[#allocation14 + $0x70] sm:$0xf]
    %v3573 = vld [vmem:[#allocation14 + $0x74] sm:$0xf]
    %v3574 = vld [vmem:[#allocation14 + $0x78] sm:$0xf]
    %v3575 = vld [vmem:[#allocation14 + $0x7c] sm:$0xf]
    %v3576 = vld [vmem:[#allocation14 + $0x80] sm:$0xf]
    %v3577 = vld [vmem:[#allocation14 + $0x84] sm:$0xf]
    %v3578 = vld [vmem:[#allocation14 + $0x88] sm:$0xf]
    %v3579 = vld [vmem:[#allocation14 + $0x8c] sm:$0xf]
    %v3580 = vld [vmem:[#allocation14 + $0x90] sm:$0xf]
    %v3581 = vld [vmem:[#allocation14 + $0x94] sm:$0xf]
    %v3582 = vld [vmem:[#allocation14 + $0x98] sm:$0xf]
    %v3583 = vld [vmem:[#allocation14 + $0x9c] sm:$0xf]
    %v3584 = vld [vmem:[#allocation14 + $0xa0] sm:$0xf]
    %v3585 = vld [vmem:[#allocation14 + $0xa4] sm:$0xf]
    %v3586 = vld [vmem:[#allocation14 + $0xa8] sm:$0xf]
    %v3587 = vld [vmem:[#allocation14 + $0xac] sm:$0xf]
    %v3588 = vld [vmem:[#allocation14 + $0xb0] sm:$0xf]
    %v3589 = vld [vmem:[#allocation14 + $0xb4] sm:$0xf]
    %v3590 = vld [vmem:[#allocation14 + $0xb8] sm:$0xf]
    %v3591 = vld [vmem:[#allocation14 + $0xbc] sm:$0xf]
    %v3592 = vld [vmem:[%s25] sm:$0x1]
    %v3594 = vlaneseq
    %v3595 = vshrl.u32 %v3594, 7
    %v3596 = vsub.s32 0, %v3595
    %v3597 = vrot.slane %v3592, %v3596
    %v3600 = vshrl.u32 %v3507, 16
    %v3602 = vshll.u32 %v3507, 16
    %v3604 = vrot.slane %v3602, 1
    %v3605 = vor.u32 %v3600, %v3604
    %v3606 = vsel %vm408, %v3605, %v3523
    %v3608 = vshrl.u32 %v3524, 16
    %v3610 = vshll.u32 %v3524, 16
    %v3612 = vrot.slane %v3610, 1
    %v3613 = vor.u32 %v3608, %v3612
    %v3615 = vshll.u32 %v3532, 16
    %v3617 = vrot.slane %v3615, 1
    %v3618 = vsel %vm408, %v3613, %v3617
    %v3620 = vshrl.u32 %v3541, 16
    %v3622 = vshll.u32 %v3541, 16
    %v3624 = vrot.slane %v3622, 1
    %v3625 = vor.u32 %v3620, %v3624
    %v3627 = vshll.u32 %v3543, 16
    %v3629 = vrot.slane %v3627, 1
    %v3630 = vsel %vm408, %v3625, %v3629
    %v3631 = vshrl.u32 %v3532, 16
    %v3633 = vor.u32 %v3631, %v3617
    %v3635 = vshll.u32 %v3535, 16
    %v3637 = vrot.slane %v3635, 1
    %v3638 = vsel %vm408, %v3633, %v3637
    %v3639 = vshrl.u32 %v3543, 16
    %v3641 = vor.u32 %v3639, %v3629
    %v3643 = vshll.u32 %v3542, 16
    %v3645 = vrot.slane %v3643, 1
    %v3646 = vsel %vm408, %v3641, %v3645
    %v3647 = vshrl.u32 %v3535, 16
    %v3649 = vor.u32 %v3647, %v3637
    %v3650 = vshrl.u32 %v3542, 16
    %v3652 = vor.u32 %v3650, %v3645
    %v3710 = vunpack.c.l.b16 %v3544
    %v3711 = vunpack.c.l.b16 %v3545
    %v3712 = vunpack.c.l.b16 %v3546
    %v3713 = vunpack.c.l.b16 %v3547
    %v3714 = vunpack.c.l.b16 %v3548
    %v3715 = vunpack.c.l.b16 %v3549
    %v3716 = vunpack.c.l.b16 %v3550
    %v3717 = vunpack.c.l.b16 %v3551
    %v3718 = vunpack.c.l.b16 %v3552
    %v3719 = vunpack.c.l.b16 %v3553
    %v3720 = vunpack.c.l.b16 %v3554
    %v3721 = vunpack.c.l.b16 %v3555
    %v3722 = vunpack.c.l.b16 %v3556
    %v3723 = vunpack.c.l.b16 %v3557
    %v3724 = vunpack.c.l.b16 %v3558
    %v3725 = vunpack.c.l.b16 %v3559
    %v3726 = vunpack.c.l.b16 %v3560
    %v3727 = vunpack.c.l.b16 %v3561
    %v3728 = vunpack.c.l.b16 %v3562
    %v3729 = vunpack.c.l.b16 %v3563
    %v3730 = vunpack.c.l.b16 %v3564
    %v3731 = vunpack.c.l.b16 %v3565
    %v3732 = vunpack.c.l.b16 %v3566
    %v3733 = vunpack.c.l.b16 %v3567
    %v3734 = vunpack.c.l.b16 %v3568
    %v3735 = vunpack.c.l.b16 %v3569
    %v3736 = vunpack.c.l.b16 %v3570
    %v3737 = vunpack.c.l.b16 %v3571
    %v3738 = vunpack.c.l.b16 %v3572
    %v3739 = vunpack.c.l.b16 %v3573
    %v3740 = vunpack.c.l.b16 %v3574
    %v3741 = vunpack.c.l.b16 %v3575
    %v3742 = vunpack.c.l.b16 %v3576
    %v3743 = vunpack.c.l.b16 %v3577
    %v3744 = vunpack.c.l.b16 %v3578
    %v3745 = vunpack.c.l.b16 %v3579
    %v3746 = vunpack.c.l.b16 %v3580
    %v3747 = vunpack.c.l.b16 %v3581
    %v3748 = vunpack.c.l.b16 %v3582
    %v3749 = vunpack.c.l.b16 %v3583
    %v3750 = vunpack.c.l.b16 %v3584
    %v3751 = vunpack.c.l.b16 %v3585
    %v3752 = vunpack.c.l.b16 %v3586
    %v3753 = vunpack.c.l.b16 %v3587
    %v3754 = vunpack.c.l.b16 %v3588
    %v3755 = vunpack.c.l.b16 %v3589
    %v3756 = vunpack.c.l.b16 %v3590
    %v3757 = vunpack.c.l.b16 %v3591
    %v3758 = vpack.c.b16 %v3711, %v3710
    %v3759 = vpack.c.b16 %v3713, %v3712
    %v3760 = vpack.c.b16 %v3715, %v3714
    %v3761 = vpack.c.b16 %v3717, %v3716
    %v3762 = vpack.c.b16 %v3719, %v3718
    %v3763 = vpack.c.b16 %v3721, %v3720
    %v3764 = vpack.c.b16 %v3723, %v3722
    %v3765 = vpack.c.b16 %v3725, %v3724
    %v3766 = vpack.c.b16 %v3727, %v3726
    %v3767 = vpack.c.b16 %v3729, %v3728
    %v3768 = vpack.c.b16 %v3731, %v3730
    %v3769 = vpack.c.b16 %v3733, %v3732
    %v3770 = vpack.c.b16 %v3735, %v3734
    %v3771 = vpack.c.b16 %v3737, %v3736
    %v3772 = vpack.c.b16 %v3739, %v3738
    %v3773 = vpack.c.b16 %v3741, %v3740
    %v3774 = vpack.c.b16 %v3743, %v3742
    %v3775 = vpack.c.b16 %v3745, %v3744
    %v3776 = vpack.c.b16 %v3747, %v3746
    %v3777 = vpack.c.b16 %v3749, %v3748
    %v3778 = vpack.c.b16 %v3751, %v3750
    %v3779 = vpack.c.b16 %v3753, %v3752
    %v3780 = vpack.c.b16 %v3755, %v3754
    %v3781 = vpack.c.b16 %v3757, %v3756
    %3806 = vmatprep.subr.bf16.mxu0 0
    %3807 = vmatpush1.bf16.msra.mxu0 %v3758
    %3808 = vmatprep.subr.bf16.mxu0 0
    %3809 = vmatpush1.bf16.msra.mxu0 %v3759
    %3810 = vmatprep.subr.bf16.mxu0 0
    %3811 = vmatpush1.bf16.msra.mxu0 %v3760
    %3812 = vmatprep.subr.bf16.mxu0 0
    %3813 = vmatpush1.bf16.msra.mxu0 %v3761
    %3814 = vmatprep.subr.bf16.mxu0 0
    %3815 = vmatpush1.bf16.msra.mxu0 %v3762
    %3816 = vmatprep.subr.bf16.mxu0 0
    %3817 = vmatpush1.bf16.msra.mxu0 %v3763
    %3818 = vmatprep.subr.bf16.mxu0 0
    %3819 = vmatpush1.bf16.msra.mxu0 %v3764
    %3820 = vmatprep.subr.bf16.mxu0 0
    %3821 = vmatpush1.bf16.msra.mxu0 %v3765
    %3822 = vmatprep.subr.bf16.mxu0 0
    %3823 = vmatpush1.bf16.msra.mxu0 %v3766
    %3824 = vmatprep.subr.bf16.mxu0 0
    %3825 = vmatpush1.bf16.msra.mxu0 %v3767
    %3826 = vmatprep.subr.bf16.mxu0 0
    %3827 = vmatpush1.bf16.msra.mxu0 %v3768
    %3828 = vmatprep.subr.bf16.mxu0 0
    %3829 = vmatpush1.bf16.msra.mxu0 %v3769
    %3830 = vmatprep.subr.bf16.mxu0 0
    %3831 = vmatpush1.bf16.msra.mxu0 %v3770
    %3832 = vmatprep.subr.bf16.mxu0 0
    %3833 = vmatpush1.bf16.msra.mxu0 %v3771
    %3834 = vmatprep.subr.bf16.mxu0 0
    %3835 = vmatpush1.bf16.msra.mxu0 %v3772
    %3836 = vmatprep.subr.bf16.mxu0 0
    %3837 = vmatpush1.bf16.msra.mxu0 %v3773
    %3838 = vmatprep.mubr.bf16.mxu0 %v3618
    %3839 = vmatmul.mubr.bf16.gmra.mrb[0].mxu0 %v3606
    %v3840 = vpop.f32.mrb[0].mxu0
    %v3841 = vadd.f32 %v3597, %v3840
    %v3842 = vpop.f32.mrb[0].mxu0
    %v3843 = vpop.f32.mrb[0].mxu0
    %v3844 = vadd.f32 %v3597, %v3843
    %v3845 = vpop.f32.mrb[0].mxu0
    %3846 = vmatprep.mubr.bf16.mxu0 %v3638
    %3847 = vmatmul.mubr.bf16.gmra.mrb[0].mxu0 %v3532
    %v3848 = vpop.f32.mrb[0].mxu0
    %v3849 = vadd.f32 %v3597, %v3848
    %v3850 = vpop.f32.mrb[0].mxu0
    %v3851 = vpop.f32.mrb[0].mxu0
    %v3852 = vadd.f32 %v3597, %v3851
    %v3853 = vpop.f32.mrb[0].mxu0
    %3854 = vmatprep.mubr.bf16.mxu0 %v3649
    %3855 = vmatmul.mubr.bf16.gmra.mrb[0].mxu0 %v3535
    %v3856 = vpop.f32.mrb[0].mxu0
    %v3857 = vadd.f32 %v3597, %v3856
    %v3858 = vpop.f32.mrb[0].mxu0
    %v3859 = vpop.f32.mrb[0].mxu0
    %v3860 = vpop.f32.mrb[0].mxu0
    %3861 = vdwg.mxu0
    %3862 = vmatprep.subr.bf16.mxu0 0
    %3863 = vmatpush1.bf16.msra.mxu0 %v3774
    %3864 = vmatprep.subr.bf16.mxu0 0
    %3865 = vmatpush1.bf16.msra.mxu0 %v3775
    %3866 = vmatprep.subr.bf16.mxu0 0
    %3867 = vmatpush1.bf16.msra.mxu0 %v3776
    %3868 = vmatprep.subr.bf16.mxu0 0
    %3869 = vmatpush1.bf16.msra.mxu0 %v3777
    %3870 = vmatprep.subr.bf16.mxu0 0
    %3871 = vmatpush1.bf16.msra.mxu0 %v3778
    %3872 = vmatprep.subr.bf16.mxu0 0
    %3873 = vmatpush1.bf16.msra.mxu0 %v3779
    %3874 = vmatprep.subr.bf16.mxu0 0
    %3875 = vmatpush1.bf16.msra.mxu0 %v3780
    %3876 = vmatprep.subr.bf16.mxu0 0
    %3877 = vmatpush1.bf16.msra.mxu0 %v3781
    %3878 = vmatprep.subr.bf16.mxu0 0
    %3879 = vmatpush1.bf16.msra.mxu0 0
    %3880 = vmatprep.subr.bf16.mxu0 0
    %3881 = vmatpush1.bf16.msra.mxu0 0
    %3882 = vmatprep.subr.bf16.mxu0 0
    %3883 = vmatpush1.bf16.msra.mxu0 0
    %3884 = vmatprep.subr.bf16.mxu0 0
    %3885 = vmatpush1.bf16.msra.mxu0 0
    %3886 = vmatprep.subr.bf16.mxu0 0
    %3887 = vmatpush1.bf16.msra.mxu0 0
    %3888 = vmatprep.subr.bf16.mxu0 0
    %3889 = vmatpush1.bf16.msra.mxu0 0
    %3890 = vmatprep.subr.bf16.mxu0 0
    %3891 = vmatpush1.bf16.msra.mxu0 0
    %3892 = vmatprep.subr.bf16.mxu0 0
    %3893 = vmatpush1.bf16.msra.mxu0 0
    %3894 = vmatprep.mubr.bf16.mxu0 0
    %3895 = vmatmul.mubr.bf16.gmra.mrb[0].mxu0 %v3630
    %v3896 = vpop.f32.mrb[0].mxu0
    %v3897 = vadd.f32 %v3841, %v3896
    %v3898 = vpop.f32.mrb[0].mxu0
    %v3899 = vpop.f32.mrb[0].mxu0
    %v3900 = vadd.f32 %v3844, %v3899
    %v3901 = vpop.f32.mrb[0].mxu0
    %3902 = vmatprep.mubr.bf16.mxu0 0
    %3903 = vmatmul.mubr.bf16.gmra.mrb[0].mxu0 %v3646
    %v3904 = vpop.f32.mrb[0].mxu0
    %v3905 = vadd.f32 %v3849, %v3904
    %v3906 = vpop.f32.mrb[0].mxu0
    %v3907 = vpop.f32.mrb[0].mxu0
    %v3908 = vadd.f32 %v3852, %v3907
    %v3909 = vpop.f32.mrb[0].mxu0
    %3910 = vmatprep.mubr.bf16.mxu0 0
    %3911 = vmatmul.mubr.bf16.gmra.mrb[0].mxu0 %v3652
    %v3912 = vpop.f32.mrb[0].mxu0
    %v3913 = vadd.f32 %v3857, %v3912
    %v3914 = vpop.f32.mrb[0].mxu0
    %v3915 = vpop.f32.mrb[0].mxu0
    %v3916 = vpop.f32.mrb[0].mxu0
    %3917 = vdwg.mxu0
    %v3918 = vmul.f32 %v3897, %v316
    %v3919 = vmul.f32 %v3900, %v321
    %v3920 = vmul.f32 %v3905, %v326
    %v3921 = vmul.f32 %v3908, %v331
    %v3922 = vmul.f32 %v3913, %v336
    %3923 = vst [vmem:[#allocation15] sm:$0xff] %v3918
    %3924 = vst [vmem:[#allocation15 + $0x8] sm:$0xff] %v3919
    %3925 = vst [vmem:[#allocation15 + $0x10] sm:$0xff] %v3920
    %3926 = vst [vmem:[#allocation15 + $0x18] sm:$0xff] %v3921
    %3927 = vst [vmem:[#allocation15 + $0x20] sm:$0xf] %v3922
    // Predicated region
    $region134: #{tpu_custom_call.1} parent=1 // pred_check
      _
    $region135: #{tpu_custom_call.1} parent=1 // pred_check_branch
      %3929 = sbr.rel (0) target = $region137
    $region136: #{tpu_custom_call.1} parent=1 // pred_region
      %s3931 = ssub.s32 640, 640
      %3932 = vsyncadd [#allocation5], %s3931
      %s3933 = sshll.u32 [#allocation15], 4
      %s3934 = int_to_ptr.vmem [resolvable:$true] %s3933
      %3939 = dma.vmem_to_hbm [thread:$0]  %s3934, 640, %s26, [#allocation5], 128, 128, 8
    $region137: #{tpu_custom_call.1} parent=1 // pred_fallthru
      _
    // Predicated region
    $region138: #{tpu_custom_call.1} parent=1 // pred_check
      _
    $region139: #{tpu_custom_call.1} parent=1 // pred_check_branch
      %3941 = sbr.rel (0) target = $region141
    $region140: #{tpu_custom_call.1} parent=1 // pred_region
      %3942 = dma.done [#allocation5], 640
    $region141: #{tpu_custom_call.1} parent=1 // pred_fallthru
      _
    %3943 = vsyncpa [#allocation4], 1
    %3944 = vsyncpa [#allocation7], 1
    %3945 = vsyncpa [#allocation10], 1
    %3946 = vsyncpa [#allocation13], 1
    %3947 = vsyncpa [#allocation5], 1

</llo_original>
